<compile_context>
chip_gen: v7x
topology: tpu7x:2x2x1
jax: 0.10.0
libtpu: 0.0.40
codegen_flags: <defaults>
</compile_context>

<pallas_src>
import functools

import jax
import jax.numpy as jnp
from jax import lax
from jax.experimental import pallas as pl
from jax.experimental.pallas import tpu as pltpu


def _round_up(v, m):
    return (v + m - 1) // m * m


def _resblock_kernel(xc_ref, x_hbm, w1_ref, b1_ref, w2_ref, b2_ref, o_ref,
                     halo, xin, y1p, sem, *, TH, W, Wp, Cp, K, res_scale):
    """One grid step = one batch element x one TH-row tile.

    xc_ref : (1, TH, Wp, Cp)   auto-pipelined center rows (f32, residual source)
    x_hbm  : (N, H, Wp, Cp)    full input, stays in HBM (pl.ANY); halo DMAs only
    w*_ref : (K, K, Cp, Cp)    weights in compute dtype (resident in VMEM)
    b*_ref : (1, Cp)           biases (f32)
    o_ref  : (1, TH, W, Cp)    lane-dense output tile
    halo   : (4p, Wp, Cp)      f32 staging for the top / bottom 2p-row halos
    xin    : (TH+4p, Wp, Cp)   conv1 source, compute dtype
    y1p    : (TH+2p, Wp, Cp)   conv1 output (+ zero W-halo cols), compute dtype
    sem    : DMA semaphores (2,)
    """
    p = K // 2
    n = pl.program_id(0)
    i = pl.program_id(1)
    nh = pl.num_programs(1)
    r0 = pl.multiple_of(i * TH, TH)
    rows1 = TH + 2 * p                 # conv1 output rows needed by conv2

    # ---- issue both halo DMAs up-front so they overlap each other and the
    #      center copy / zero fills below -----------------------------------
    @pl.when(i > 0)
    def _():
        pltpu.make_async_copy(x_hbm.at[n, pl.ds(r0 - 2 * p, 2 * p), :, :],
                              halo.at[pl.ds(0, 2 * p), :, :], sem.at[0]).start()

    @pl.when(i < nh - 1)
    def _():
        pltpu.make_async_copy(x_hbm.at[n, pl.ds(r0 + TH, 2 * p), :, :],
                              halo.at[pl.ds(2 * p, 2 * p), :, :], sem.at[1]).start()

    # Center rows come from the auto-pipelined block (already in VMEM); one
    # cast into the compute-dtype conv source while the halo DMAs fly.
    xin[2 * p:2 * p + TH, :, :] = xc_ref[0].astype(xin.dtype)

    # Thin W-halo columns of the conv1 output buffer (zero "same" padding).
    y1p[:, 0:p, :] = jnp.zeros((rows1, p, Cp), y1p.dtype)
    y1p[:, p + W:p + W + p, :] = jnp.zeros((rows1, p, Cp), y1p.dtype)

    # Top halo rows: zero padding at the top edge, DMA'd otherwise.
    @pl.when(i == 0)
    def _():
        xin[0:2 * p, :, :] = jnp.zeros((2 * p, Wp, Cp), xin.dtype)

    @pl.when(i > 0)
    def _():
        pltpu.make_async_copy(x_hbm.at[n, pl.ds(r0 - 2 * p, 2 * p), :, :],
                              halo.at[pl.ds(0, 2 * p), :, :], sem.at[0]).wait()
        xin[0:2 * p, :, :] = halo[0:2 * p, :, :].astype(xin.dtype)

    # Bottom halo rows.
    @pl.when(i == nh - 1)
    def _():
        xin[2 * p + TH:4 * p + TH, :, :] = jnp.zeros((2 * p, Wp, Cp), xin.dtype)

    @pl.when(i < nh - 1)
    def _():
        pltpu.make_async_copy(x_hbm.at[n, pl.ds(r0 + TH, 2 * p), :, :],
                              halo.at[pl.ds(2 * p, 2 * p), :, :], sem.at[1]).wait()
        xin[2 * p + TH:4 * p + TH, :, :] = halo[2 * p:4 * p, :, :].astype(xin.dtype)

    # ------------------------------------------------------------------
    # "same" KxK conv = K*K shifted (m,Cp)x(Cp,Cp) MXU matmuls, f32 acc.
    # (No im2col buffer; best fit for v5e's 128-deep MXU, MRB-accumulated
    #  on v7x.  A kh-grouped contraction-384 variant would fill v6e's MXU
    #  better at the cost of a 3x patch buffer.)
    # ------------------------------------------------------------------
    def conv_taps(src_ref, out_rows, w_ref, b_ref):
        m = out_rows * W
        acc = None
        for kh in range(K):
            for kw in range(K):
                lhs = src_ref[kh:kh + out_rows, kw:kw + W, :].reshape(m, Cp)
                d = jnp.dot(lhs, w_ref[kh, kw, :, :],
                            preferred_element_type=jnp.float32)
                acc = d if acc is None else acc + d
        return acc + b_ref[...]                      # (m, Cp) float32

    # conv1 + bias + ReLU on TH + 2p rows (conv2 needs a p-row halo of it).
    y1 = jnp.maximum(conv_taps(xin, rows1, w1_ref, b1_ref), 0.0)
    y1p[:, p:p + W, :] = y1.reshape(rows1, W, Cp).astype(y1p.dtype)

    # Rows outside the image must be exact zeros for conv2's zero padding;
    # only the first / last row-tile ever needs this.
    @pl.when(i == 0)
    def _():
        y1p[0:p, :, :] = jnp.zeros((p, Wp, Cp), y1p.dtype)

    @pl.when(i == nh - 1)
    def _():
        y1p[rows1 - p:rows1, :, :] = jnp.zeros((p, Wp, Cp), y1p.dtype)

    # conv2 + bias, res_scale, residual add (f32 residual, natural 3-D layout).
    res = conv_taps(y1p, TH, w2_ref, b2_ref) * res_scale
    o_ref[0] = (res.reshape(TH, W, Cp)
                + xc_ref[0, :, p:p + W, :]).astype(o_ref.dtype)


def resblock_pallas(x, w1, b1, w2, b2, *, res_scale=1.0, row_tile=None,
                    compute_dtype=jnp.bfloat16, keep_padded_channels=False):
    """EDSR ResBlock forward: x + res_scale * (conv2(relu(conv1(x)+b1)) + b2).

    x : (N, H, W, C) float32 NHWC;  w*: (K, K, C, C) HWIO;  b*: (C,).
    "same" zero padding with odd K (matches nn.Conv2d(padding=K//2)).
    compute_dtype feeds the MXU (bf16 recommended on v5e/v6e/v7x); all
    accumulation, bias, scaling and the residual add stay float32.
    """
    N, H, W, C = x.shape
    K = int(w1.shape[0])
    if K % 2 != 1:
        raise ValueError("kernel_size must be odd (EDSR uses 3).")
    p = K // 2

    Cp = _round_up(max(C, 128), 128)     # lane-dense channels
    Wp = W + 2 * p                       # thin W halo folded into the layout pad

    # ---- per-generation VMEM budget -> row tile + vmem limit ---------------
    try:
        vmem_cap = int(pltpu.get_tpu_info().vmem_capacity_bytes)
    except Exception:
        vmem_cap = 64 * 1024 * 1024      # conservative (v7x-sized) fallback
    cbytes = jnp.dtype(compute_dtype).itemsize
    xbytes = jnp.dtype(x.dtype).itemsize

    def vmem_bytes(th):
        b = 2 * th * Wp * Cp * xbytes            # pipelined input block (2 bufs)
        b += 4 * p * Wp * Cp * xbytes            # halo staging
        b += (th + 4 * p) * Wp * Cp * cbytes     # xin (conv1 source)
        b += (th + 2 * p) * Wp * Cp * cbytes     # y1p (conv2 source)
        b += 2 * th * W * Cp * xbytes            # output block (2 bufs)
        b += 2 * 2 * K * K * Cp * Cp * cbytes    # w1, w2 (2 bufs each)
        b += 2 * 2 * Cp * 4                      # biases
        return b

    if row_tile is None:
        budget = int(0.55 * vmem_cap)
        cands = [t for t in range(1, H + 1)
                 if H % t == 0 and (t >= 2 * p or t == H)]
        fits = [t for t in cands if vmem_bytes(t) <= budget]
        row_tile = max(fits) if fits else min(cands)
    TH = int(row_tile)
    if H % TH != 0:
        raise ValueError(f"row_tile={TH} must divide H={H}")
    nh = H // TH
    if nh > 1 and TH < 2 * p:
        raise ValueError("row_tile must be >= 2*(K//2) when tiling rows")
    vmem_limit = int(min(0.9 * vmem_cap,
                         max(2 * vmem_bytes(TH), 64 * 1024 * 1024)))

    # One-time layout prep: lane-dense channel pad + thin W halo.  x stays
    # float32 so the residual add is exact; conv inputs are cast in-kernel.
    x_prep = jnp.pad(x, ((0, 0), (0, 0), (p, p), (0, Cp - C)))

    def prep_w(w):
        wpad = jnp.pad(w, ((0, 0), (0, 0), (0, Cp - C), (0, Cp - C)))
        return wpad.astype(compute_dtype)            # (K, K, Cp, Cp)

    def prep_b(b):
        return jnp.pad(b, (0, Cp - C)).reshape(1, Cp).astype(jnp.float32)

    kernel = functools.partial(_resblock_kernel, TH=TH, W=W, Wp=Wp, Cp=Cp,
                               K=K, res_scale=float(res_scale))

    out = pl.pallas_call(
        kernel,
        out_shape=jax.ShapeDtypeStruct((N, H, W, Cp), x.dtype),
        grid_spec=pltpu.PrefetchScalarGridSpec(
            num_scalar_prefetch=0,
            grid=(N, nh),
            in_specs=[
                pl.BlockSpec((1, TH, Wp, Cp), lambda n, i: (n, i, 0, 0)),  # x ctr
                pl.BlockSpec(memory_space=pl.ANY),                         # x halo
                pl.BlockSpec((K, K, Cp, Cp), lambda n, i: (0, 0, 0, 0)),   # w1
                pl.BlockSpec((1, Cp), lambda n, i: (0, 0)),                # b1
                pl.BlockSpec((K, K, Cp, Cp), lambda n, i: (0, 0, 0, 0)),   # w2
                pl.BlockSpec((1, Cp), lambda n, i: (0, 0)),                # b2
            ],
            out_specs=pl.BlockSpec((1, TH, W, Cp), lambda n, i: (n, i, 0, 0)),
            scratch_shapes=[
                pltpu.VMEM((4 * p, Wp, Cp), x_prep.dtype),         # halo staging
                pltpu.VMEM((TH + 4 * p, Wp, Cp), compute_dtype),   # conv1 source
                pltpu.VMEM((TH + 2 * p, Wp, Cp), compute_dtype),   # conv2 source
                pltpu.SemaphoreType.DMA((2,)),
            ],
        ),
        compiler_params=pltpu.CompilerParams(
            dimension_semantics=("parallel", "parallel"),
            vmem_limit_bytes=vmem_limit,
        ),
    )(x_prep, x_prep, prep_w(w1), prep_b(b1), prep_w(w2), prep_b(b2))

    if keep_padded_channels:
        return out                       # (N, H, W, Cp): chain blocks pad-free
    return out[..., :C]


def resblock_ref(x, w1, b1, w2, b2, *, res_scale=1.0):
    """Pure-JAX reference (NHWC, HWIO, same padding)."""
    dn = lax.conv_dimension_numbers(x.shape, w1.shape, ("NHWC", "HWIO", "NHWC"))
    y = lax.conv_general_dilated(x, w1, (1, 1), "SAME", dimension_numbers=dn)
    y = jnp.maximum(y + b1[None, None, None, :], 0.0)
    y = lax.conv_general_dilated(y, w2, (1, 1), "SAME", dimension_numbers=dn)
    y = (y + b2[None, None, None, :]) * res_scale
    return y + x


if __name__ == "__main__":
    N, H, W, C, K = 2, 16, 16, 8, 3
    res_scale = 1.0

    key = jax.random.PRNGKey(0)
    kx, kw1, kb1, kw2, kb2 = jax.random.split(key, 5)

    x = jax.random.normal(kx, (N, H, W, C), jnp.float32)
    # shapes per nn.Conv2d(C, C, 3, padding=1, bias=True), HWIO convention
    w1 = jax.random.normal(kw1, (K, K, C, C), jnp.float32) * 0.1
    b1 = jax.random.normal(kb1, (C,), jnp.float32) * 0.1
    w2 = jax.random.normal(kw2, (K, K, C, C), jnp.float32) * 0.1
    b2 = jax.random.normal(kb2, (C,), jnp.float32) * 0.1

    ref = resblock_ref(x, w1, b1, w2, b2, res_scale=res_scale)

    # f32 MXU path with row_tile=8 -> grid (2, 2): exercises the halo-DMA path.
    out32 = resblock_pallas(x, w1, b1, w2, b2, res_scale=res_scale, row_tile=8,
                            compute_dtype=jnp.float32)
    out32 = jax.block_until_ready(out32)
    assert out32.shape == (N, H, W, C)
    err32 = float(jnp.max(jnp.abs(out32 - ref)))
    assert err32 < 1e-3, f"f32 path max abs err {err32}"

    # Default bf16 MXU path, auto row-tile (nh=1 at this size): looser tolerance
    # (conv inputs rounded to bf16; accumulation and residual stay f32).
    outbf = resblock_pallas(x, w1, b1, w2, b2, res_scale=res_scale)
    outbf = jax.block_until_ready(outbf)
    assert outbf.shape == (N, H, W, C)
    errbf = float(jnp.max(jnp.abs(outbf - ref)))
    assert errbf < 1e-1, f"bf16 path max abs err {errbf}"

    print("KERNEL_OK")
</pallas_src>

<mosaic_0001>
module attributes {stable_mosaic.version = 11 : i64} {
  func.func @_resblock_kernel(%arg0: i32, %arg1: i32, %arg2: memref<1x8x18x128xf32, #tpu.memory_space<vmem>>, %arg3: memref<2x16x18x128xf32, #tpu.memory_space<any>>, %arg4: memref<3x3x128x128xf32, #tpu.memory_space<vmem>>, %arg5: memref<1x128xf32, #tpu.memory_space<vmem>>, %arg6: memref<3x3x128x128xf32, #tpu.memory_space<vmem>>, %arg7: memref<1x128xf32, #tpu.memory_space<vmem>>, %arg8: memref<1x8x16x128xf32, #tpu.memory_space<vmem>>, %arg9: memref<4x18x128xf32, #tpu.memory_space<vmem>>, %arg10: memref<12x18x128xf32, #tpu.memory_space<vmem>>, %arg11: memref<10x18x128xf32, #tpu.memory_space<vmem>>, %arg12: memref<2x!tpu.dma_semaphore, #tpu.memory_space<semaphore_mem>>) attributes {dimension_semantics = [#tpu.dimension_semantics<parallel>, #tpu.dimension_semantics<parallel>], iteration_bounds = array<i64: 2, 2>, scalar_prefetch = 0 : i64, scratch_operands = 4 : i64, tpu.core_type = #tpu.core_type<tc>, window_params = [{transform_indices = @transform_0, window_bounds = array<i64: 1, 8, 18, 128>}, {}, {pipeline_mode = #tpu.pipeline_mode<synchronous>, transform_indices = @transform_2, window_bounds = array<i64: 3, 3, 128, 128>}, {pipeline_mode = #tpu.pipeline_mode<synchronous>, transform_indices = @transform_3, window_bounds = array<i64: 1, 128>}, {pipeline_mode = #tpu.pipeline_mode<synchronous>, transform_indices = @transform_4, window_bounds = array<i64: 3, 3, 128, 128>}, {pipeline_mode = #tpu.pipeline_mode<synchronous>, transform_indices = @transform_5, window_bounds = array<i64: 1, 128>}, {transform_indices = @transform_6, window_bounds = array<i64: 1, 8, 16, 128>}]} {
    %c8_i32 = arith.constant 8 : i32
    %0 = arith.muli %arg1, %c8_i32 : i32
    %1 = tpu.assume_multiple %0, 8 : i32
    %c0_i32 = arith.constant 0 : i32
    %2 = arith.cmpi sgt, %arg1, %c0_i32 : i32
    %3 = arith.extui %2 : i1 to i32
    %c0_i32_0 = arith.constant 0 : i32
    %4 = arith.cmpi ne, %3, %c0_i32_0 : i32
    scf.if %4 {
      %c2_i32 = arith.constant 2 : i32
      %158 = arith.subi %1, %c2_i32 : i32
      %c0_i32_185 = arith.constant 0 : i32
      %c0_i32_186 = arith.constant 0 : i32
      %c0_i32_187 = arith.constant 0 : i32
      %159 = tpu.memref_slice %arg3[%arg0, %158, %c0_i32_186, %c0_i32_187] : memref<2x16x18x128xf32, #tpu.memory_space<any>> -> memref<1x2x18x128xf32, #tpu.memory_space<any>>
      %160 = tpu.memref_squeeze %159 : memref<1x2x18x128xf32, #tpu.memory_space<any>> -> memref<2x18x128xf32, #tpu.memory_space<any>>
      %c0_i32_188 = arith.constant 0 : i32
      %c0_i32_189 = arith.constant 0 : i32
      %c0_i32_190 = arith.constant 0 : i32
      %161 = tpu.memref_slice %arg9[%c0_i32_188, %c0_i32_189, %c0_i32_190] : memref<4x18x128xf32, #tpu.memory_space<vmem>> -> memref<2x18x128xf32, #tpu.memory_space<vmem>>
      %162 = tpu.memref_slice %arg12[%c0_i32_185] : memref<2x!tpu.dma_semaphore, #tpu.memory_space<semaphore_mem>> -> memref<1x!tpu.dma_semaphore, #tpu.memory_space<semaphore_mem>>
      %163 = tpu.memref_squeeze %162 : memref<1x!tpu.dma_semaphore, #tpu.memory_space<semaphore_mem>> -> memref<!tpu.dma_semaphore, #tpu.memory_space<semaphore_mem>>
      tpu.enqueue_dma source(%160 : memref<2x18x128xf32, #tpu.memory_space<any>>) target(%161 : memref<2x18x128xf32, #tpu.memory_space<vmem>>) target_semaphore(%163 : memref<!tpu.dma_semaphore, #tpu.memory_space<semaphore_mem>>)
    } else {
    }
    %c1_i32 = arith.constant 1 : i32
    %5 = arith.cmpi slt, %arg1, %c1_i32 : i32
    %6 = arith.extui %5 : i1 to i32
    %c0_i32_1 = arith.constant 0 : i32
    %7 = arith.cmpi ne, %6, %c0_i32_1 : i32
    scf.if %7 {
      %c8_i32_185 = arith.constant 8 : i32
      %158 = arith.addi %1, %c8_i32_185 : i32
      %c1_i32_186 = arith.constant 1 : i32
      %c0_i32_187 = arith.constant 0 : i32
      %c0_i32_188 = arith.constant 0 : i32
      %159 = tpu.memref_slice %arg3[%arg0, %158, %c0_i32_187, %c0_i32_188] : memref<2x16x18x128xf32, #tpu.memory_space<any>> -> memref<1x2x18x128xf32, #tpu.memory_space<any>>
      %160 = tpu.memref_squeeze %159 : memref<1x2x18x128xf32, #tpu.memory_space<any>> -> memref<2x18x128xf32, #tpu.memory_space<any>>
      %c2_i32 = arith.constant 2 : i32
      %c0_i32_189 = arith.constant 0 : i32
      %c0_i32_190 = arith.constant 0 : i32
      %161 = tpu.memref_slice %arg9[%c2_i32, %c0_i32_189, %c0_i32_190] : memref<4x18x128xf32, #tpu.memory_space<vmem>> -> memref<2x18x128xf32, #tpu.memory_space<vmem>>
      %162 = tpu.memref_slice %arg12[%c1_i32_186] : memref<2x!tpu.dma_semaphore, #tpu.memory_space<semaphore_mem>> -> memref<1x!tpu.dma_semaphore, #tpu.memory_space<semaphore_mem>>
      %163 = tpu.memref_squeeze %162 : memref<1x!tpu.dma_semaphore, #tpu.memory_space<semaphore_mem>> -> memref<!tpu.dma_semaphore, #tpu.memory_space<semaphore_mem>>
      tpu.enqueue_dma source(%160 : memref<2x18x128xf32, #tpu.memory_space<any>>) target(%161 : memref<2x18x128xf32, #tpu.memory_space<vmem>>) target_semaphore(%163 : memref<!tpu.dma_semaphore, #tpu.memory_space<semaphore_mem>>)
    } else {
    }
    %c0 = arith.constant 0 : index
    %c0_2 = arith.constant 0 : index
    %c0_3 = arith.constant 0 : index
    %c0_4 = arith.constant 0 : index
    %8 = vector.load %arg2[%c0, %c0_2, %c0_3, %c0_4] : memref<1x8x18x128xf32, #tpu.memory_space<vmem>>, vector<1x8x18x128xf32>
    %9 = vector.shape_cast %8 : vector<1x8x18x128xf32> to vector<8x18x128xf32>
    %c2 = arith.constant 2 : index
    %c0_5 = arith.constant 0 : index
    %c0_6 = arith.constant 0 : index
    %10 = vector.load %arg10[%c2, %c0_5, %c0_6] : memref<12x18x128xf32, #tpu.memory_space<vmem>>, vector<8x18x128xf32>
    tpu.vector_store %arg10[%c2, %c0_5, %c0_6], %9 {strides = array<i32>} : memref<12x18x128xf32, #tpu.memory_space<vmem>>, vector<8x18x128xf32>,
    %cst = arith.constant 0.000000e+00 : f32
    %11 = vector.broadcast %cst : f32 to vector<10x1x128xf32>
    %c0_7 = arith.constant 0 : index
    %c0_8 = arith.constant 0 : index
    %c0_9 = arith.constant 0 : index
    %12 = vector.load %arg11[%c0_7, %c0_8, %c0_9] : memref<10x18x128xf32, #tpu.memory_space<vmem>>, vector<10x1x128xf32>
    tpu.vector_store %arg11[%c0_7, %c0_8, %c0_9], %11 {strides = array<i32>} : memref<10x18x128xf32, #tpu.memory_space<vmem>>, vector<10x1x128xf32>,
    %cst_10 = arith.constant 0.000000e+00 : f32
    %13 = vector.broadcast %cst_10 : f32 to vector<10x1x128xf32>
    %c0_11 = arith.constant 0 : index
    %c17 = arith.constant 17 : index
    %c0_12 = arith.constant 0 : index
    %14 = vector.load %arg11[%c0_11, %c17, %c0_12] : memref<10x18x128xf32, #tpu.memory_space<vmem>>, vector<10x1x128xf32>
    tpu.vector_store %arg11[%c0_11, %c17, %c0_12], %13 {strides = array<i32>} : memref<10x18x128xf32, #tpu.memory_space<vmem>>, vector<10x1x128xf32>,
    %c0_i32_13 = arith.constant 0 : i32
    %15 = arith.cmpi eq, %arg1, %c0_i32_13 : i32
    %16 = arith.extui %15 : i1 to i32
    %c0_i32_14 = arith.constant 0 : i32
    %17 = arith.cmpi ne, %16, %c0_i32_14 : i32
    scf.if %17 {
      %cst_185 = arith.constant 0.000000e+00 : f32
      %158 = vector.broadcast %cst_185 : f32 to vector<2x18x128xf32>
      %c0_186 = arith.constant 0 : index
      %c0_187 = arith.constant 0 : index
      %c0_188 = arith.constant 0 : index
      %159 = vector.load %arg10[%c0_186, %c0_187, %c0_188] : memref<12x18x128xf32, #tpu.memory_space<vmem>>, vector<2x18x128xf32>
      tpu.vector_store %arg10[%c0_186, %c0_187, %c0_188], %158 {strides = array<i32>} : memref<12x18x128xf32, #tpu.memory_space<vmem>>, vector<2x18x128xf32>,
    } else {
    }
    %c0_i32_15 = arith.constant 0 : i32
    %18 = arith.cmpi sgt, %arg1, %c0_i32_15 : i32
    %19 = arith.extui %18 : i1 to i32
    %c0_i32_16 = arith.constant 0 : i32
    %20 = arith.cmpi ne, %19, %c0_i32_16 : i32
    scf.if %20 {
      %c2_i32 = arith.constant 2 : i32
      %158 = arith.subi %1, %c2_i32 : i32
      %c0_i32_185 = arith.constant 0 : i32
      %c0_i32_186 = arith.constant 0 : i32
      %c0_i32_187 = arith.constant 0 : i32
      %159 = tpu.memref_slice %arg3[%arg0, %158, %c0_i32_186, %c0_i32_187] : memref<2x16x18x128xf32, #tpu.memory_space<any>> -> memref<1x2x18x128xf32, #tpu.memory_space<any>>
      %160 = tpu.memref_squeeze %159 : memref<1x2x18x128xf32, #tpu.memory_space<any>> -> memref<2x18x128xf32, #tpu.memory_space<any>>
      %c0_i32_188 = arith.constant 0 : i32
      %c0_i32_189 = arith.constant 0 : i32
      %c0_i32_190 = arith.constant 0 : i32
      %161 = tpu.memref_slice %arg9[%c0_i32_188, %c0_i32_189, %c0_i32_190] : memref<4x18x128xf32, #tpu.memory_space<vmem>> -> memref<2x18x128xf32, #tpu.memory_space<vmem>>
      %162 = tpu.memref_slice %arg12[%c0_i32_185] : memref<2x!tpu.dma_semaphore, #tpu.memory_space<semaphore_mem>> -> memref<1x!tpu.dma_semaphore, #tpu.memory_space<semaphore_mem>>
      %163 = tpu.memref_squeeze %162 : memref<1x!tpu.dma_semaphore, #tpu.memory_space<semaphore_mem>> -> memref<!tpu.dma_semaphore, #tpu.memory_space<semaphore_mem>>
      tpu.wait_dma2 semaphore(%163 : memref<!tpu.dma_semaphore, #tpu.memory_space<semaphore_mem>>) src(%160 : memref<2x18x128xf32, #tpu.memory_space<any>>) dst(%161 : memref<2x18x128xf32, #tpu.memory_space<vmem>>)
      %c0_191 = arith.constant 0 : index
      %c0_192 = arith.constant 0 : index
      %c0_193 = arith.constant 0 : index
      %164 = vector.load %arg9[%c0_191, %c0_192, %c0_193] : memref<4x18x128xf32, #tpu.memory_space<vmem>>, vector<2x18x128xf32>
      %c0_194 = arith.constant 0 : index
      %c0_195 = arith.constant 0 : index
      %c0_196 = arith.constant 0 : index
      %165 = vector.load %arg10[%c0_194, %c0_195, %c0_196] : memref<12x18x128xf32, #tpu.memory_space<vmem>>, vector<2x18x128xf32>
      tpu.vector_store %arg10[%c0_194, %c0_195, %c0_196], %164 {strides = array<i32>} : memref<12x18x128xf32, #tpu.memory_space<vmem>>, vector<2x18x128xf32>,
    } else {
    }
    %c1_i32_17 = arith.constant 1 : i32
    %21 = arith.cmpi eq, %arg1, %c1_i32_17 : i32
    %22 = arith.extui %21 : i1 to i32
    %c0_i32_18 = arith.constant 0 : i32
    %23 = arith.cmpi ne, %22, %c0_i32_18 : i32
    scf.if %23 {
      %cst_185 = arith.constant 0.000000e+00 : f32
      %158 = vector.broadcast %cst_185 : f32 to vector<2x18x128xf32>
      %c10 = arith.constant 10 : index
      %c0_186 = arith.constant 0 : index
      %c0_187 = arith.constant 0 : index
      %159 = vector.load %arg10[%c10, %c0_186, %c0_187] : memref<12x18x128xf32, #tpu.memory_space<vmem>>, vector<2x18x128xf32>
      tpu.vector_store %arg10[%c10, %c0_186, %c0_187], %158 {strides = array<i32>} : memref<12x18x128xf32, #tpu.memory_space<vmem>>, vector<2x18x128xf32>,
    } else {
    }
    %c1_i32_19 = arith.constant 1 : i32
    %24 = arith.cmpi slt, %arg1, %c1_i32_19 : i32
    %25 = arith.extui %24 : i1 to i32
    %c0_i32_20 = arith.constant 0 : i32
    %26 = arith.cmpi ne, %25, %c0_i32_20 : i32
    scf.if %26 {
      %c8_i32_185 = arith.constant 8 : i32
      %158 = arith.addi %1, %c8_i32_185 : i32
      %c1_i32_186 = arith.constant 1 : i32
      %c0_i32_187 = arith.constant 0 : i32
      %c0_i32_188 = arith.constant 0 : i32
      %159 = tpu.memref_slice %arg3[%arg0, %158, %c0_i32_187, %c0_i32_188] : memref<2x16x18x128xf32, #tpu.memory_space<any>> -> memref<1x2x18x128xf32, #tpu.memory_space<any>>
      %160 = tpu.memref_squeeze %159 : memref<1x2x18x128xf32, #tpu.memory_space<any>> -> memref<2x18x128xf32, #tpu.memory_space<any>>
      %c2_i32 = arith.constant 2 : i32
      %c0_i32_189 = arith.constant 0 : i32
      %c0_i32_190 = arith.constant 0 : i32
      %161 = tpu.memref_slice %arg9[%c2_i32, %c0_i32_189, %c0_i32_190] : memref<4x18x128xf32, #tpu.memory_space<vmem>> -> memref<2x18x128xf32, #tpu.memory_space<vmem>>
      %162 = tpu.memref_slice %arg12[%c1_i32_186] : memref<2x!tpu.dma_semaphore, #tpu.memory_space<semaphore_mem>> -> memref<1x!tpu.dma_semaphore, #tpu.memory_space<semaphore_mem>>
      %163 = tpu.memref_squeeze %162 : memref<1x!tpu.dma_semaphore, #tpu.memory_space<semaphore_mem>> -> memref<!tpu.dma_semaphore, #tpu.memory_space<semaphore_mem>>
      tpu.wait_dma2 semaphore(%163 : memref<!tpu.dma_semaphore, #tpu.memory_space<semaphore_mem>>) src(%160 : memref<2x18x128xf32, #tpu.memory_space<any>>) dst(%161 : memref<2x18x128xf32, #tpu.memory_space<vmem>>)
      %c2_191 = arith.constant 2 : index
      %c0_192 = arith.constant 0 : index
      %c0_193 = arith.constant 0 : index
      %164 = vector.load %arg9[%c2_191, %c0_192, %c0_193] : memref<4x18x128xf32, #tpu.memory_space<vmem>>, vector<2x18x128xf32>
      %c10 = arith.constant 10 : index
      %c0_194 = arith.constant 0 : index
      %c0_195 = arith.constant 0 : index
      %165 = vector.load %arg10[%c10, %c0_194, %c0_195] : memref<12x18x128xf32, #tpu.memory_space<vmem>>, vector<2x18x128xf32>
      tpu.vector_store %arg10[%c10, %c0_194, %c0_195], %164 {strides = array<i32>} : memref<12x18x128xf32, #tpu.memory_space<vmem>>, vector<2x18x128xf32>,
    } else {
    }
    %c0_21 = arith.constant 0 : index
    %c0_22 = arith.constant 0 : index
    %c0_23 = arith.constant 0 : index
    %27 = vector.load %arg10[%c0_21, %c0_22, %c0_23] : memref<12x18x128xf32, #tpu.memory_space<vmem>>, vector<10x16x128xf32>
    %28 = vector.shape_cast %27 : vector<10x16x128xf32> to vector<160x128xf32>
    %c0_24 = arith.constant 0 : index
    %c0_25 = arith.constant 0 : index
    %c0_26 = arith.constant 0 : index
    %c0_27 = arith.constant 0 : index
    %29 = vector.load %arg4[%c0_24, %c0_25, %c0_26, %c0_27] : memref<3x3x128x128xf32, #tpu.memory_space<vmem>>, vector<1x1x128x128xf32>
    %30 = vector.shape_cast %29 : vector<1x1x128x128xf32> to vector<128x128xf32>
    %cst_28 = arith.constant dense<0.000000e+00> : vector<160x128xf32>
    %31 = tpu.matmul %28, %30, %cst_28 {dimension_numbers = #tpu.dot_dimension_numbers<[1], [0], [0], [1], [0, 0, 1, 1], [], []>} : vector<160x128xf32>, vector<128x128xf32>, vector<160x128xf32> -> vector<160x128xf32>
    %c0_29 = arith.constant 0 : index
    %c1 = arith.constant 1 : index
    %c0_30 = arith.constant 0 : index
    %32 = vector.load %arg10[%c0_29, %c1, %c0_30] : memref<12x18x128xf32, #tpu.memory_space<vmem>>, vector<10x16x128xf32>
    %33 = vector.shape_cast %32 : vector<10x16x128xf32> to vector<160x128xf32>
    %c0_31 = arith.constant 0 : index
    %c1_32 = arith.constant 1 : index
    %c0_33 = arith.constant 0 : index
    %c0_34 = arith.constant 0 : index
    %34 = vector.load %arg4[%c0_31, %c1_32, %c0_33, %c0_34] : memref<3x3x128x128xf32, #tpu.memory_space<vmem>>, vector<1x1x128x128xf32>
    %35 = vector.shape_cast %34 : vector<1x1x128x128xf32> to vector<128x128xf32>
    %cst_35 = arith.constant dense<0.000000e+00> : vector<160x128xf32>
    %36 = tpu.matmul %33, %35, %cst_35 {dimension_numbers = #tpu.dot_dimension_numbers<[1], [0], [0], [1], [0, 0, 1, 1], [], []>} : vector<160x128xf32>, vector<128x128xf32>, vector<160x128xf32> -> vector<160x128xf32>
    %37 = arith.addf %31, %36 : vector<160x128xf32>
    %c0_36 = arith.constant 0 : index
    %c2_37 = arith.constant 2 : index
    %c0_38 = arith.constant 0 : index
    %38 = vector.load %arg10[%c0_36, %c2_37, %c0_38] : memref<12x18x128xf32, #tpu.memory_space<vmem>>, vector<10x16x128xf32>
    %39 = vector.shape_cast %38 : vector<10x16x128xf32> to vector<160x128xf32>
    %c0_39 = arith.constant 0 : index
    %c2_40 = arith.constant 2 : index
    %c0_41 = arith.constant 0 : index
    %c0_42 = arith.constant 0 : index
    %40 = vector.load %arg4[%c0_39, %c2_40, %c0_41, %c0_42] : memref<3x3x128x128xf32, #tpu.memory_space<vmem>>, vector<1x1x128x128xf32>
    %41 = vector.shape_cast %40 : vector<1x1x128x128xf32> to vector<128x128xf32>
    %cst_43 = arith.constant dense<0.000000e+00> : vector<160x128xf32>
    %42 = tpu.matmul %39, %41, %cst_43 {dimension_numbers = #tpu.dot_dimension_numbers<[1], [0], [0], [1], [0, 0, 1, 1], [], []>} : vector<160x128xf32>, vector<128x128xf32>, vector<160x128xf32> -> vector<160x128xf32>
    %43 = arith.addf %37, %42 : vector<160x128xf32>
    %c1_44 = arith.constant 1 : index
    %c0_45 = arith.constant 0 : index
    %c0_46 = arith.constant 0 : index
    %44 = vector.load %arg10[%c1_44, %c0_45, %c0_46] : memref<12x18x128xf32, #tpu.memory_space<vmem>>, vector<10x16x128xf32>
    %45 = vector.shape_cast %44 : vector<10x16x128xf32> to vector<160x128xf32>
    %c1_47 = arith.constant 1 : index
    %c0_48 = arith.constant 0 : index
    %c0_49 = arith.constant 0 : index
    %c0_50 = arith.constant 0 : index
    %46 = vector.load %arg4[%c1_47, %c0_48, %c0_49, %c0_50] : memref<3x3x128x128xf32, #tpu.memory_space<vmem>>, vector<1x1x128x128xf32>
    %47 = vector.shape_cast %46 : vector<1x1x128x128xf32> to vector<128x128xf32>
    %cst_51 = arith.constant dense<0.000000e+00> : vector<160x128xf32>
    %48 = tpu.matmul %45, %47, %cst_51 {dimension_numbers = #tpu.dot_dimension_numbers<[1], [0], [0], [1], [0, 0, 1, 1], [], []>} : vector<160x128xf32>, vector<128x128xf32>, vector<160x128xf32> -> vector<160x128xf32>
    %49 = arith.addf %43, %48 : vector<160x128xf32>
    %c1_52 = arith.constant 1 : index
    %c1_53 = arith.constant 1 : index
    %c0_54 = arith.constant 0 : index
    %50 = vector.load %arg10[%c1_52, %c1_53, %c0_54] : memref<12x18x128xf32, #tpu.memory_space<vmem>>, vector<10x16x128xf32>
    %51 = vector.shape_cast %50 : vector<10x16x128xf32> to vector<160x128xf32>
    %c1_55 = arith.constant 1 : index
    %c1_56 = arith.constant 1 : index
    %c0_57 = arith.constant 0 : index
    %c0_58 = arith.constant 0 : index
    %52 = vector.load %arg4[%c1_55, %c1_56, %c0_57, %c0_58] : memref<3x3x128x128xf32, #tpu.memory_space<vmem>>, vector<1x1x128x128xf32>
    %53 = vector.shape_cast %52 : vector<1x1x128x128xf32> to vector<128x128xf32>
    %cst_59 = arith.constant dense<0.000000e+00> : vector<160x128xf32>
    %54 = tpu.matmul %51, %53, %cst_59 {dimension_numbers = #tpu.dot_dimension_numbers<[1], [0], [0], [1], [0, 0, 1, 1], [], []>} : vector<160x128xf32>, vector<128x128xf32>, vector<160x128xf32> -> vector<160x128xf32>
    %55 = arith.addf %49, %54 : vector<160x128xf32>
    %c1_60 = arith.constant 1 : index
    %c2_61 = arith.constant 2 : index
    %c0_62 = arith.constant 0 : index
    %56 = vector.load %arg10[%c1_60, %c2_61, %c0_62] : memref<12x18x128xf32, #tpu.memory_space<vmem>>, vector<10x16x128xf32>
    %57 = vector.shape_cast %56 : vector<10x16x128xf32> to vector<160x128xf32>
    %c1_63 = arith.constant 1 : index
    %c2_64 = arith.constant 2 : index
    %c0_65 = arith.constant 0 : index
    %c0_66 = arith.constant 0 : index
    %58 = vector.load %arg4[%c1_63, %c2_64, %c0_65, %c0_66] : memref<3x3x128x128xf32, #tpu.memory_space<vmem>>, vector<1x1x128x128xf32>
    %59 = vector.shape_cast %58 : vector<1x1x128x128xf32> to vector<128x128xf32>
    %cst_67 = arith.constant dense<0.000000e+00> : vector<160x128xf32>
    %60 = tpu.matmul %57, %59, %cst_67 {dimension_numbers = #tpu.dot_dimension_numbers<[1], [0], [0], [1], [0, 0, 1, 1], [], []>} : vector<160x128xf32>, vector<128x128xf32>, vector<160x128xf32> -> vector<160x128xf32>
    %61 = arith.addf %55, %60 : vector<160x128xf32>
    %c2_68 = arith.constant 2 : index
    %c0_69 = arith.constant 0 : index
    %c0_70 = arith.constant 0 : index
    %62 = vector.load %arg10[%c2_68, %c0_69, %c0_70] : memref<12x18x128xf32, #tpu.memory_space<vmem>>, vector<10x16x128xf32>
    %63 = vector.shape_cast %62 : vector<10x16x128xf32> to vector<160x128xf32>
    %c2_71 = arith.constant 2 : index
    %c0_72 = arith.constant 0 : index
    %c0_73 = arith.constant 0 : index
    %c0_74 = arith.constant 0 : index
    %64 = vector.load %arg4[%c2_71, %c0_72, %c0_73, %c0_74] : memref<3x3x128x128xf32, #tpu.memory_space<vmem>>, vector<1x1x128x128xf32>
    %65 = vector.shape_cast %64 : vector<1x1x128x128xf32> to vector<128x128xf32>
    %cst_75 = arith.constant dense<0.000000e+00> : vector<160x128xf32>
    %66 = tpu.matmul %63, %65, %cst_75 {dimension_numbers = #tpu.dot_dimension_numbers<[1], [0], [0], [1], [0, 0, 1, 1], [], []>} : vector<160x128xf32>, vector<128x128xf32>, vector<160x128xf32> -> vector<160x128xf32>
    %67 = arith.addf %61, %66 : vector<160x128xf32>
    %c2_76 = arith.constant 2 : index
    %c1_77 = arith.constant 1 : index
    %c0_78 = arith.constant 0 : index
    %68 = vector.load %arg10[%c2_76, %c1_77, %c0_78] : memref<12x18x128xf32, #tpu.memory_space<vmem>>, vector<10x16x128xf32>
    %69 = vector.shape_cast %68 : vector<10x16x128xf32> to vector<160x128xf32>
    %c2_79 = arith.constant 2 : index
    %c1_80 = arith.constant 1 : index
    %c0_81 = arith.constant 0 : index
    %c0_82 = arith.constant 0 : index
    %70 = vector.load %arg4[%c2_79, %c1_80, %c0_81, %c0_82] : memref<3x3x128x128xf32, #tpu.memory_space<vmem>>, vector<1x1x128x128xf32>
    %71 = vector.shape_cast %70 : vector<1x1x128x128xf32> to vector<128x128xf32>
    %cst_83 = arith.constant dense<0.000000e+00> : vector<160x128xf32>
    %72 = tpu.matmul %69, %71, %cst_83 {dimension_numbers = #tpu.dot_dimension_numbers<[1], [0], [0], [1], [0, 0, 1, 1], [], []>} : vector<160x128xf32>, vector<128x128xf32>, vector<160x128xf32> -> vector<160x128xf32>
    %73 = arith.addf %67, %72 : vector<160x128xf32>
    %c2_84 = arith.constant 2 : index
    %c2_85 = arith.constant 2 : index
    %c0_86 = arith.constant 0 : index
    %74 = vector.load %arg10[%c2_84, %c2_85, %c0_86] : memref<12x18x128xf32, #tpu.memory_space<vmem>>, vector<10x16x128xf32>
    %75 = vector.shape_cast %74 : vector<10x16x128xf32> to vector<160x128xf32>
    %c2_87 = arith.constant 2 : index
    %c2_88 = arith.constant 2 : index
    %c0_89 = arith.constant 0 : index
    %c0_90 = arith.constant 0 : index
    %76 = vector.load %arg4[%c2_87, %c2_88, %c0_89, %c0_90] : memref<3x3x128x128xf32, #tpu.memory_space<vmem>>, vector<1x1x128x128xf32>
    %77 = vector.shape_cast %76 : vector<1x1x128x128xf32> to vector<128x128xf32>
    %cst_91 = arith.constant dense<0.000000e+00> : vector<160x128xf32>
    %78 = tpu.matmul %75, %77, %cst_91 {dimension_numbers = #tpu.dot_dimension_numbers<[1], [0], [0], [1], [0, 0, 1, 1], [], []>} : vector<160x128xf32>, vector<128x128xf32>, vector<160x128xf32> -> vector<160x128xf32>
    %79 = arith.addf %73, %78 : vector<160x128xf32>
    %c0_92 = arith.constant 0 : index
    %c0_93 = arith.constant 0 : index
    %80 = vector.load %arg5[%c0_92, %c0_93] : memref<1x128xf32, #tpu.memory_space<vmem>>, vector<1x128xf32>
    %81 = vector.broadcast %80 : vector<1x128xf32> to vector<160x128xf32>
    %82 = arith.addf %79, %81 : vector<160x128xf32>
    %cst_94 = arith.constant 0.000000e+00 : f32
    %83 = vector.broadcast %cst_94 : f32 to vector<160x128xf32>
    %84 = arith.maximumf %82, %83 : vector<160x128xf32>
    %85 = vector.shape_cast %84 : vector<160x128xf32> to vector<10x16x128xf32>
    %c0_95 = arith.constant 0 : index
    %c1_96 = arith.constant 1 : index
    %c0_97 = arith.constant 0 : index
    %86 = vector.load %arg11[%c0_95, %c1_96, %c0_97] : memref<10x18x128xf32, #tpu.memory_space<vmem>>, vector<10x16x128xf32>
    tpu.vector_store %arg11[%c0_95, %c1_96, %c0_97], %85 {strides = array<i32>} : memref<10x18x128xf32, #tpu.memory_space<vmem>>, vector<10x16x128xf32>,
    %c0_i32_98 = arith.constant 0 : i32
    %87 = arith.cmpi eq, %arg1, %c0_i32_98 : i32
    %88 = arith.extui %87 : i1 to i32
    %c0_i32_99 = arith.constant 0 : i32
    %89 = arith.cmpi ne, %88, %c0_i32_99 : i32
    scf.if %89 {
      %cst_185 = arith.constant 0.000000e+00 : f32
      %158 = vector.broadcast %cst_185 : f32 to vector<1x18x128xf32>
      %c0_186 = arith.constant 0 : index
      %c0_187 = arith.constant 0 : index
      %c0_188 = arith.constant 0 : index
      %159 = vector.load %arg11[%c0_186, %c0_187, %c0_188] : memref<10x18x128xf32, #tpu.memory_space<vmem>>, vector<1x18x128xf32>
      tpu.vector_store %arg11[%c0_186, %c0_187, %c0_188], %158 {strides = array<i32>} : memref<10x18x128xf32, #tpu.memory_space<vmem>>, vector<1x18x128xf32>,
    } else {
    }
    %c1_i32_100 = arith.constant 1 : i32
    %90 = arith.cmpi eq, %arg1, %c1_i32_100 : i32
    %91 = arith.extui %90 : i1 to i32
    %c0_i32_101 = arith.constant 0 : i32
    %92 = arith.cmpi ne, %91, %c0_i32_101 : i32
    scf.if %92 {
      %cst_185 = arith.constant 0.000000e+00 : f32
      %158 = vector.broadcast %cst_185 : f32 to vector<1x18x128xf32>
      %c9 = arith.constant 9 : index
      %c0_186 = arith.constant 0 : index
      %c0_187 = arith.constant 0 : index
      %159 = vector.load %arg11[%c9, %c0_186, %c0_187] : memref<10x18x128xf32, #tpu.memory_space<vmem>>, vector<1x18x128xf32>
      tpu.vector_store %arg11[%c9, %c0_186, %c0_187], %158 {strides = array<i32>} : memref<10x18x128xf32, #tpu.memory_space<vmem>>, vector<1x18x128xf32>,
    } else {
    }
    %c0_102 = arith.constant 0 : index
    %c0_103 = arith.constant 0 : index
    %c0_104 = arith.constant 0 : index
    %93 = vector.load %arg11[%c0_102, %c0_103, %c0_104] : memref<10x18x128xf32, #tpu.memory_space<vmem>>, vector<8x16x128xf32>
    %94 = vector.shape_cast %93 : vector<8x16x128xf32> to vector<128x128xf32>
    %c0_105 = arith.constant 0 : index
    %c0_106 = arith.constant 0 : index
    %c0_107 = arith.constant 0 : index
    %c0_108 = arith.constant 0 : index
    %95 = vector.load %arg6[%c0_105, %c0_106, %c0_107, %c0_108] : memref<3x3x128x128xf32, #tpu.memory_space<vmem>>, vector<1x1x128x128xf32>
    %96 = vector.shape_cast %95 : vector<1x1x128x128xf32> to vector<128x128xf32>
    %cst_109 = arith.constant dense<0.000000e+00> : vector<128x128xf32>
    %97 = tpu.matmul %94, %96, %cst_109 {dimension_numbers = #tpu.dot_dimension_numbers<[1], [0], [0], [1], [0, 0, 1, 1], [], []>} : vector<128x128xf32>, vector<128x128xf32>, vector<128x128xf32> -> vector<128x128xf32>
    %c0_110 = arith.constant 0 : index
    %c1_111 = arith.constant 1 : index
    %c0_112 = arith.constant 0 : index
    %98 = vector.load %arg11[%c0_110, %c1_111, %c0_112] : memref<10x18x128xf32, #tpu.memory_space<vmem>>, vector<8x16x128xf32>
    %99 = vector.shape_cast %98 : vector<8x16x128xf32> to vector<128x128xf32>
    %c0_113 = arith.constant 0 : index
    %c1_114 = arith.constant 1 : index
    %c0_115 = arith.constant 0 : index
    %c0_116 = arith.constant 0 : index
    %100 = vector.load %arg6[%c0_113, %c1_114, %c0_115, %c0_116] : memref<3x3x128x128xf32, #tpu.memory_space<vmem>>, vector<1x1x128x128xf32>
    %101 = vector.shape_cast %100 : vector<1x1x128x128xf32> to vector<128x128xf32>
    %cst_117 = arith.constant dense<0.000000e+00> : vector<128x128xf32>
    %102 = tpu.matmul %99, %101, %cst_117 {dimension_numbers = #tpu.dot_dimension_numbers<[1], [0], [0], [1], [0, 0, 1, 1], [], []>} : vector<128x128xf32>, vector<128x128xf32>, vector<128x128xf32> -> vector<128x128xf32>
    %103 = arith.addf %97, %102 : vector<128x128xf32>
    %c0_118 = arith.constant 0 : index
    %c2_119 = arith.constant 2 : index
    %c0_120 = arith.constant 0 : index
    %104 = vector.load %arg11[%c0_118, %c2_119, %c0_120] : memref<10x18x128xf32, #tpu.memory_space<vmem>>, vector<8x16x128xf32>
    %105 = vector.shape_cast %104 : vector<8x16x128xf32> to vector<128x128xf32>
    %c0_121 = arith.constant 0 : index
    %c2_122 = arith.constant 2 : index
    %c0_123 = arith.constant 0 : index
    %c0_124 = arith.constant 0 : index
    %106 = vector.load %arg6[%c0_121, %c2_122, %c0_123, %c0_124] : memref<3x3x128x128xf32, #tpu.memory_space<vmem>>, vector<1x1x128x128xf32>
    %107 = vector.shape_cast %106 : vector<1x1x128x128xf32> to vector<128x128xf32>
    %cst_125 = arith.constant dense<0.000000e+00> : vector<128x128xf32>
    %108 = tpu.matmul %105, %107, %cst_125 {dimension_numbers = #tpu.dot_dimension_numbers<[1], [0], [0], [1], [0, 0, 1, 1], [], []>} : vector<128x128xf32>, vector<128x128xf32>, vector<128x128xf32> -> vector<128x128xf32>
    %109 = arith.addf %103, %108 : vector<128x128xf32>
    %c1_126 = arith.constant 1 : index
    %c0_127 = arith.constant 0 : index
    %c0_128 = arith.constant 0 : index
    %110 = vector.load %arg11[%c1_126, %c0_127, %c0_128] : memref<10x18x128xf32, #tpu.memory_space<vmem>>, vector<8x16x128xf32>
    %111 = vector.shape_cast %110 : vector<8x16x128xf32> to vector<128x128xf32>
    %c1_129 = arith.constant 1 : index
    %c0_130 = arith.constant 0 : index
    %c0_131 = arith.constant 0 : index
    %c0_132 = arith.constant 0 : index
    %112 = vector.load %arg6[%c1_129, %c0_130, %c0_131, %c0_132] : memref<3x3x128x128xf32, #tpu.memory_space<vmem>>, vector<1x1x128x128xf32>
    %113 = vector.shape_cast %112 : vector<1x1x128x128xf32> to vector<128x128xf32>
    %cst_133 = arith.constant dense<0.000000e+00> : vector<128x128xf32>
    %114 = tpu.matmul %111, %113, %cst_133 {dimension_numbers = #tpu.dot_dimension_numbers<[1], [0], [0], [1], [0, 0, 1, 1], [], []>} : vector<128x128xf32>, vector<128x128xf32>, vector<128x128xf32> -> vector<128x128xf32>
    %115 = arith.addf %109, %114 : vector<128x128xf32>
    %c1_134 = arith.constant 1 : index
    %c1_135 = arith.constant 1 : index
    %c0_136 = arith.constant 0 : index
    %116 = vector.load %arg11[%c1_134, %c1_135, %c0_136] : memref<10x18x128xf32, #tpu.memory_space<vmem>>, vector<8x16x128xf32>
    %117 = vector.shape_cast %116 : vector<8x16x128xf32> to vector<128x128xf32>
    %c1_137 = arith.constant 1 : index
    %c1_138 = arith.constant 1 : index
    %c0_139 = arith.constant 0 : index
    %c0_140 = arith.constant 0 : index
    %118 = vector.load %arg6[%c1_137, %c1_138, %c0_139, %c0_140] : memref<3x3x128x128xf32, #tpu.memory_space<vmem>>, vector<1x1x128x128xf32>
    %119 = vector.shape_cast %118 : vector<1x1x128x128xf32> to vector<128x128xf32>
    %cst_141 = arith.constant dense<0.000000e+00> : vector<128x128xf32>
    %120 = tpu.matmul %117, %119, %cst_141 {dimension_numbers = #tpu.dot_dimension_numbers<[1], [0], [0], [1], [0, 0, 1, 1], [], []>} : vector<128x128xf32>, vector<128x128xf32>, vector<128x128xf32> -> vector<128x128xf32>
    %121 = arith.addf %115, %120 : vector<128x128xf32>
    %c1_142 = arith.constant 1 : index
    %c2_143 = arith.constant 2 : index
    %c0_144 = arith.constant 0 : index
    %122 = vector.load %arg11[%c1_142, %c2_143, %c0_144] : memref<10x18x128xf32, #tpu.memory_space<vmem>>, vector<8x16x128xf32>
    %123 = vector.shape_cast %122 : vector<8x16x128xf32> to vector<128x128xf32>
    %c1_145 = arith.constant 1 : index
    %c2_146 = arith.constant 2 : index
    %c0_147 = arith.constant 0 : index
    %c0_148 = arith.constant 0 : index
    %124 = vector.load %arg6[%c1_145, %c2_146, %c0_147, %c0_148] : memref<3x3x128x128xf32, #tpu.memory_space<vmem>>, vector<1x1x128x128xf32>
    %125 = vector.shape_cast %124 : vector<1x1x128x128xf32> to vector<128x128xf32>
    %cst_149 = arith.constant dense<0.000000e+00> : vector<128x128xf32>
    %126 = tpu.matmul %123, %125, %cst_149 {dimension_numbers = #tpu.dot_dimension_numbers<[1], [0], [0], [1], [0, 0, 1, 1], [], []>} : vector<128x128xf32>, vector<128x128xf32>, vector<128x128xf32> -> vector<128x128xf32>
    %127 = arith.addf %121, %126 : vector<128x128xf32>
    %c2_150 = arith.constant 2 : index
    %c0_151 = arith.constant 0 : index
    %c0_152 = arith.constant 0 : index
    %128 = vector.load %arg11[%c2_150, %c0_151, %c0_152] : memref<10x18x128xf32, #tpu.memory_space<vmem>>, vector<8x16x128xf32>
    %129 = vector.shape_cast %128 : vector<8x16x128xf32> to vector<128x128xf32>
    %c2_153 = arith.constant 2 : index
    %c0_154 = arith.constant 0 : index
    %c0_155 = arith.constant 0 : index
    %c0_156 = arith.constant 0 : index
    %130 = vector.load %arg6[%c2_153, %c0_154, %c0_155, %c0_156] : memref<3x3x128x128xf32, #tpu.memory_space<vmem>>, vector<1x1x128x128xf32>
    %131 = vector.shape_cast %130 : vector<1x1x128x128xf32> to vector<128x128xf32>
    %cst_157 = arith.constant dense<0.000000e+00> : vector<128x128xf32>
    %132 = tpu.matmul %129, %131, %cst_157 {dimension_numbers = #tpu.dot_dimension_numbers<[1], [0], [0], [1], [0, 0, 1, 1], [], []>} : vector<128x128xf32>, vector<128x128xf32>, vector<128x128xf32> -> vector<128x128xf32>
    %133 = arith.addf %127, %132 : vector<128x128xf32>
    %c2_158 = arith.constant 2 : index
    %c1_159 = arith.constant 1 : index
    %c0_160 = arith.constant 0 : index
    %134 = vector.load %arg11[%c2_158, %c1_159, %c0_160] : memref<10x18x128xf32, #tpu.memory_space<vmem>>, vector<8x16x128xf32>
    %135 = vector.shape_cast %134 : vector<8x16x128xf32> to vector<128x128xf32>
    %c2_161 = arith.constant 2 : index
    %c1_162 = arith.constant 1 : index
    %c0_163 = arith.constant 0 : index
    %c0_164 = arith.constant 0 : index
    %136 = vector.load %arg6[%c2_161, %c1_162, %c0_163, %c0_164] : memref<3x3x128x128xf32, #tpu.memory_space<vmem>>, vector<1x1x128x128xf32>
    %137 = vector.shape_cast %136 : vector<1x1x128x128xf32> to vector<128x128xf32>
    %cst_165 = arith.constant dense<0.000000e+00> : vector<128x128xf32>
    %138 = tpu.matmul %135, %137, %cst_165 {dimension_numbers = #tpu.dot_dimension_numbers<[1], [0], [0], [1], [0, 0, 1, 1], [], []>} : vector<128x128xf32>, vector<128x128xf32>, vector<128x128xf32> -> vector<128x128xf32>
    %139 = arith.addf %133, %138 : vector<128x128xf32>
    %c2_166 = arith.constant 2 : index
    %c2_167 = arith.constant 2 : index
    %c0_168 = arith.constant 0 : index
    %140 = vector.load %arg11[%c2_166, %c2_167, %c0_168] : memref<10x18x128xf32, #tpu.memory_space<vmem>>, vector<8x16x128xf32>
    %141 = vector.shape_cast %140 : vector<8x16x128xf32> to vector<128x128xf32>
    %c2_169 = arith.constant 2 : index
    %c2_170 = arith.constant 2 : index
    %c0_171 = arith.constant 0 : index
    %c0_172 = arith.constant 0 : index
    %142 = vector.load %arg6[%c2_169, %c2_170, %c0_171, %c0_172] : memref<3x3x128x128xf32, #tpu.memory_space<vmem>>, vector<1x1x128x128xf32>
    %143 = vector.shape_cast %142 : vector<1x1x128x128xf32> to vector<128x128xf32>
    %cst_173 = arith.constant dense<0.000000e+00> : vector<128x128xf32>
    %144 = tpu.matmul %141, %143, %cst_173 {dimension_numbers = #tpu.dot_dimension_numbers<[1], [0], [0], [1], [0, 0, 1, 1], [], []>} : vector<128x128xf32>, vector<128x128xf32>, vector<128x128xf32> -> vector<128x128xf32>
    %145 = arith.addf %139, %144 : vector<128x128xf32>
    %c0_174 = arith.constant 0 : index
    %c0_175 = arith.constant 0 : index
    %146 = vector.load %arg7[%c0_174, %c0_175] : memref<1x128xf32, #tpu.memory_space<vmem>>, vector<1x128xf32>
    %147 = vector.broadcast %146 : vector<1x128xf32> to vector<128x128xf32>
    %148 = arith.addf %145, %147 : vector<128x128xf32>
    %cst_176 = arith.constant 1.000000e+00 : f32
    %149 = vector.broadcast %cst_176 : f32 to vector<128x128xf32>
    %150 = arith.mulf %148, %149 : vector<128x128xf32>
    %151 = vector.shape_cast %150 : vector<128x128xf32> to vector<8x16x128xf32>
    %c0_177 = arith.constant 0 : index
    %c0_178 = arith.constant 0 : index
    %c1_179 = arith.constant 1 : index
    %c0_180 = arith.constant 0 : index
    %152 = vector.load %arg2[%c0_177, %c0_178, %c1_179, %c0_180] : memref<1x8x18x128xf32, #tpu.memory_space<vmem>>, vector<1x8x16x128xf32>
    %153 = vector.shape_cast %152 : vector<1x8x16x128xf32> to vector<8x16x128xf32>
    %154 = arith.addf %151, %153 : vector<8x16x128xf32>
    %c0_181 = arith.constant 0 : index
    %c0_182 = arith.constant 0 : index
    %c0_183 = arith.constant 0 : index
    %c0_184 = arith.constant 0 : index
    %155 = vector.load %arg8[%c0_181, %c0_182, %c0_183, %c0_184] : memref<1x8x16x128xf32, #tpu.memory_space<vmem>>, vector<1x8x16x128xf32>
    %156 = vector.shape_cast %155 : vector<1x8x16x128xf32> to vector<8x16x128xf32>
    %157 = vector.shape_cast %154 : vector<8x16x128xf32> to vector<1x8x16x128xf32>
    tpu.vector_store %arg8[%c0_181, %c0_182, %c0_183, %c0_184], %157 {strides = array<i32>} : memref<1x8x16x128xf32, #tpu.memory_space<vmem>>, vector<1x8x16x128xf32>,
    return
  }
  func.func @transform_0(%arg0: i32, %arg1: i32) -> (i32, i32, i32, i32) {
    %c0_i32 = arith.constant 0 : i32
    %c0_i32_0 = arith.constant 0 : i32
    %c0_i32_1 = arith.constant 0 : i32
    return %arg0, %arg1, %c0_i32, %c0_i32_0 : i32, i32, i32, i32
  }
  func.func @transform_2(%arg0: i32, %arg1: i32) -> (i32, i32, i32, i32) {
    %c0_i32 = arith.constant 0 : i32
    %c0_i32_0 = arith.constant 0 : i32
    %c0_i32_1 = arith.constant 0 : i32
    %c0_i32_2 = arith.constant 0 : i32
    %c0_i32_3 = arith.constant 0 : i32
    return %c0_i32, %c0_i32_0, %c0_i32_1, %c0_i32_2 : i32, i32, i32, i32
  }
  func.func @transform_3(%arg0: i32, %arg1: i32) -> (i32, i32) {
    %c0_i32 = arith.constant 0 : i32
    %c0_i32_0 = arith.constant 0 : i32
    %c0_i32_1 = arith.constant 0 : i32
    return %c0_i32, %c0_i32_0 : i32, i32
  }
  func.func @transform_4(%arg0: i32, %arg1: i32) -> (i32, i32, i32, i32) {
    %c0_i32 = arith.constant 0 : i32
    %c0_i32_0 = arith.constant 0 : i32
    %c0_i32_1 = arith.constant 0 : i32
    %c0_i32_2 = arith.constant 0 : i32
    %c0_i32_3 = arith.constant 0 : i32
    return %c0_i32, %c0_i32_0, %c0_i32_1, %c0_i32_2 : i32, i32, i32, i32
  }
  func.func @transform_5(%arg0: i32, %arg1: i32) -> (i32, i32) {
    %c0_i32 = arith.constant 0 : i32
    %c0_i32_0 = arith.constant 0 : i32
    %c0_i32_1 = arith.constant 0 : i32
    return %c0_i32, %c0_i32_0 : i32, i32
  }
  func.func @transform_6(%arg0: i32, %arg1: i32) -> (i32, i32, i32, i32) {
    %c0_i32 = arith.constant 0 : i32
    %c0_i32_0 = arith.constant 0 : i32
    %c0_i32_1 = arith.constant 0 : i32
    return %arg0, %arg1, %c0_i32, %c0_i32_0 : i32, i32, i32, i32
  }
}

</mosaic_0001>

<llo_original>
// kernel: tpu_custom_call.1
$region0: #{tpu_custom_call.1}
  #allocation0 [shape = 'u32[]', space=smem, size = 0x4, offset = 0x4, fixed_abs, tag = 'smem constant byte address 0x4 - core index']
  #allocation1 [shape = 'u32[144,128]{1,0:T(1,128)}', space=vmem, size = 0x12000, scoped, tag = 'internal scratch']
  #allocation2 [shape = 'f32[4,18,128]{2,1,0:T(8,128)}', space=vmem, size = 0xc000, scoped, tag = 'scratch operand']
  #allocation3 [shape = 'f32[12,18,128]{2,1,0:T(8,128)}', space=vmem, size = 0x24000, scoped, tag = 'scratch operand']
  #allocation4 [shape = 'f32[10,18,128]{2,1,0:T(8,128)}', space=vmem, size = 0x1e000, scoped, tag = 'scratch operand']
  #allocation5 [shape = 's32[2]{0}', space=sflag, size = 0x8, scoped, tag = 'scratch operand']
  #allocation8 [shape = 's32[]', space=sflag, size = 0x4, offset = 0, fixed_abs, tag = 'sflag constant byte address 0x0 - dummy sync flag']
  #allocation9 [shape = 's32[]', space=sflag, size = 0x4, offset = 0, fixed_abs, tag = 'sflag constant byte address 0x0 - dummy sync flag']
  %s0 = inlined_call_operand.vmem [shape: f32[2,16,18,128], index: 0, kind: input, shape index: {}]
  %s1 = inlined_call_operand.vmem [shape: f32[2,16,18,128], index: 1, kind: input, shape index: {}]
  %s2 = inlined_call_operand.vmem [shape: f32[3,3,128,128], index: 2, kind: input, shape index: {}]
  %s3 = inlined_call_operand.vmem [shape: f32[1,128], index: 3, kind: input, shape index: {}]
  %s4 = inlined_call_operand.vmem [shape: f32[3,3,128,128], index: 4, kind: input, shape index: {}]
  %s5 = inlined_call_operand.vmem [shape: f32[1,128], index: 5, kind: input, shape index: {}]
  %s6 = inlined_call_operand.hbm [shape: f32[2,16,16,128], index: 6, kind: output, shape index: {}]
  %s7 = sld [smem:[#allocation0]]
  $region159: #{tpu_custom_call.1} parent=0
    _
  %s9 = ssub.s32 1, %s7
  %s10 = scalar_select 0, %s9, %s7
  $region1: #{tpu_custom_call.1} parent=0
    #allocation6 [shape = 'u8[131072]{0}', space=vmem, size = 0x20000, scoped, tag = 'output window, operand 0']
    #allocation7 [shape = 's32[2]{0}', space=sflag, size = 0x8, scoped, tag = 'scoped memory for tpu_custom_call.1']
    %11 = vsyncpa [#allocation7], 0
    %s12 = scalar_lea.sflag [#allocation7], 1
    %13 = vsyncpa %s12, 0
    loop: start=0, step=1, limit=6
    $region2: #{tpu_custom_call.1} parent=1 // loop_pre_header
      _
    $region3: #{tpu_custom_call.1} parent=1 // loop_header
      %s15 = sphi 0, %s19
      %p16 = scmp.ge.s32.totalorder %s15, 6
      %s22 = sphi 0, %s34
      %s23 = sphi 0, %s30
      %s24 = sphi 0, %s22
      %s25 = sphi 0, %s23
      %s26 = sphi 0, %s24
      %s27 = sphi 0, %s25
      %s39 = sphi 0, %s41
      %s42 = sphi 0, %s39
      %s43 = sphi 0, %s42
      %s59 = sphi 0, %s43
      %s63 = sphi 0, %s63
      %s65 = sphi 0, %s63
      %s66 = sphi 0, %s65
      %s80 = sphi 0, %s66
      %s84 = sphi 0, %s84
      %s86 = sphi 0, %s84
      %s87 = sphi 0, %s86
      %s101 = sphi 0, %s87
      %s105 = sphi 0, %s105
      %s107 = sphi 0, %s105
      %s108 = sphi 0, %s107
      %s122 = sphi 0, %s108
      %s126 = sphi 0, %s126
      %s128 = sphi 0, %s126
      %s129 = sphi 0, %s128
      %s143 = sphi 0, %s129
      %s151 = sphi 0, %s153
      %s154 = sphi 0, %s151
      %s155 = sphi 0, %s154
      %s171 = sphi 0, %s155
    $region4: #{tpu_custom_call.1} parent=1 // loop_header_branch
      %18 = sbr.rel (%p16) target = $region8
    $region5: #{tpu_custom_call.1} parent=1 // loop_body
      %s20 = ssub.s32 %s15, 1
      %s21 = ssub.s32 %s15, 2
      %s28 = sadd.s32 1, %s23
      %p29 = scmp.ge.s32.totalorder %s28, 2
      %s30 = scalar_select %p29, 0, %s28
      %s31 = sadd.s32 1, %s22
      %s32 = scalar_select %p29, %s31, %s22
      %p33 = scmp.ge.s32.totalorder %s32, 2
      %s34 = scalar_select %p33, 0, %s32
      %s35 = ssub.s32 %s22, %s34
      %s36 = ssub.s32 %s23, %s30
      %s37 = sor.u32 %s35, %s36
      %p38 = scmp.eq.s32.totalorder %s37, 0
      %s40 = sadd.s32 %s39, 1
      %s41 = scalar_select %p38, %s39, %s40
      %p44 = pneg %p38
      %p45 = scmp.eq.s32.totalorder %s15, 3
      %p46 = por %p44, %p45
      %p47 = scmp.ne.s32.totalorder %s39, %s42
      %p48 = scmp.eq.s32.totalorder %s15, 0
      %p49 = por %p47, %p48
      %p50 = scmp.ne.s32.totalorder %s39, %s42
      %p51 = scmp.eq.s32.totalorder %s20, 3
      %p52 = por %p50, %p51
      %p53 = scmp.ne.s32.totalorder %s42, %s43
      %p54 = scmp.eq.s32.totalorder %s20, 0
      %p55 = por %p53, %p54
      %p56 = scmp.ne.s32.totalorder %s42, %s43
      %p57 = scmp.eq.s32.totalorder %s21, 3
      %p58 = por %p56, %p57
      %p60 = scmp.ne.s32.totalorder %s43, %s59
      %p61 = scmp.eq.s32.totalorder %s21, 0
      %p62 = por %p60, %p61
      %s64 = sadd.s32 %s63, 1
      %p67 = scmp.eq.s32.totalorder %s15, 3
      %p68 = scmp.ne.s32.totalorder %s63, %s65
      %p69 = scmp.eq.s32.totalorder %s15, 0
      %p70 = por %p68, %p69
      %p71 = scmp.ne.s32.totalorder %s63, %s65
      %p72 = scmp.eq.s32.totalorder %s20, 3
      %p73 = por %p71, %p72
      %p74 = scmp.ne.s32.totalorder %s65, %s66
      %p75 = scmp.eq.s32.totalorder %s20, 0
      %p76 = por %p74, %p75
      %p77 = scmp.ne.s32.totalorder %s65, %s66
      %p78 = scmp.eq.s32.totalorder %s21, 3
      %p79 = por %p77, %p78
      %p81 = scmp.ne.s32.totalorder %s66, %s80
      %p82 = scmp.eq.s32.totalorder %s21, 0
      %p83 = por %p81, %p82
      %s85 = sadd.s32 %s84, 1
      %p88 = scmp.eq.s32.totalorder %s15, 3
      %p89 = scmp.ne.s32.totalorder %s84, %s86
      %p90 = scmp.eq.s32.totalorder %s15, 0
      %p91 = por %p89, %p90
      %p92 = scmp.ne.s32.totalorder %s84, %s86
      %p93 = scmp.eq.s32.totalorder %s20, 3
      %p94 = por %p92, %p93
      %p95 = scmp.ne.s32.totalorder %s86, %s87
      %p96 = scmp.eq.s32.totalorder %s20, 0
      %p97 = por %p95, %p96
      %p98 = scmp.ne.s32.totalorder %s86, %s87
      %p99 = scmp.eq.s32.totalorder %s21, 3
      %p100 = por %p98, %p99
      %p102 = scmp.ne.s32.totalorder %s87, %s101
      %p103 = scmp.eq.s32.totalorder %s21, 0
      %p104 = por %p102, %p103
      %s106 = sadd.s32 %s105, 1
      %p109 = scmp.eq.s32.totalorder %s15, 3
      %p110 = scmp.ne.s32.totalorder %s105, %s107
      %p111 = scmp.eq.s32.totalorder %s15, 0
      %p112 = por %p110, %p111
      %p113 = scmp.ne.s32.totalorder %s105, %s107
      %p114 = scmp.eq.s32.totalorder %s20, 3
      %p115 = por %p113, %p114
      %p116 = scmp.ne.s32.totalorder %s107, %s108
      %p117 = scmp.eq.s32.totalorder %s20, 0
      %p118 = por %p116, %p117
      %p119 = scmp.ne.s32.totalorder %s107, %s108
      %p120 = scmp.eq.s32.totalorder %s21, 3
      %p121 = por %p119, %p120
      %p123 = scmp.ne.s32.totalorder %s108, %s122
      %p124 = scmp.eq.s32.totalorder %s21, 0
      %p125 = por %p123, %p124
      %s127 = sadd.s32 %s126, 1
      %p130 = scmp.eq.s32.totalorder %s15, 3
      %p131 = scmp.ne.s32.totalorder %s126, %s128
      %p132 = scmp.eq.s32.totalorder %s15, 0
      %p133 = por %p131, %p132
      %p134 = scmp.ne.s32.totalorder %s126, %s128
      %p135 = scmp.eq.s32.totalorder %s20, 3
      %p136 = por %p134, %p135
      %p137 = scmp.ne.s32.totalorder %s128, %s129
      %p138 = scmp.eq.s32.totalorder %s20, 0
      %p139 = por %p137, %p138
      %p140 = scmp.ne.s32.totalorder %s128, %s129
      %p141 = scmp.eq.s32.totalorder %s21, 3
      %p142 = por %p140, %p141
      %p144 = scmp.ne.s32.totalorder %s129, %s143
      %p145 = scmp.eq.s32.totalorder %s21, 0
      %p146 = por %p144, %p145
      %s147 = ssub.s32 %s22, %s34
      %s148 = ssub.s32 %s23, %s30
      %s149 = sor.u32 %s147, %s148
      %p150 = scmp.eq.s32.totalorder %s149, 0
      %s152 = sadd.s32 %s151, 1
      %s153 = scalar_select %p150, %s151, %s152
      %p156 = pneg %p150
      %p157 = scmp.eq.s32.totalorder %s15, 3
      %p158 = por %p156, %p157
      %p159 = scmp.ne.s32.totalorder %s151, %s154
      %p160 = scmp.eq.s32.totalorder %s15, 0
      %p161 = por %p159, %p160
      %p162 = scmp.ne.s32.totalorder %s151, %s154
      %p163 = scmp.eq.s32.totalorder %s20, 3
      %p164 = por %p162, %p163
      %p165 = scmp.ne.s32.totalorder %s154, %s155
      %p166 = scmp.eq.s32.totalorder %s20, 0
      %p167 = por %p165, %p166
      %p168 = scmp.ne.s32.totalorder %s154, %s155
      %p169 = scmp.eq.s32.totalorder %s21, 3
      %p170 = por %p168, %p169
      %p172 = scmp.ne.s32.totalorder %s155, %s171
      %p173 = scmp.eq.s32.totalorder %s21, 0
      %p174 = por %p172, %p173
      %p175 = scmp.le.s32.totalorder 1, %s15
      %p176 = scmp.lt.s32.totalorder %s15, 5
      %p177 = pnand %p175, %p176
      %p178 = pneg %p177
      // Predicated region
      $region9: #{tpu_custom_call.1} parent=5 // pred_check
        _
      $region10: #{tpu_custom_call.1} parent=5 // pred_check_branch
        %180 = sbr.rel (%p177) target = $region12
      $region11: #{tpu_custom_call.1} parent=5 // pred_region
        %s181 = ssub.s32 %s15, 1
        // Predicated region
        $region13: #{tpu_custom_call.1} parent=11 // pred_check
          %p182 = pneg %p76
        $region14: #{tpu_custom_call.1} parent=11 // pred_check_branch
          %184 = sbr.rel (%p182) target = $region16
        $region15: #{tpu_custom_call.1} parent=11 // pred_region
          _
        $region16: #{tpu_custom_call.1} parent=11 // pred_fallthru
          _
        // Predicated region
        $region17: #{tpu_custom_call.1} parent=11 // pred_check
          %p185 = pneg %p97
        $region18: #{tpu_custom_call.1} parent=11 // pred_check_branch
          %187 = sbr.rel (%p185) target = $region20
        $region19: #{tpu_custom_call.1} parent=11 // pred_region
          _
        $region20: #{tpu_custom_call.1} parent=11 // pred_fallthru
          _
        // Predicated region
        $region21: #{tpu_custom_call.1} parent=11 // pred_check
          %p188 = pneg %p118
        $region22: #{tpu_custom_call.1} parent=11 // pred_check_branch
          %190 = sbr.rel (%p188) target = $region24
        $region23: #{tpu_custom_call.1} parent=11 // pred_region
          _
        $region24: #{tpu_custom_call.1} parent=11 // pred_fallthru
          _
        // Predicated region
        $region25: #{tpu_custom_call.1} parent=11 // pred_check
          %p191 = pneg %p139
        $region26: #{tpu_custom_call.1} parent=11 // pred_check_branch
          %193 = sbr.rel (%p191) target = $region28
        $region27: #{tpu_custom_call.1} parent=11 // pred_region
          _
        $region28: #{tpu_custom_call.1} parent=11 // pred_fallthru
          _
      $region12: #{tpu_custom_call.1} parent=5 // pred_fallthru
        _
      %p194 = scmp.lt.s32.totalorder %s15, 4
      // Predicated region
      $region29: #{tpu_custom_call.1} parent=5 // pred_check
        %p195 = pneg %p194
      $region30: #{tpu_custom_call.1} parent=5 // pred_check_branch
        %197 = sbr.rel (%p195) target = $region32
      $region31: #{tpu_custom_call.1} parent=5 // pred_region
        // Predicated region
        $region33: #{tpu_custom_call.1} parent=31 // pred_check
          %p198 = pneg %p49
        $region34: #{tpu_custom_call.1} parent=31 // pred_check_branch
          %200 = sbr.rel (%p198) target = $region36
        $region35: #{tpu_custom_call.1} parent=31 // pred_region
          %s201 = smul.u32 8, %s23
          %p202 = scmp.lt.s32.totalorder %s22, 1
          %s203 = scalar_select %p202, %s22, 1
          %p204 = scmp.lt.s32.totalorder %s201, 15
          %s205 = scalar_select %p204, %s201, 15
          %s206 = smul.addr %s205, 3
          %s207 = smul.addr %s203, 48
          %s208 = sadd.s32 %s206, %s207
          %s209 = smul.addr %s208, 8
          %s210 = scalar_lea.vmem %s0, %s209
          %s211 = smul.u32 8, %s23
        $region36: #{tpu_custom_call.1} parent=31 // pred_fallthru
          _
      $region32: #{tpu_custom_call.1} parent=5 // pred_fallthru
        _
      %p212 = scmp.le.s32.totalorder 1, %s15
      %p213 = scmp.lt.s32.totalorder %s15, 5
      %p214 = pnand %p212, %p213
      %p215 = pneg %p214
      // Predicated region
      $region37: #{tpu_custom_call.1} parent=5 // pred_check
        _
      $region38: #{tpu_custom_call.1} parent=5 // pred_check_branch
        %217 = sbr.rel (%p214) target = $region40
      $region39: #{tpu_custom_call.1} parent=5 // pred_region
        %s218 = ssub.s32 %s15, 1
        %s219 = smul.u32 8, %s25
        %p220 = scmp.lt.s32.totalorder %s24, 1
        %s221 = scalar_select %p220, %s24, 1
        %p222 = scmp.lt.s32.totalorder %s219, 15
        %s223 = scalar_select %p222, %s219, 15
        %s224 = smul.addr %s223, 3
        %s225 = smul.addr %s221, 48
        %s226 = sadd.s32 %s224, %s225
        %s227 = smul.addr %s226, 8
        %s228 = scalar_lea.vmem %s0, %s227
        %p229 = pneg %p55
        %p230 = pneg %p52
        %p231 = pneg %p76
        %p232 = pneg %p73
        %p233 = pneg %p97
        %p234 = pneg %p94
        %p235 = pneg %p118
        %p236 = pneg %p115
        %p237 = pneg %p139
        %p238 = pneg %p136
        %p239 = pneg %p167
        %p240 = pneg %p164
        %s241 = sand.u32 %s154, 1
        %s242 = scalar_lea.sflag [#allocation7], %s241
        %s243 = sand.u32 %s154, 1
        %s244 = smul.addr %s243, 128
        %s245 = scalar_lea.vmem [#allocation6], %s244
        %s246 = smul.u32 8, %s25
        %p247 = scmp.lt.s32.totalorder %s24, 1
        %s248 = scalar_select %p247, %s24, 1
        %p249 = scmp.lt.s32.totalorder %s246, 15
        %s250 = scalar_select %p249, %s246, 15
        %s251 = smul.addr %s250, 3
        %s252 = smul.addr %s248, 48
        %s253 = sadd.s32 %s251, %s252
        %s254 = smul.addr %s253, 8
        %s255 = scalar_lea.vmem %s0, %s254
        %s256 = smul.u32 8, %s25
        %s257 = smul.u32 8, %s25
        %s258 = smul.u32 %s25, 8
        %p259 = scmp.gt.s32.totalorder %s25, 0
        // Predicated region
        $region41: #{tpu_custom_call.1} parent=39 // pred_check
          %p260 = pneg %p259
        $region42: #{tpu_custom_call.1} parent=39 // pred_check_branch
          %262 = sbr.rel (%p260) target = $region44
        $region43: #{tpu_custom_call.1} parent=39 // pred_region
          %s263 = ssub.s32 %s258, 2
          %s264 = smul.u32 %s263, 24
          %s265 = smul.u32 %s24, 384
          %s266 = sadd.s32 %s264, %s265
          %s267 = scalar_lea.vmem %s1, %s266
          %p269 = scmp.lt.u32.totalorder 18, 8
          %p270 = pneg %p269
          // Predicated region
          $region45: #{tpu_custom_call.1} parent=43 // pred_check
            _
          $region46: #{tpu_custom_call.1} parent=43 // pred_check_branch
            %272 = sbr.rel (%p269) target = $region48
          $region47: #{tpu_custom_call.1} parent=43 // pred_region
            %s289 = sand.u32 18, 7
            %p290 = scmp.eq.s32.totalorder %s289, 0
            %p291 = pneg %p290
            // Predicated region
            $region60: #{tpu_custom_call.1} parent=47 // pred_check
              _
            $region61: #{tpu_custom_call.1} parent=47 // pred_check_branch
              %293 = sbr.rel (%p290) target = $region63
            $region62: #{tpu_custom_call.1} parent=47 // pred_region
              %s294 = sand.u32 18, 7
              %s295 = ssub.s32 18, %s294
              %s296 = scalar_lea.vmem %s267, %s295
              %s297 = ssub.s32 18, %s294
              %s298 = scalar_lea.vmem [#allocation2], %s297
              loop: start=0, step=1, limit=1
              $region64: #{tpu_custom_call.1} parent=62 // loop_pre_header
                _
              $region65: #{tpu_custom_call.1} parent=62 // loop_header
                %s300 = sphi 0, %s304
                %p301 = scmp.ge.s32.totalorder %s300, 1
                %s305 = sphi %s267, %s267
                %s306 = sphi [#allocation2], [#allocation2]
              $region66: #{tpu_custom_call.1} parent=62 // loop_header_branch
                %303 = sbr.rel (%p301) target = $region70
              $region67: #{tpu_custom_call.1} parent=62 // loop_body
                %v307 = vld [vmem:[%s305] sm:$0xff]
                %308 = vst [vmem:[%s306] sm:$0xff] %v307
                %v309 = vld [vmem:[%s305 + $0x8] sm:$0xff]
                %310 = vst [vmem:[%s306 + $0x8] sm:$0xff] %v309
                %v311 = vld [vmem:[%s305 + $0x18] sm:$0xff]
                %312 = vst [vmem:[%s306 + $0x18] sm:$0xff] %v311
                %v313 = vld [vmem:[%s305 + $0x20] sm:$0xff]
                %314 = vst [vmem:[%s306 + $0x20] sm:$0xff] %v313
              $region68: #{tpu_custom_call.1} parent=62 // loop_footer
                %s304 = sadd.s32 1, %s300
              $region69: #{tpu_custom_call.1} parent=62 // loop_footer_branch
                %299 = sbr.rel target = $region65
              $region70: #{tpu_custom_call.1} parent=62 // loop_exit
                _
              %s315 = sshllo.u32 0, %s294
              loop: start=0, step=1, limit=1
              $region71: #{tpu_custom_call.1} parent=62 // loop_pre_header
                _
              $region72: #{tpu_custom_call.1} parent=62 // loop_header
                %s317 = sphi 0, %s321
                %p318 = scmp.ge.s32.totalorder %s317, 1
                %s322 = sphi %s296, %s296
                %s323 = sphi %s298, %s298
              $region73: #{tpu_custom_call.1} parent=62 // loop_header_branch
                %320 = sbr.rel (%p318) target = $region77
              $region74: #{tpu_custom_call.1} parent=62 // loop_body
                %v324 = vld [vmem:[%s322] sm:%s315]
                %325 = vst [vmem:[%s323] sm:%s315] %v324
                %v326 = vld [vmem:[%s322 + $0x18] sm:%s315]
                %327 = vst [vmem:[%s323 + $0x18] sm:%s315] %v326
              $region75: #{tpu_custom_call.1} parent=62 // loop_footer
                %s321 = sadd.s32 1, %s317
              $region76: #{tpu_custom_call.1} parent=62 // loop_footer_branch
                %316 = sbr.rel target = $region72
              $region77: #{tpu_custom_call.1} parent=62 // loop_exit
                _
            $region63: #{tpu_custom_call.1} parent=47 // pred_fallthru
              _
          $region48: #{tpu_custom_call.1} parent=43 // pred_fallthru
            _
          // Predicated region
          $region49: #{tpu_custom_call.1} parent=43 // pred_check
            %p273 = pneg %p269
          $region50: #{tpu_custom_call.1} parent=43 // pred_check_branch
            %275 = sbr.rel (%p273) target = $region52
          $region51: #{tpu_custom_call.1} parent=43 // pred_region
            %s276 = sshllo.u32 0, 18
            loop: start=0, step=1, limit=1
            $region53: #{tpu_custom_call.1} parent=51 // loop_pre_header
              _
            $region54: #{tpu_custom_call.1} parent=51 // loop_header
              %s278 = sphi 0, %s282
              %p279 = scmp.ge.s32.totalorder %s278, 1
              %s283 = sphi %s267, %s267
              %s284 = sphi [#allocation2], [#allocation2]
            $region55: #{tpu_custom_call.1} parent=51 // loop_header_branch
              %281 = sbr.rel (%p279) target = $region59
            $region56: #{tpu_custom_call.1} parent=51 // loop_body
              %v285 = vld [vmem:[%s283] sm:%s276]
              %286 = vst [vmem:[%s284] sm:%s276] %v285
              %v287 = vld [vmem:[%s283 + $0x18] sm:%s276]
              %288 = vst [vmem:[%s284 + $0x18] sm:%s276] %v287
            $region57: #{tpu_custom_call.1} parent=51 // loop_footer
              %s282 = sadd.s32 1, %s278
            $region58: #{tpu_custom_call.1} parent=51 // loop_footer_branch
              %277 = sbr.rel target = $region54
            $region59: #{tpu_custom_call.1} parent=51 // loop_exit
              _
          $region52: #{tpu_custom_call.1} parent=43 // pred_fallthru
            _
          // Predicated region
          $region78: #{tpu_custom_call.1} parent=43 // pred_check
            _
          $region79: #{tpu_custom_call.1} parent=43 // pred_check_branch
            %330 = sbr.rel (0) target = $region81
          $region80: #{tpu_custom_call.1} parent=43 // pred_region
            %331 = vsyncadd [#allocation5], 576
          $region81: #{tpu_custom_call.1} parent=43 // pred_fallthru
            _
        $region44: #{tpu_custom_call.1} parent=39 // pred_fallthru
          _
        %p332 = scmp.lt.s32.totalorder %s25, 1
        // Predicated region
        $region82: #{tpu_custom_call.1} parent=39 // pred_check
          %p333 = pneg %p332
        $region83: #{tpu_custom_call.1} parent=39 // pred_check_branch
          %335 = sbr.rel (%p333) target = $region85
        $region84: #{tpu_custom_call.1} parent=39 // pred_region
          %s336 = sadd.s32 %s258, 8
          %s337 = smul.u32 %s336, 24
          %s338 = smul.u32 %s24, 384
          %s339 = sadd.s32 %s337, %s338
          %s340 = scalar_lea.vmem %s1, %s339
          %s341 = scalar_lea.vmem [#allocation2], 48
          %s342 = scalar_lea.sflag [#allocation5], 1
          %p344 = scmp.lt.u32.totalorder 18, 8
          %p345 = pneg %p344
          // Predicated region
          $region86: #{tpu_custom_call.1} parent=84 // pred_check
            _
          $region87: #{tpu_custom_call.1} parent=84 // pred_check_branch
            %347 = sbr.rel (%p344) target = $region89
          $region88: #{tpu_custom_call.1} parent=84 // pred_region
            %s364 = sand.u32 18, 7
            %p365 = scmp.eq.s32.totalorder %s364, 0
            %p366 = pneg %p365
            // Predicated region
            $region101: #{tpu_custom_call.1} parent=88 // pred_check
              _
            $region102: #{tpu_custom_call.1} parent=88 // pred_check_branch
              %368 = sbr.rel (%p365) target = $region104
            $region103: #{tpu_custom_call.1} parent=88 // pred_region
              %s369 = sand.u32 18, 7
              %s370 = ssub.s32 18, %s369
              %s371 = scalar_lea.vmem %s340, %s370
              %s372 = ssub.s32 18, %s369
              %s373 = scalar_lea.vmem %s341, %s372 [#allocation2]
              loop: start=0, step=1, limit=1
              $region105: #{tpu_custom_call.1} parent=103 // loop_pre_header
                _
              $region106: #{tpu_custom_call.1} parent=103 // loop_header
                %s375 = sphi 0, %s379
                %p376 = scmp.ge.s32.totalorder %s375, 1
                %s380 = sphi %s340, %s340
                %s381 = sphi %s341, %s341
              $region107: #{tpu_custom_call.1} parent=103 // loop_header_branch
                %378 = sbr.rel (%p376) target = $region111
              $region108: #{tpu_custom_call.1} parent=103 // loop_body
                %v382 = vld [vmem:[%s380] sm:$0xff]
                %383 = vst [vmem:[%s381] sm:$0xff] %v382
                %v384 = vld [vmem:[%s380 + $0x8] sm:$0xff]
                %385 = vst [vmem:[%s381 + $0x8] sm:$0xff] %v384
                %v386 = vld [vmem:[%s380 + $0x18] sm:$0xff]
                %387 = vst [vmem:[%s381 + $0x18] sm:$0xff] %v386
                %v388 = vld [vmem:[%s380 + $0x20] sm:$0xff]
                %389 = vst [vmem:[%s381 + $0x20] sm:$0xff] %v388
              $region109: #{tpu_custom_call.1} parent=103 // loop_footer
                %s379 = sadd.s32 1, %s375
              $region110: #{tpu_custom_call.1} parent=103 // loop_footer_branch
                %374 = sbr.rel target = $region106
              $region111: #{tpu_custom_call.1} parent=103 // loop_exit
                _
              %s390 = sshllo.u32 0, %s369
              loop: start=0, step=1, limit=1
              $region112: #{tpu_custom_call.1} parent=103 // loop_pre_header
                _
              $region113: #{tpu_custom_call.1} parent=103 // loop_header
                %s392 = sphi 0, %s396
                %p393 = scmp.ge.s32.totalorder %s392, 1
                %s397 = sphi %s371, %s371
                %s398 = sphi %s373, %s373
              $region114: #{tpu_custom_call.1} parent=103 // loop_header_branch
                %395 = sbr.rel (%p393) target = $region118
              $region115: #{tpu_custom_call.1} parent=103 // loop_body
                %v399 = vld [vmem:[%s397] sm:%s390]
                %400 = vst [vmem:[%s398] sm:%s390] %v399
                %v401 = vld [vmem:[%s397 + $0x18] sm:%s390]
                %402 = vst [vmem:[%s398 + $0x18] sm:%s390] %v401
              $region116: #{tpu_custom_call.1} parent=103 // loop_footer
                %s396 = sadd.s32 1, %s392
              $region117: #{tpu_custom_call.1} parent=103 // loop_footer_branch
                %391 = sbr.rel target = $region113
              $region118: #{tpu_custom_call.1} parent=103 // loop_exit
                _
            $region104: #{tpu_custom_call.1} parent=88 // pred_fallthru
              _
          $region89: #{tpu_custom_call.1} parent=84 // pred_fallthru
            _
          // Predicated region
          $region90: #{tpu_custom_call.1} parent=84 // pred_check
            %p348 = pneg %p344
          $region91: #{tpu_custom_call.1} parent=84 // pred_check_branch
            %350 = sbr.rel (%p348) target = $region93
          $region92: #{tpu_custom_call.1} parent=84 // pred_region
            %s351 = sshllo.u32 0, 18
            loop: start=0, step=1, limit=1
            $region94: #{tpu_custom_call.1} parent=92 // loop_pre_header
              _
            $region95: #{tpu_custom_call.1} parent=92 // loop_header
              %s353 = sphi 0, %s357
              %p354 = scmp.ge.s32.totalorder %s353, 1
              %s358 = sphi %s340, %s340
              %s359 = sphi %s341, %s341
            $region96: #{tpu_custom_call.1} parent=92 // loop_header_branch
              %356 = sbr.rel (%p354) target = $region100
            $region97: #{tpu_custom_call.1} parent=92 // loop_body
              %v360 = vld [vmem:[%s358] sm:%s351]
              %361 = vst [vmem:[%s359] sm:%s351] %v360
              %v362 = vld [vmem:[%s358 + $0x18] sm:%s351]
              %363 = vst [vmem:[%s359 + $0x18] sm:%s351] %v362
            $region98: #{tpu_custom_call.1} parent=92 // loop_footer
              %s357 = sadd.s32 1, %s353
            $region99: #{tpu_custom_call.1} parent=92 // loop_footer_branch
              %352 = sbr.rel target = $region95
            $region100: #{tpu_custom_call.1} parent=92 // loop_exit
              _
          $region93: #{tpu_custom_call.1} parent=84 // pred_fallthru
            _
          // Predicated region
          $region119: #{tpu_custom_call.1} parent=84 // pred_check
            _
          $region120: #{tpu_custom_call.1} parent=84 // pred_check_branch
            %405 = sbr.rel (0) target = $region122
          $region121: #{tpu_custom_call.1} parent=84 // pred_region
            %406 = vsyncadd %s342, 576
          $region122: #{tpu_custom_call.1} parent=84 // pred_fallthru
            _
        $region85: #{tpu_custom_call.1} parent=39 // pred_fallthru
          _
        %v407 = vld [vmem:[%s255] sm:$0xff]
        %v408 = vld [vmem:[%s255 + $0x8] sm:$0xff]
        %v409 = vld [vmem:[%s255 + $0x10] sm:$0x3]
        %v410 = vld [vmem:[%s255 + $0x18] sm:$0xff]
        %v411 = vld [vmem:[%s255 + $0x20] sm:$0xff]
        %v412 = vld [vmem:[%s255 + $0x28] sm:$0x3]
        %v413 = vld [vmem:[%s255 + $0x30] sm:$0xff]
        %v414 = vld [vmem:[%s255 + $0x38] sm:$0xff]
        %v415 = vld [vmem:[%s255 + $0x40] sm:$0x3]
        %v416 = vld [vmem:[%s255 + $0x48] sm:$0xff]
        %v417 = vld [vmem:[%s255 + $0x50] sm:$0xff]
        %v418 = vld [vmem:[%s255 + $0x58] sm:$0x3]
        %v419 = vld [vmem:[%s255 + $0x60] sm:$0xff]
        %v420 = vld [vmem:[%s255 + $0x68] sm:$0xff]
        %v421 = vld [vmem:[%s255 + $0x70] sm:$0x3]
        %v422 = vld [vmem:[%s255 + $0x78] sm:$0xff]
        %v423 = vld [vmem:[%s255 + $0x80] sm:$0xff]
        %v424 = vld [vmem:[%s255 + $0x88] sm:$0x3]
        %v425 = vld [vmem:[%s255 + $0x90] sm:$0xff]
        %v426 = vld [vmem:[%s255 + $0x98] sm:$0xff]
        %v427 = vld [vmem:[%s255 + $0xa0] sm:$0x3]
        %v428 = vld [vmem:[%s255 + $0xa8] sm:$0xff]
        %v429 = vld [vmem:[%s255 + $0xb0] sm:$0xff]
        %v430 = vld [vmem:[%s255 + $0xb8] sm:$0x3]
        %s431 = scalar_lea.vmem [#allocation3], 48
        %432 = vst [vmem:[%s431] sm:$0xff] %v407
        %433 = vst [vmem:[%s431 + $0x8] sm:$0xff] %v408
        %434 = vst [vmem:[%s431 + $0x10] sm:$0x3] %v409
        %435 = vst [vmem:[%s431 + $0x18] sm:$0xff] %v410
        %436 = vst [vmem:[%s431 + $0x20] sm:$0xff] %v411
        %437 = vst [vmem:[%s431 + $0x28] sm:$0x3] %v412
        %438 = vst [vmem:[%s431 + $0x30] sm:$0xff] %v413
        %439 = vst [vmem:[%s431 + $0x38] sm:$0xff] %v414
        %440 = vst [vmem:[%s431 + $0x40] sm:$0x3] %v415
        %441 = vst [vmem:[%s431 + $0x48] sm:$0xff] %v416
        %442 = vst [vmem:[%s431 + $0x50] sm:$0xff] %v417
        %443 = vst [vmem:[%s431 + $0x58] sm:$0x3] %v418
        %444 = vst [vmem:[%s431 + $0x60] sm:$0xff] %v419
        %445 = vst [vmem:[%s431 + $0x68] sm:$0xff] %v420
        %446 = vst [vmem:[%s431 + $0x70] sm:$0x3] %v421
        %447 = vst [vmem:[%s431 + $0x78] sm:$0xff] %v422
        %448 = vst [vmem:[%s431 + $0x80] sm:$0xff] %v423
        %449 = vst [vmem:[%s431 + $0x88] sm:$0x3] %v424
        %450 = vst [vmem:[%s431 + $0x90] sm:$0xff] %v425
        %451 = vst [vmem:[%s431 + $0x98] sm:$0xff] %v426
        %452 = vst [vmem:[%s431 + $0xa0] sm:$0x3] %v427
        %453 = vst [vmem:[%s431 + $0xa8] sm:$0xff] %v428
        %454 = vst [vmem:[%s431 + $0xb0] sm:$0xff] %v429
        %455 = vst [vmem:[%s431 + $0xb8] sm:$0x3] %v430
        %456 = vst [vmem:[#allocation4] sm:$0x1] 0.0
        %457 = vst [vmem:[#allocation4 + $0x18] sm:$0x1] 0.0
        %458 = vst [vmem:[#allocation4 + $0x30] sm:$0x1] 0.0
        %459 = vst [vmem:[#allocation4 + $0x48] sm:$0x1] 0.0
        %460 = vst [vmem:[#allocation4 + $0x60] sm:$0x1] 0.0
        %461 = vst [vmem:[#allocation4 + $0x78] sm:$0x1] 0.0
        %462 = vst [vmem:[#allocation4 + $0x90] sm:$0x1] 0.0
        %463 = vst [vmem:[#allocation4 + $0xa8] sm:$0x1] 0.0
        %464 = vst [vmem:[#allocation4 + $0xc0] sm:$0x1] 0.0
        %465 = vst [vmem:[#allocation4 + $0xd8] sm:$0x1] 0.0
        %466 = vst [vmem:[#allocation4 + $0x11] sm:$0x1] 0.0
        %467 = vst [vmem:[#allocation4 + $0x29] sm:$0x1] 0.0
        %468 = vst [vmem:[#allocation4 + $0x41] sm:$0x1] 0.0
        %469 = vst [vmem:[#allocation4 + $0x59] sm:$0x1] 0.0
        %470 = vst [vmem:[#allocation4 + $0x71] sm:$0x1] 0.0
        %471 = vst [vmem:[#allocation4 + $0x89] sm:$0x1] 0.0
        %472 = vst [vmem:[#allocation4 + $0xa1] sm:$0x1] 0.0
        %473 = vst [vmem:[#allocation4 + $0xb9] sm:$0x1] 0.0
        %474 = vst [vmem:[#allocation4 + $0xd1] sm:$0x1] 0.0
        %475 = vst [vmem:[#allocation4 + $0xe9] sm:$0x1] 0.0
        %p476 = scmp.eq.s32.totalorder %s25, 0
        // Predicated region
        $region123: #{tpu_custom_call.1} parent=39 // pred_check
          %p477 = pneg %p476
        $region124: #{tpu_custom_call.1} parent=39 // pred_check_branch
          %479 = sbr.rel (%p477) target = $region126
        $region125: #{tpu_custom_call.1} parent=39 // pred_region
          %480 = vst [vmem:[#allocation3] sm:$0xff] 0.0
          %481 = vst [vmem:[#allocation3 + $0x8] sm:$0xff] 0.0
          %482 = vst [vmem:[#allocation3 + $0x10] sm:$0x3] 0.0
          %483 = vst [vmem:[#allocation3 + $0x18] sm:$0xff] 0.0
          %484 = vst [vmem:[#allocation3 + $0x20] sm:$0xff] 0.0
          %485 = vst [vmem:[#allocation3 + $0x28] sm:$0x3] 0.0
        $region126: #{tpu_custom_call.1} parent=39 // pred_fallthru
          _
        // Predicated region
        $region127: #{tpu_custom_call.1} parent=39 // pred_check
          %p486 = pneg %p259
        $region128: #{tpu_custom_call.1} parent=39 // pred_check_branch
          %488 = sbr.rel (%p486) target = $region130
        $region129: #{tpu_custom_call.1} parent=39 // pred_region
          %s489 = smul.u32 2, 18
          %s490 = smul.u32 %s489, 1
          %s491 = sshll.u32 %s490, 4
          %492 = dma.done [#allocation5], %s491
          %v493 = vld [vmem:[#allocation2] sm:$0xff]
          %v494 = vld [vmem:[#allocation2 + $0x8] sm:$0xff]
          %v495 = vld [vmem:[#allocation2 + $0x10] sm:$0x3]
          %v496 = vld [vmem:[#allocation2 + $0x18] sm:$0xff]
          %v497 = vld [vmem:[#allocation2 + $0x20] sm:$0xff]
          %v498 = vld [vmem:[#allocation2 + $0x28] sm:$0x3]
          %499 = vst [vmem:[#allocation3] sm:$0xff] %v493
          %500 = vst [vmem:[#allocation3 + $0x8] sm:$0xff] %v494
          %501 = vst [vmem:[#allocation3 + $0x10] sm:$0x3] %v495
          %502 = vst [vmem:[#allocation3 + $0x18] sm:$0xff] %v496
          %503 = vst [vmem:[#allocation3 + $0x20] sm:$0xff] %v497
          %504 = vst [vmem:[#allocation3 + $0x28] sm:$0x3] %v498
        $region130: #{tpu_custom_call.1} parent=39 // pred_fallthru
          _
        %p505 = scmp.eq.s32.totalorder %s25, 1
        // Predicated region
        $region131: #{tpu_custom_call.1} parent=39 // pred_check
          %p506 = pneg %p505
        $region132: #{tpu_custom_call.1} parent=39 // pred_check_branch
          %508 = sbr.rel (%p506) target = $region134
        $region133: #{tpu_custom_call.1} parent=39 // pred_region
          %s509 = scalar_lea.vmem [#allocation3], 240
          %510 = vst [vmem:[%s509] sm:$0xff] 0.0
          %511 = vst [vmem:[%s509 + $0x8] sm:$0xff] 0.0
          %512 = vst [vmem:[%s509 + $0x10] sm:$0x3] 0.0
          %513 = vst [vmem:[%s509 + $0x18] sm:$0xff] 0.0
          %514 = vst [vmem:[%s509 + $0x20] sm:$0xff] 0.0
          %515 = vst [vmem:[%s509 + $0x28] sm:$0x3] 0.0
        $region134: #{tpu_custom_call.1} parent=39 // pred_fallthru
          _
        // Predicated region
        $region135: #{tpu_custom_call.1} parent=39 // pred_check
          %p516 = pneg %p332
        $region136: #{tpu_custom_call.1} parent=39 // pred_check_branch
          %518 = sbr.rel (%p516) target = $region138
        $region137: #{tpu_custom_call.1} parent=39 // pred_region
          %s519 = scalar_lea.vmem [#allocation2], 48
          %s520 = scalar_lea.sflag [#allocation5], 1
          %s521 = smul.u32 2, 18
          %s522 = smul.u32 %s521, 1
          %s523 = sshll.u32 %s522, 4
          %524 = dma.done %s520, %s523
          %v525 = vld [vmem:[%s519] sm:$0xff]
          %v526 = vld [vmem:[%s519 + $0x8] sm:$0xff]
          %v527 = vld [vmem:[%s519 + $0x10] sm:$0x3]
          %v528 = vld [vmem:[%s519 + $0x18] sm:$0xff]
          %v529 = vld [vmem:[%s519 + $0x20] sm:$0xff]
          %v530 = vld [vmem:[%s519 + $0x28] sm:$0x3]
          %s531 = scalar_lea.vmem [#allocation3], 240
          %532 = vst [vmem:[%s531] sm:$0xff] %v525
          %533 = vst [vmem:[%s531 + $0x8] sm:$0xff] %v526
          %534 = vst [vmem:[%s531 + $0x10] sm:$0x3] %v527
          %535 = vst [vmem:[%s531 + $0x18] sm:$0xff] %v528
          %536 = vst [vmem:[%s531 + $0x20] sm:$0xff] %v529
          %537 = vst [vmem:[%s531 + $0x28] sm:$0x3] %v530
        $region138: #{tpu_custom_call.1} parent=39 // pred_fallthru
          _
        %v538 = vld [vmem:[#allocation3] sm:$0xff]
        %v539 = vld [vmem:[#allocation3 + $0x8] sm:$0xff]
        %v540 = vld [vmem:[#allocation3 + $0x18] sm:$0xff]
        %v541 = vld [vmem:[#allocation3 + $0x20] sm:$0xff]
        %v542 = vld [vmem:[#allocation3 + $0x30] sm:$0xff]
        %v543 = vld [vmem:[#allocation3 + $0x38] sm:$0xff]
        %v544 = vld [vmem:[#allocation3 + $0x48] sm:$0xff]
        %v545 = vld [vmem:[#allocation3 + $0x50] sm:$0xff]
        %v546 = vld [vmem:[#allocation3 + $0x60] sm:$0xff]
        %v547 = vld [vmem:[#allocation3 + $0x68] sm:$0xff]
        %v548 = vld [vmem:[#allocation3 + $0x78] sm:$0xff]
        %v549 = vld [vmem:[#allocation3 + $0x80] sm:$0xff]
        %v550 = vld [vmem:[#allocation3 + $0x90] sm:$0xff]
        %v551 = vld [vmem:[#allocation3 + $0x98] sm:$0xff]
        %v552 = vld [vmem:[#allocation3 + $0xa8] sm:$0xff]
        %v553 = vld [vmem:[#allocation3 + $0xb0] sm:$0xff]
        %v554 = vld [vmem:[#allocation3 + $0xc0] sm:$0xff]
        %v555 = vld [vmem:[#allocation3 + $0xc8] sm:$0xff]
        %v556 = vld [vmem:[#allocation3 + $0xd8] sm:$0xff]
        %v557 = vld [vmem:[#allocation3 + $0xe0] sm:$0xff]
        %v558 = vld [vmem:[%s2] sm:$0xff]
        %v559 = vld [vmem:[%s2 + $0x8] sm:$0xff]
        %v560 = vld [vmem:[%s2 + $0x10] sm:$0xff]
        %v561 = vld [vmem:[%s2 + $0x18] sm:$0xff]
        %v562 = vld [vmem:[%s2 + $0x20] sm:$0xff]
        %v563 = vld [vmem:[%s2 + $0x28] sm:$0xff]
        %v564 = vld [vmem:[%s2 + $0x30] sm:$0xff]
        %v565 = vld [vmem:[%s2 + $0x38] sm:$0xff]
        %v566 = vld [vmem:[%s2 + $0x40] sm:$0xff]
        %v567 = vld [vmem:[%s2 + $0x48] sm:$0xff]
        %v568 = vld [vmem:[%s2 + $0x50] sm:$0xff]
        %v569 = vld [vmem:[%s2 + $0x58] sm:$0xff]
        %v570 = vld [vmem:[%s2 + $0x60] sm:$0xff]
        %v571 = vld [vmem:[%s2 + $0x68] sm:$0xff]
        %v572 = vld [vmem:[%s2 + $0x70] sm:$0xff]
        %v573 = vld [vmem:[%s2 + $0x78] sm:$0xff]
        %v574 = vld [vmem:[#allocation3 + $0x1] sm:$0xff]
        %v575 = vld [vmem:[#allocation3 + $0x9] sm:$0xff]
        %v576 = vld [vmem:[#allocation3 + $0x19] sm:$0xff]
        %v577 = vld [vmem:[#allocation3 + $0x21] sm:$0xff]
        %v578 = vld [vmem:[#allocation3 + $0x31] sm:$0xff]
        %v579 = vld [vmem:[#allocation3 + $0x39] sm:$0xff]
        %v580 = vld [vmem:[#allocation3 + $0x49] sm:$0xff]
        %v581 = vld [vmem:[#allocation3 + $0x51] sm:$0xff]
        %v582 = vld [vmem:[#allocation3 + $0x61] sm:$0xff]
        %v583 = vld [vmem:[#allocation3 + $0x69] sm:$0xff]
        %v584 = vld [vmem:[#allocation3 + $0x79] sm:$0xff]
        %v585 = vld [vmem:[#allocation3 + $0x81] sm:$0xff]
        %v586 = vld [vmem:[#allocation3 + $0x91] sm:$0xff]
        %v587 = vld [vmem:[#allocation3 + $0x99] sm:$0xff]
        %v588 = vld [vmem:[#allocation3 + $0xa9] sm:$0xff]
        %v589 = vld [vmem:[#allocation3 + $0xb1] sm:$0xff]
        %v590 = vld [vmem:[#allocation3 + $0xc1] sm:$0xff]
        %v591 = vld [vmem:[#allocation3 + $0xc9] sm:$0xff]
        %v592 = vld [vmem:[#allocation3 + $0xd9] sm:$0xff]
        %v593 = vld [vmem:[#allocation3 + $0xe1] sm:$0xff]
        %s594 = scalar_lea.vmem %s2, 128
        %v595 = vld [vmem:[%s594] sm:$0xff]
        %v596 = vld [vmem:[%s594 + $0x8] sm:$0xff]
        %v597 = vld [vmem:[%s594 + $0x10] sm:$0xff]
        %v598 = vld [vmem:[%s594 + $0x18] sm:$0xff]
        %v599 = vld [vmem:[%s594 + $0x20] sm:$0xff]
        %v600 = vld [vmem:[%s594 + $0x28] sm:$0xff]
        %v601 = vld [vmem:[%s594 + $0x30] sm:$0xff]
        %v602 = vld [vmem:[%s594 + $0x38] sm:$0xff]
        %v603 = vld [vmem:[%s594 + $0x40] sm:$0xff]
        %v604 = vld [vmem:[%s594 + $0x48] sm:$0xff]
        %v605 = vld [vmem:[%s594 + $0x50] sm:$0xff]
        %v606 = vld [vmem:[%s594 + $0x58] sm:$0xff]
        %v607 = vld [vmem:[%s594 + $0x60] sm:$0xff]
        %v608 = vld [vmem:[%s594 + $0x68] sm:$0xff]
        %v609 = vld [vmem:[%s594 + $0x70] sm:$0xff]
        %v610 = vld [vmem:[%s594 + $0x78] sm:$0xff]
        %611 = vmatprep.subr.mxu0 0.0
        %612 = vmatpush1.msra.mxu0 %v595
        %613 = vmatprep.subr.mxu0 0.0
        %614 = vmatpush1.msra.mxu0 %v596
        %615 = vmatprep.subr.mxu0 0.0
        %616 = vmatpush1.msra.mxu0 %v597
        %617 = vmatprep.subr.mxu0 0.0
        %618 = vmatpush1.msra.mxu0 %v598
        %619 = vmatprep.subr.mxu0 0.0
        %620 = vmatpush1.msra.mxu0 %v599
        %621 = vmatprep.subr.mxu0 0.0
        %622 = vmatpush1.msra.mxu0 %v600
        %623 = vmatprep.subr.mxu0 0.0
        %624 = vmatpush1.msra.mxu0 %v601
        %625 = vmatprep.subr.mxu0 0.0
        %626 = vmatpush1.msra.mxu0 %v602
        %627 = vmatprep.subr.mxu0 0.0
        %628 = vmatpush1.msra.mxu0 %v603
        %629 = vmatprep.subr.mxu0 0.0
        %630 = vmatpush1.msra.mxu0 %v604
        %631 = vmatprep.subr.mxu0 0.0
        %632 = vmatpush1.msra.mxu0 %v605
        %633 = vmatprep.subr.mxu0 0.0
        %634 = vmatpush1.msra.mxu0 %v606
        %635 = vmatprep.subr.mxu0 0.0
        %636 = vmatpush1.msra.mxu0 %v607
        %637 = vmatprep.subr.mxu0 0.0
        %638 = vmatpush1.msra.mxu0 %v608
        %639 = vmatprep.subr.mxu0 0.0
        %640 = vmatpush1.msra.mxu0 %v609
        %641 = vmatprep.subr.mxu0 0.0
        %642 = vmatpush1.msra.mxu0 %v610
        %643 = vmatprep.subr.mxu0 0.0
        %644 = vmatpush1.msra.mxu0 0.0
        %645 = vmatprep.subr.mxu0 0.0
        %646 = vmatpush1.msra.mxu0 0.0
        %647 = vmatprep.subr.mxu0 0.0
        %648 = vmatpush1.msra.mxu0 0.0
        %649 = vmatprep.subr.mxu0 0.0
        %650 = vmatpush1.msra.mxu0 0.0
        %651 = vmatprep.subr.mxu0 0.0
        %652 = vmatpush1.msra.mxu0 0.0
        %653 = vmatprep.subr.mxu0 0.0
        %654 = vmatpush1.msra.mxu0 0.0
        %655 = vmatprep.subr.mxu0 0.0
        %656 = vmatpush1.msra.mxu0 0.0
        %657 = vmatprep.subr.mxu0 0.0
        %658 = vmatpush1.msra.mxu0 0.0
        %659 = vmatprep.subr.mxu0 0.0
        %660 = vmatpush1.msra.mxu0 0.0
        %661 = vmatprep.subr.mxu0 0.0
        %662 = vmatpush1.msra.mxu0 0.0
        %663 = vmatprep.subr.mxu0 0.0
        %664 = vmatpush1.msra.mxu0 0.0
        %665 = vmatprep.subr.mxu0 0.0
        %666 = vmatpush1.msra.mxu0 0.0
        %667 = vmatprep.subr.mxu0 0.0
        %668 = vmatpush1.msra.mxu0 0.0
        %669 = vmatprep.subr.mxu0 0.0
        %670 = vmatpush1.msra.mxu0 0.0
        %671 = vmatprep.subr.mxu0 0.0
        %672 = vmatpush1.msra.mxu0 0.0
        %673 = vmatprep.subr.mxu0 0.0
        %674 = vmatpush1.msra.mxu0 0.0
        %675 = vmatprep.mubr.f32.mxu0 0.0
        %676 = vmatmul.mubr.f32.gmra.mrb[0].mxu0 %v574
        %v677 = vpop.f32.mrb[0].mxu0
        %v678 = vadd.f32 0.0, %v677
        %v679 = vpop.f32.mrb[0].mxu0
        %680 = vmatprep.mubr.f32.mxu0 0.0
        %681 = vmatmul.mubr.f32.gmra.mrb[0].mxu0 %v575
        %v682 = vpop.f32.mrb[0].mxu0
        %v683 = vadd.f32 0.0, %v682
        %v684 = vpop.f32.mrb[0].mxu0
        %685 = vmatprep.mubr.f32.mxu0 0.0
        %686 = vmatmul.mubr.f32.gmra.mrb[0].mxu0 %v576
        %v687 = vpop.f32.mrb[0].mxu0
        %v688 = vadd.f32 0.0, %v687
        %v689 = vpop.f32.mrb[0].mxu0
        %690 = vmatprep.mubr.f32.mxu0 0.0
        %691 = vmatmul.mubr.f32.gmra.mrb[0].mxu0 %v577
        %v692 = vpop.f32.mrb[0].mxu0
        %v693 = vadd.f32 0.0, %v692
        %v694 = vpop.f32.mrb[0].mxu0
        %695 = vmatprep.mubr.f32.mxu0 0.0
        %696 = vmatmul.mubr.f32.gmra.mrb[0].mxu0 %v578
        %v697 = vpop.f32.mrb[0].mxu0
        %v698 = vadd.f32 0.0, %v697
        %v699 = vpop.f32.mrb[0].mxu0
        %700 = vmatprep.mubr.f32.mxu0 0.0
        %701 = vmatmul.mubr.f32.gmra.mrb[0].mxu0 %v579
        %v702 = vpop.f32.mrb[0].mxu0
        %v703 = vadd.f32 0.0, %v702
        %v704 = vpop.f32.mrb[0].mxu0
        %705 = vmatprep.mubr.f32.mxu0 0.0
        %706 = vmatmul.mubr.f32.gmra.mrb[0].mxu0 %v580
        %v707 = vpop.f32.mrb[0].mxu0
        %v708 = vadd.f32 0.0, %v707
        %v709 = vpop.f32.mrb[0].mxu0
        %710 = vmatprep.mubr.f32.mxu0 0.0
        %711 = vmatmul.mubr.f32.gmra.mrb[0].mxu0 %v581
        %v712 = vpop.f32.mrb[0].mxu0
        %v713 = vadd.f32 0.0, %v712
        %v714 = vpop.f32.mrb[0].mxu0
        %715 = vmatprep.mubr.f32.mxu0 0.0
        %716 = vmatmul.mubr.f32.gmra.mrb[0].mxu0 %v582
        %v717 = vpop.f32.mrb[0].mxu0
        %v718 = vadd.f32 0.0, %v717
        %v719 = vpop.f32.mrb[0].mxu0
        %720 = vmatprep.mubr.f32.mxu0 0.0
        %721 = vmatmul.mubr.f32.gmra.mrb[0].mxu0 %v583
        %v722 = vpop.f32.mrb[0].mxu0
        %v723 = vadd.f32 0.0, %v722
        %v724 = vpop.f32.mrb[0].mxu0
        %725 = vmatprep.mubr.f32.mxu0 0.0
        %726 = vmatmul.mubr.f32.gmra.mrb[0].mxu0 %v584
        %v727 = vpop.f32.mrb[0].mxu0
        %v728 = vadd.f32 0.0, %v727
        %v729 = vpop.f32.mrb[0].mxu0
        %730 = vmatprep.mubr.f32.mxu0 0.0
        %731 = vmatmul.mubr.f32.gmra.mrb[0].mxu0 %v585
        %v732 = vpop.f32.mrb[0].mxu0
        %v733 = vadd.f32 0.0, %v732
        %v734 = vpop.f32.mrb[0].mxu0
        %735 = vmatprep.mubr.f32.mxu0 0.0
        %736 = vmatmul.mubr.f32.gmra.mrb[0].mxu0 %v586
        %v737 = vpop.f32.mrb[0].mxu0
        %v738 = vadd.f32 0.0, %v737
        %v739 = vpop.f32.mrb[0].mxu0
        %740 = vmatprep.mubr.f32.mxu0 0.0
        %741 = vmatmul.mubr.f32.gmra.mrb[0].mxu0 %v587
        %v742 = vpop.f32.mrb[0].mxu0
        %v743 = vadd.f32 0.0, %v742
        %v744 = vpop.f32.mrb[0].mxu0
        %745 = vmatprep.mubr.f32.mxu0 0.0
        %746 = vmatmul.mubr.f32.gmra.mrb[0].mxu0 %v588
        %v747 = vpop.f32.mrb[0].mxu0
        %v748 = vadd.f32 0.0, %v747
        %v749 = vpop.f32.mrb[0].mxu0
        %750 = vmatprep.mubr.f32.mxu0 0.0
        %751 = vmatmul.mubr.f32.gmra.mrb[0].mxu0 %v589
        %v752 = vpop.f32.mrb[0].mxu0
        %v753 = vadd.f32 0.0, %v752
        %v754 = vpop.f32.mrb[0].mxu0
        %755 = vmatprep.mubr.f32.mxu0 0.0
        %756 = vmatmul.mubr.f32.gmra.mrb[0].mxu0 %v590
        %v757 = vpop.f32.mrb[0].mxu0
        %v758 = vadd.f32 0.0, %v757
        %v759 = vpop.f32.mrb[0].mxu0
        %760 = vmatprep.mubr.f32.mxu0 0.0
        %761 = vmatmul.mubr.f32.gmra.mrb[0].mxu0 %v591
        %v762 = vpop.f32.mrb[0].mxu0
        %v763 = vadd.f32 0.0, %v762
        %v764 = vpop.f32.mrb[0].mxu0
        %765 = vmatprep.mubr.f32.mxu0 0.0
        %766 = vmatmul.mubr.f32.gmra.mrb[0].mxu0 %v592
        %v767 = vpop.f32.mrb[0].mxu0
        %v768 = vadd.f32 0.0, %v767
        %v769 = vpop.f32.mrb[0].mxu0
        %770 = vmatprep.mubr.f32.mxu0 0.0
        %771 = vmatmul.mubr.f32.gmra.mrb[0].mxu0 %v593
        %v772 = vpop.f32.mrb[0].mxu0
        %v773 = vadd.f32 0.0, %v772
        %v774 = vpop.f32.mrb[0].mxu0
        %775 = vdwg.mxu0
        %776 = vmatprep.subr.mxu0 0.0
        %777 = vmatpush1.msra.mxu0 %v558
        %778 = vmatprep.subr.mxu0 0.0
        %779 = vmatpush1.msra.mxu0 %v559
        %780 = vmatprep.subr.mxu0 0.0
        %781 = vmatpush1.msra.mxu0 %v560
        %782 = vmatprep.subr.mxu0 0.0
        %783 = vmatpush1.msra.mxu0 %v561
        %784 = vmatprep.subr.mxu0 0.0
        %785 = vmatpush1.msra.mxu0 %v562
        %786 = vmatprep.subr.mxu0 0.0
        %787 = vmatpush1.msra.mxu0 %v563
        %788 = vmatprep.subr.mxu0 0.0
        %789 = vmatpush1.msra.mxu0 %v564
        %790 = vmatprep.subr.mxu0 0.0
        %791 = vmatpush1.msra.mxu0 %v565
        %792 = vmatprep.subr.mxu0 0.0
        %793 = vmatpush1.msra.mxu0 %v566
        %794 = vmatprep.subr.mxu0 0.0
        %795 = vmatpush1.msra.mxu0 %v567
        %796 = vmatprep.subr.mxu0 0.0
        %797 = vmatpush1.msra.mxu0 %v568
        %798 = vmatprep.subr.mxu0 0.0
        %799 = vmatpush1.msra.mxu0 %v569
        %800 = vmatprep.subr.mxu0 0.0
        %801 = vmatpush1.msra.mxu0 %v570
        %802 = vmatprep.subr.mxu0 0.0
        %803 = vmatpush1.msra.mxu0 %v571
        %804 = vmatprep.subr.mxu0 0.0
        %805 = vmatpush1.msra.mxu0 %v572
        %806 = vmatprep.subr.mxu0 0.0
        %807 = vmatpush1.msra.mxu0 %v573
        %808 = vmatprep.subr.mxu0 0.0
        %809 = vmatpush1.msra.mxu0 0.0
        %810 = vmatprep.subr.mxu0 0.0
        %811 = vmatpush1.msra.mxu0 0.0
        %812 = vmatprep.subr.mxu0 0.0
        %813 = vmatpush1.msra.mxu0 0.0
        %814 = vmatprep.subr.mxu0 0.0
        %815 = vmatpush1.msra.mxu0 0.0
        %816 = vmatprep.subr.mxu0 0.0
        %817 = vmatpush1.msra.mxu0 0.0
        %818 = vmatprep.subr.mxu0 0.0
        %819 = vmatpush1.msra.mxu0 0.0
        %820 = vmatprep.subr.mxu0 0.0
        %821 = vmatpush1.msra.mxu0 0.0
        %822 = vmatprep.subr.mxu0 0.0
        %823 = vmatpush1.msra.mxu0 0.0
        %824 = vmatprep.subr.mxu0 0.0
        %825 = vmatpush1.msra.mxu0 0.0
        %826 = vmatprep.subr.mxu0 0.0
        %827 = vmatpush1.msra.mxu0 0.0
        %828 = vmatprep.subr.mxu0 0.0
        %829 = vmatpush1.msra.mxu0 0.0
        %830 = vmatprep.subr.mxu0 0.0
        %831 = vmatpush1.msra.mxu0 0.0
        %832 = vmatprep.subr.mxu0 0.0
        %833 = vmatpush1.msra.mxu0 0.0
        %834 = vmatprep.subr.mxu0 0.0
        %835 = vmatpush1.msra.mxu0 0.0
        %836 = vmatprep.subr.mxu0 0.0
        %837 = vmatpush1.msra.mxu0 0.0
        %838 = vmatprep.subr.mxu0 0.0
        %839 = vmatpush1.msra.mxu0 0.0
        %840 = vmatprep.mubr.f32.mxu0 0.0
        %841 = vmatmul.mubr.f32.gmra.mrb[0].mxu0 %v538
        %v842 = vpop.f32.mrb[0].mxu0
        %v843 = vadd.f32 %v678, %v842
        %v844 = vpop.f32.mrb[0].mxu0
        %845 = vmatprep.mubr.f32.mxu0 0.0
        %846 = vmatmul.mubr.f32.gmra.mrb[0].mxu0 %v539
        %v847 = vpop.f32.mrb[0].mxu0
        %v848 = vadd.f32 %v683, %v847
        %v849 = vpop.f32.mrb[0].mxu0
        %850 = vmatprep.mubr.f32.mxu0 0.0
        %851 = vmatmul.mubr.f32.gmra.mrb[0].mxu0 %v540
        %v852 = vpop.f32.mrb[0].mxu0
        %v853 = vadd.f32 %v688, %v852
        %v854 = vpop.f32.mrb[0].mxu0
        %855 = vmatprep.mubr.f32.mxu0 0.0
        %856 = vmatmul.mubr.f32.gmra.mrb[0].mxu0 %v541
        %v857 = vpop.f32.mrb[0].mxu0
        %v858 = vadd.f32 %v693, %v857
        %v859 = vpop.f32.mrb[0].mxu0
        %860 = vmatprep.mubr.f32.mxu0 0.0
        %861 = vmatmul.mubr.f32.gmra.mrb[0].mxu0 %v542
        %v862 = vpop.f32.mrb[0].mxu0
        %v863 = vadd.f32 %v698, %v862
        %v864 = vpop.f32.mrb[0].mxu0
        %865 = vmatprep.mubr.f32.mxu0 0.0
        %866 = vmatmul.mubr.f32.gmra.mrb[0].mxu0 %v543
        %v867 = vpop.f32.mrb[0].mxu0
        %v868 = vadd.f32 %v703, %v867
        %v869 = vpop.f32.mrb[0].mxu0
        %870 = vmatprep.mubr.f32.mxu0 0.0
        %871 = vmatmul.mubr.f32.gmra.mrb[0].mxu0 %v544
        %v872 = vpop.f32.mrb[0].mxu0
        %v873 = vadd.f32 %v708, %v872
        %v874 = vpop.f32.mrb[0].mxu0
        %875 = vmatprep.mubr.f32.mxu0 0.0
        %876 = vmatmul.mubr.f32.gmra.mrb[0].mxu0 %v545
        %v877 = vpop.f32.mrb[0].mxu0
        %v878 = vadd.f32 %v713, %v877
        %v879 = vpop.f32.mrb[0].mxu0
        %880 = vmatprep.mubr.f32.mxu0 0.0
        %881 = vmatmul.mubr.f32.gmra.mrb[0].mxu0 %v546
        %v882 = vpop.f32.mrb[0].mxu0
        %v883 = vadd.f32 %v718, %v882
        %v884 = vpop.f32.mrb[0].mxu0
        %885 = vmatprep.mubr.f32.mxu0 0.0
        %886 = vmatmul.mubr.f32.gmra.mrb[0].mxu0 %v547
        %v887 = vpop.f32.mrb[0].mxu0
        %v888 = vadd.f32 %v723, %v887
        %v889 = vpop.f32.mrb[0].mxu0
        %890 = vmatprep.mubr.f32.mxu0 0.0
        %891 = vmatmul.mubr.f32.gmra.mrb[0].mxu0 %v548
        %v892 = vpop.f32.mrb[0].mxu0
        %v893 = vadd.f32 %v728, %v892
        %v894 = vpop.f32.mrb[0].mxu0
        %895 = vmatprep.mubr.f32.mxu0 0.0
        %896 = vmatmul.mubr.f32.gmra.mrb[0].mxu0 %v549
        %v897 = vpop.f32.mrb[0].mxu0
        %v898 = vadd.f32 %v733, %v897
        %v899 = vpop.f32.mrb[0].mxu0
        %900 = vmatprep.mubr.f32.mxu0 0.0
        %901 = vmatmul.mubr.f32.gmra.mrb[0].mxu0 %v550
        %v902 = vpop.f32.mrb[0].mxu0
        %v903 = vadd.f32 %v738, %v902
        %v904 = vpop.f32.mrb[0].mxu0
        %905 = vmatprep.mubr.f32.mxu0 0.0
        %906 = vmatmul.mubr.f32.gmra.mrb[0].mxu0 %v551
        %v907 = vpop.f32.mrb[0].mxu0
        %v908 = vadd.f32 %v743, %v907
        %v909 = vpop.f32.mrb[0].mxu0
        %910 = vmatprep.mubr.f32.mxu0 0.0
        %911 = vmatmul.mubr.f32.gmra.mrb[0].mxu0 %v552
        %v912 = vpop.f32.mrb[0].mxu0
        %v913 = vadd.f32 %v748, %v912
        %v914 = vpop.f32.mrb[0].mxu0
        %915 = vmatprep.mubr.f32.mxu0 0.0
        %916 = vmatmul.mubr.f32.gmra.mrb[0].mxu0 %v553
        %v917 = vpop.f32.mrb[0].mxu0
        %v918 = vadd.f32 %v753, %v917
        %v919 = vpop.f32.mrb[0].mxu0
        %920 = vmatprep.mubr.f32.mxu0 0.0
        %921 = vmatmul.mubr.f32.gmra.mrb[0].mxu0 %v554
        %v922 = vpop.f32.mrb[0].mxu0
        %v923 = vadd.f32 %v758, %v922
        %v924 = vpop.f32.mrb[0].mxu0
        %925 = vmatprep.mubr.f32.mxu0 0.0
        %926 = vmatmul.mubr.f32.gmra.mrb[0].mxu0 %v555
        %v927 = vpop.f32.mrb[0].mxu0
        %v928 = vadd.f32 %v763, %v927
        %v929 = vpop.f32.mrb[0].mxu0
        %930 = vmatprep.mubr.f32.mxu0 0.0
        %931 = vmatmul.mubr.f32.gmra.mrb[0].mxu0 %v556
        %v932 = vpop.f32.mrb[0].mxu0
        %v933 = vadd.f32 %v768, %v932
        %v934 = vpop.f32.mrb[0].mxu0
        %935 = vmatprep.mubr.f32.mxu0 0.0
        %936 = vmatmul.mubr.f32.gmra.mrb[0].mxu0 %v557
        %v937 = vpop.f32.mrb[0].mxu0
        %v938 = vadd.f32 %v773, %v937
        %v939 = vpop.f32.mrb[0].mxu0
        %940 = vdwg.mxu0
        %v941 = vld [vmem:[#allocation3 + $0x2] sm:$0xff]
        %v942 = vld [vmem:[#allocation3 + $0xa] sm:$0xff]
        %v943 = vld [vmem:[#allocation3 + $0x1a] sm:$0xff]
        %v944 = vld [vmem:[#allocation3 + $0x22] sm:$0xff]
        %v945 = vld [vmem:[#allocation3 + $0x32] sm:$0xff]
        %v946 = vld [vmem:[#allocation3 + $0x3a] sm:$0xff]
        %v947 = vld [vmem:[#allocation3 + $0x4a] sm:$0xff]
        %v948 = vld [vmem:[#allocation3 + $0x52] sm:$0xff]
        %v949 = vld [vmem:[#allocation3 + $0x62] sm:$0xff]
        %v950 = vld [vmem:[#allocation3 + $0x6a] sm:$0xff]
        %v951 = vld [vmem:[#allocation3 + $0x7a] sm:$0xff]
        %v952 = vld [vmem:[#allocation3 + $0x82] sm:$0xff]
        %v953 = vld [vmem:[#allocation3 + $0x92] sm:$0xff]
        %v954 = vld [vmem:[#allocation3 + $0x9a] sm:$0xff]
        %v955 = vld [vmem:[#allocation3 + $0xaa] sm:$0xff]
        %v956 = vld [vmem:[#allocation3 + $0xb2] sm:$0xff]
        %v957 = vld [vmem:[#allocation3 + $0xc2] sm:$0xff]
        %v958 = vld [vmem:[#allocation3 + $0xca] sm:$0xff]
        %v959 = vld [vmem:[#allocation3 + $0xda] sm:$0xff]
        %v960 = vld [vmem:[#allocation3 + $0xe2] sm:$0xff]
        %s961 = scalar_lea.vmem %s2, 256
        %v962 = vld [vmem:[%s961] sm:$0xff]
        %v963 = vld [vmem:[%s961 + $0x8] sm:$0xff]
        %v964 = vld [vmem:[%s961 + $0x10] sm:$0xff]
        %v965 = vld [vmem:[%s961 + $0x18] sm:$0xff]
        %v966 = vld [vmem:[%s961 + $0x20] sm:$0xff]
        %v967 = vld [vmem:[%s961 + $0x28] sm:$0xff]
        %v968 = vld [vmem:[%s961 + $0x30] sm:$0xff]
        %v969 = vld [vmem:[%s961 + $0x38] sm:$0xff]
        %v970 = vld [vmem:[%s961 + $0x40] sm:$0xff]
        %v971 = vld [vmem:[%s961 + $0x48] sm:$0xff]
        %v972 = vld [vmem:[%s961 + $0x50] sm:$0xff]
        %v973 = vld [vmem:[%s961 + $0x58] sm:$0xff]
        %v974 = vld [vmem:[%s961 + $0x60] sm:$0xff]
        %v975 = vld [vmem:[%s961 + $0x68] sm:$0xff]
        %v976 = vld [vmem:[%s961 + $0x70] sm:$0xff]
        %v977 = vld [vmem:[%s961 + $0x78] sm:$0xff]
        %978 = vmatprep.subr.mxu0 0.0
        %979 = vmatpush1.msra.mxu0 %v962
        %980 = vmatprep.subr.mxu0 0.0
        %981 = vmatpush1.msra.mxu0 %v963
        %982 = vmatprep.subr.mxu0 0.0
        %983 = vmatpush1.msra.mxu0 %v964
        %984 = vmatprep.subr.mxu0 0.0
        %985 = vmatpush1.msra.mxu0 %v965
        %986 = vmatprep.subr.mxu0 0.0
        %987 = vmatpush1.msra.mxu0 %v966
        %988 = vmatprep.subr.mxu0 0.0
        %989 = vmatpush1.msra.mxu0 %v967
        %990 = vmatprep.subr.mxu0 0.0
        %991 = vmatpush1.msra.mxu0 %v968
        %992 = vmatprep.subr.mxu0 0.0
        %993 = vmatpush1.msra.mxu0 %v969
        %994 = vmatprep.subr.mxu0 0.0
        %995 = vmatpush1.msra.mxu0 %v970
        %996 = vmatprep.subr.mxu0 0.0
        %997 = vmatpush1.msra.mxu0 %v971
        %998 = vmatprep.subr.mxu0 0.0
        %999 = vmatpush1.msra.mxu0 %v972
        %1000 = vmatprep.subr.mxu0 0.0
        %1001 = vmatpush1.msra.mxu0 %v973
        %1002 = vmatprep.subr.mxu0 0.0
        %1003 = vmatpush1.msra.mxu0 %v974
        %1004 = vmatprep.subr.mxu0 0.0
        %1005 = vmatpush1.msra.mxu0 %v975
        %1006 = vmatprep.subr.mxu0 0.0
        %1007 = vmatpush1.msra.mxu0 %v976
        %1008 = vmatprep.subr.mxu0 0.0
        %1009 = vmatpush1.msra.mxu0 %v977
        %1010 = vmatprep.subr.mxu0 0.0
        %1011 = vmatpush1.msra.mxu0 0.0
        %1012 = vmatprep.subr.mxu0 0.0
        %1013 = vmatpush1.msra.mxu0 0.0
        %1014 = vmatprep.subr.mxu0 0.0
        %1015 = vmatpush1.msra.mxu0 0.0
        %1016 = vmatprep.subr.mxu0 0.0
        %1017 = vmatpush1.msra.mxu0 0.0
        %1018 = vmatprep.subr.mxu0 0.0
        %1019 = vmatpush1.msra.mxu0 0.0
        %1020 = vmatprep.subr.mxu0 0.0
        %1021 = vmatpush1.msra.mxu0 0.0
        %1022 = vmatprep.subr.mxu0 0.0
        %1023 = vmatpush1.msra.mxu0 0.0
        %1024 = vmatprep.subr.mxu0 0.0
        %1025 = vmatpush1.msra.mxu0 0.0
        %1026 = vmatprep.subr.mxu0 0.0
        %1027 = vmatpush1.msra.mxu0 0.0
        %1028 = vmatprep.subr.mxu0 0.0
        %1029 = vmatpush1.msra.mxu0 0.0
        %1030 = vmatprep.subr.mxu0 0.0
        %1031 = vmatpush1.msra.mxu0 0.0
        %1032 = vmatprep.subr.mxu0 0.0
        %1033 = vmatpush1.msra.mxu0 0.0
        %1034 = vmatprep.subr.mxu0 0.0
        %1035 = vmatpush1.msra.mxu0 0.0
        %1036 = vmatprep.subr.mxu0 0.0
        %1037 = vmatpush1.msra.mxu0 0.0
        %1038 = vmatprep.subr.mxu0 0.0
        %1039 = vmatpush1.msra.mxu0 0.0
        %1040 = vmatprep.subr.mxu0 0.0
        %1041 = vmatpush1.msra.mxu0 0.0
        %1042 = vmatprep.mubr.f32.mxu0 0.0
        %1043 = vmatmul.mubr.f32.gmra.mrb[0].mxu0 %v941
        %v1044 = vpop.f32.mrb[0].mxu0
        %v1045 = vadd.f32 0.0, %v1044
        %v1046 = vpop.f32.mrb[0].mxu0
        %1047 = vmatprep.mubr.f32.mxu0 0.0
        %1048 = vmatmul.mubr.f32.gmra.mrb[0].mxu0 %v942
        %v1049 = vpop.f32.mrb[0].mxu0
        %v1050 = vadd.f32 0.0, %v1049
        %v1051 = vpop.f32.mrb[0].mxu0
        %1052 = vmatprep.mubr.f32.mxu0 0.0
        %1053 = vmatmul.mubr.f32.gmra.mrb[0].mxu0 %v943
        %v1054 = vpop.f32.mrb[0].mxu0
        %v1055 = vadd.f32 0.0, %v1054
        %v1056 = vpop.f32.mrb[0].mxu0
        %1057 = vmatprep.mubr.f32.mxu0 0.0
        %1058 = vmatmul.mubr.f32.gmra.mrb[0].mxu0 %v944
        %v1059 = vpop.f32.mrb[0].mxu0
        %v1060 = vadd.f32 0.0, %v1059
        %v1061 = vpop.f32.mrb[0].mxu0
        %1062 = vmatprep.mubr.f32.mxu0 0.0
        %1063 = vmatmul.mubr.f32.gmra.mrb[0].mxu0 %v945
        %v1064 = vpop.f32.mrb[0].mxu0
        %v1065 = vadd.f32 0.0, %v1064
        %v1066 = vpop.f32.mrb[0].mxu0
        %1067 = vmatprep.mubr.f32.mxu0 0.0
        %1068 = vmatmul.mubr.f32.gmra.mrb[0].mxu0 %v946
        %v1069 = vpop.f32.mrb[0].mxu0
        %v1070 = vadd.f32 0.0, %v1069
        %v1071 = vpop.f32.mrb[0].mxu0
        %1072 = vmatprep.mubr.f32.mxu0 0.0
        %1073 = vmatmul.mubr.f32.gmra.mrb[0].mxu0 %v947
        %v1074 = vpop.f32.mrb[0].mxu0
        %v1075 = vadd.f32 0.0, %v1074
        %v1076 = vpop.f32.mrb[0].mxu0
        %1077 = vmatprep.mubr.f32.mxu0 0.0
        %1078 = vmatmul.mubr.f32.gmra.mrb[0].mxu0 %v948
        %v1079 = vpop.f32.mrb[0].mxu0
        %v1080 = vadd.f32 0.0, %v1079
        %v1081 = vpop.f32.mrb[0].mxu0
        %1082 = vmatprep.mubr.f32.mxu0 0.0
        %1083 = vmatmul.mubr.f32.gmra.mrb[0].mxu0 %v949
        %v1084 = vpop.f32.mrb[0].mxu0
        %v1085 = vadd.f32 0.0, %v1084
        %v1086 = vpop.f32.mrb[0].mxu0
        %1087 = vmatprep.mubr.f32.mxu0 0.0
        %1088 = vmatmul.mubr.f32.gmra.mrb[0].mxu0 %v950
        %v1089 = vpop.f32.mrb[0].mxu0
        %v1090 = vadd.f32 0.0, %v1089
        %v1091 = vpop.f32.mrb[0].mxu0
        %1092 = vmatprep.mubr.f32.mxu0 0.0
        %1093 = vmatmul.mubr.f32.gmra.mrb[0].mxu0 %v951
        %v1094 = vpop.f32.mrb[0].mxu0
        %v1095 = vadd.f32 0.0, %v1094
        %v1096 = vpop.f32.mrb[0].mxu0
        %1097 = vmatprep.mubr.f32.mxu0 0.0
        %1098 = vmatmul.mubr.f32.gmra.mrb[0].mxu0 %v952
        %v1099 = vpop.f32.mrb[0].mxu0
        %v1100 = vadd.f32 0.0, %v1099
        %v1101 = vpop.f32.mrb[0].mxu0
        %1102 = vmatprep.mubr.f32.mxu0 0.0
        %1103 = vmatmul.mubr.f32.gmra.mrb[0].mxu0 %v953
        %v1104 = vpop.f32.mrb[0].mxu0
        %v1105 = vadd.f32 0.0, %v1104
        %v1106 = vpop.f32.mrb[0].mxu0
        %1107 = vmatprep.mubr.f32.mxu0 0.0
        %1108 = vmatmul.mubr.f32.gmra.mrb[0].mxu0 %v954
        %v1109 = vpop.f32.mrb[0].mxu0
        %v1110 = vadd.f32 0.0, %v1109
        %v1111 = vpop.f32.mrb[0].mxu0
        %1112 = vmatprep.mubr.f32.mxu0 0.0
        %1113 = vmatmul.mubr.f32.gmra.mrb[0].mxu0 %v955
        %v1114 = vpop.f32.mrb[0].mxu0
        %v1115 = vadd.f32 0.0, %v1114
        %v1116 = vpop.f32.mrb[0].mxu0
        %1117 = vmatprep.mubr.f32.mxu0 0.0
        %1118 = vmatmul.mubr.f32.gmra.mrb[0].mxu0 %v956
        %v1119 = vpop.f32.mrb[0].mxu0
        %v1120 = vadd.f32 0.0, %v1119
        %v1121 = vpop.f32.mrb[0].mxu0
        %1122 = vmatprep.mubr.f32.mxu0 0.0
        %1123 = vmatmul.mubr.f32.gmra.mrb[0].mxu0 %v957
        %v1124 = vpop.f32.mrb[0].mxu0
        %v1125 = vadd.f32 0.0, %v1124
        %v1126 = vpop.f32.mrb[0].mxu0
        %1127 = vmatprep.mubr.f32.mxu0 0.0
        %1128 = vmatmul.mubr.f32.gmra.mrb[0].mxu0 %v958
        %v1129 = vpop.f32.mrb[0].mxu0
        %v1130 = vadd.f32 0.0, %v1129
        %v1131 = vpop.f32.mrb[0].mxu0
        %1132 = vmatprep.mubr.f32.mxu0 0.0
        %1133 = vmatmul.mubr.f32.gmra.mrb[0].mxu0 %v959
        %v1134 = vpop.f32.mrb[0].mxu0
        %v1135 = vadd.f32 0.0, %v1134
        %v1136 = vpop.f32.mrb[0].mxu0
        %1137 = vmatprep.mubr.f32.mxu0 0.0
        %1138 = vmatmul.mubr.f32.gmra.mrb[0].mxu0 %v960
        %v1139 = vpop.f32.mrb[0].mxu0
        %v1140 = vadd.f32 0.0, %v1139
        %v1141 = vpop.f32.mrb[0].mxu0
        %1142 = vdwg.mxu0
        %v1143 = vadd.f32 %v843, %v1045
        %v1144 = vadd.f32 %v848, %v1050
        %v1145 = vadd.f32 %v853, %v1055
        %v1146 = vadd.f32 %v858, %v1060
        %v1147 = vadd.f32 %v863, %v1065
        %v1148 = vadd.f32 %v868, %v1070
        %v1149 = vadd.f32 %v873, %v1075
        %v1150 = vadd.f32 %v878, %v1080
        %v1151 = vadd.f32 %v883, %v1085
        %v1152 = vadd.f32 %v888, %v1090
        %v1153 = vadd.f32 %v893, %v1095
        %v1154 = vadd.f32 %v898, %v1100
        %v1155 = vadd.f32 %v903, %v1105
        %v1156 = vadd.f32 %v908, %v1110
        %v1157 = vadd.f32 %v913, %v1115
        %v1158 = vadd.f32 %v918, %v1120
        %v1159 = vadd.f32 %v923, %v1125
        %v1160 = vadd.f32 %v928, %v1130
        %v1161 = vadd.f32 %v933, %v1135
        %v1162 = vadd.f32 %v938, %v1140
        %s1163 = scalar_lea.vmem [#allocation3], 24
        %v1164 = vld [vmem:[%s1163] sm:$0xff]
        %v1165 = vld [vmem:[%s1163 + $0x8] sm:$0xff]
        %v1166 = vld [vmem:[%s1163 + $0x18] sm:$0xff]
        %v1167 = vld [vmem:[%s1163 + $0x20] sm:$0xff]
        %v1168 = vld [vmem:[%s1163 + $0x30] sm:$0xff]
        %v1169 = vld [vmem:[%s1163 + $0x38] sm:$0xff]
        %v1170 = vld [vmem:[%s1163 + $0x48] sm:$0xff]
        %v1171 = vld [vmem:[%s1163 + $0x50] sm:$0xff]
        %v1172 = vld [vmem:[%s1163 + $0x60] sm:$0xff]
        %v1173 = vld [vmem:[%s1163 + $0x68] sm:$0xff]
        %v1174 = vld [vmem:[%s1163 + $0x78] sm:$0xff]
        %v1175 = vld [vmem:[%s1163 + $0x80] sm:$0xff]
        %v1176 = vld [vmem:[%s1163 + $0x90] sm:$0xff]
        %v1177 = vld [vmem:[%s1163 + $0x98] sm:$0xff]
        %v1178 = vld [vmem:[%s1163 + $0xa8] sm:$0xff]
        %v1179 = vld [vmem:[%s1163 + $0xb0] sm:$0xff]
        %v1180 = vld [vmem:[%s1163 + $0xc0] sm:$0xff]
        %v1181 = vld [vmem:[%s1163 + $0xc8] sm:$0xff]
        %v1182 = vld [vmem:[%s1163 + $0xd8] sm:$0xff]
        %v1183 = vld [vmem:[%s1163 + $0xe0] sm:$0xff]
        %s1184 = scalar_lea.vmem %s2, 384
        %v1185 = vld [vmem:[%s1184] sm:$0xff]
        %v1186 = vld [vmem:[%s1184 + $0x8] sm:$0xff]
        %v1187 = vld [vmem:[%s1184 + $0x10] sm:$0xff]
        %v1188 = vld [vmem:[%s1184 + $0x18] sm:$0xff]
        %v1189 = vld [vmem:[%s1184 + $0x20] sm:$0xff]
        %v1190 = vld [vmem:[%s1184 + $0x28] sm:$0xff]
        %v1191 = vld [vmem:[%s1184 + $0x30] sm:$0xff]
        %v1192 = vld [vmem:[%s1184 + $0x38] sm:$0xff]
        %v1193 = vld [vmem:[%s1184 + $0x40] sm:$0xff]
        %v1194 = vld [vmem:[%s1184 + $0x48] sm:$0xff]
        %v1195 = vld [vmem:[%s1184 + $0x50] sm:$0xff]
        %v1196 = vld [vmem:[%s1184 + $0x58] sm:$0xff]
        %v1197 = vld [vmem:[%s1184 + $0x60] sm:$0xff]
        %v1198 = vld [vmem:[%s1184 + $0x68] sm:$0xff]
        %v1199 = vld [vmem:[%s1184 + $0x70] sm:$0xff]
        %v1200 = vld [vmem:[%s1184 + $0x78] sm:$0xff]
        %1201 = vmatprep.subr.mxu0 0.0
        %1202 = vmatpush1.msra.mxu0 %v1185
        %1203 = vmatprep.subr.mxu0 0.0
        %1204 = vmatpush1.msra.mxu0 %v1186
        %1205 = vmatprep.subr.mxu0 0.0
        %1206 = vmatpush1.msra.mxu0 %v1187
        %1207 = vmatprep.subr.mxu0 0.0
        %1208 = vmatpush1.msra.mxu0 %v1188
        %1209 = vmatprep.subr.mxu0 0.0
        %1210 = vmatpush1.msra.mxu0 %v1189
        %1211 = vmatprep.subr.mxu0 0.0
        %1212 = vmatpush1.msra.mxu0 %v1190
        %1213 = vmatprep.subr.mxu0 0.0
        %1214 = vmatpush1.msra.mxu0 %v1191
        %1215 = vmatprep.subr.mxu0 0.0
        %1216 = vmatpush1.msra.mxu0 %v1192
        %1217 = vmatprep.subr.mxu0 0.0
        %1218 = vmatpush1.msra.mxu0 %v1193
        %1219 = vmatprep.subr.mxu0 0.0
        %1220 = vmatpush1.msra.mxu0 %v1194
        %1221 = vmatprep.subr.mxu0 0.0
        %1222 = vmatpush1.msra.mxu0 %v1195
        %1223 = vmatprep.subr.mxu0 0.0
        %1224 = vmatpush1.msra.mxu0 %v1196
        %1225 = vmatprep.subr.mxu0 0.0
        %1226 = vmatpush1.msra.mxu0 %v1197
        %1227 = vmatprep.subr.mxu0 0.0
        %1228 = vmatpush1.msra.mxu0 %v1198
        %1229 = vmatprep.subr.mxu0 0.0
        %1230 = vmatpush1.msra.mxu0 %v1199
        %1231 = vmatprep.subr.mxu0 0.0
        %1232 = vmatpush1.msra.mxu0 %v1200
        %1233 = vmatprep.subr.mxu0 0.0
        %1234 = vmatpush1.msra.mxu0 0.0
        %1235 = vmatprep.subr.mxu0 0.0
        %1236 = vmatpush1.msra.mxu0 0.0
        %1237 = vmatprep.subr.mxu0 0.0
        %1238 = vmatpush1.msra.mxu0 0.0
        %1239 = vmatprep.subr.mxu0 0.0
        %1240 = vmatpush1.msra.mxu0 0.0
        %1241 = vmatprep.subr.mxu0 0.0
        %1242 = vmatpush1.msra.mxu0 0.0
        %1243 = vmatprep.subr.mxu0 0.0
        %1244 = vmatpush1.msra.mxu0 0.0
        %1245 = vmatprep.subr.mxu0 0.0
        %1246 = vmatpush1.msra.mxu0 0.0
        %1247 = vmatprep.subr.mxu0 0.0
        %1248 = vmatpush1.msra.mxu0 0.0
        %1249 = vmatprep.subr.mxu0 0.0
        %1250 = vmatpush1.msra.mxu0 0.0
        %1251 = vmatprep.subr.mxu0 0.0
        %1252 = vmatpush1.msra.mxu0 0.0
        %1253 = vmatprep.subr.mxu0 0.0
        %1254 = vmatpush1.msra.mxu0 0.0
        %1255 = vmatprep.subr.mxu0 0.0
        %1256 = vmatpush1.msra.mxu0 0.0
        %1257 = vmatprep.subr.mxu0 0.0
        %1258 = vmatpush1.msra.mxu0 0.0
        %1259 = vmatprep.subr.mxu0 0.0
        %1260 = vmatpush1.msra.mxu0 0.0
        %1261 = vmatprep.subr.mxu0 0.0
        %1262 = vmatpush1.msra.mxu0 0.0
        %1263 = vmatprep.subr.mxu0 0.0
        %1264 = vmatpush1.msra.mxu0 0.0
        %1265 = vmatprep.mubr.f32.mxu0 0.0
        %1266 = vmatmul.mubr.f32.gmra.mrb[0].mxu0 %v1164
        %v1267 = vpop.f32.mrb[0].mxu0
        %v1268 = vadd.f32 0.0, %v1267
        %v1269 = vpop.f32.mrb[0].mxu0
        %1270 = vmatprep.mubr.f32.mxu0 0.0
        %1271 = vmatmul.mubr.f32.gmra.mrb[0].mxu0 %v1165
        %v1272 = vpop.f32.mrb[0].mxu0
        %v1273 = vadd.f32 0.0, %v1272
        %v1274 = vpop.f32.mrb[0].mxu0
        %1275 = vmatprep.mubr.f32.mxu0 0.0
        %1276 = vmatmul.mubr.f32.gmra.mrb[0].mxu0 %v1166
        %v1277 = vpop.f32.mrb[0].mxu0
        %v1278 = vadd.f32 0.0, %v1277
        %v1279 = vpop.f32.mrb[0].mxu0
        %1280 = vmatprep.mubr.f32.mxu0 0.0
        %1281 = vmatmul.mubr.f32.gmra.mrb[0].mxu0 %v1167
        %v1282 = vpop.f32.mrb[0].mxu0
        %v1283 = vadd.f32 0.0, %v1282
        %v1284 = vpop.f32.mrb[0].mxu0
        %1285 = vmatprep.mubr.f32.mxu0 0.0
        %1286 = vmatmul.mubr.f32.gmra.mrb[0].mxu0 %v1168
        %v1287 = vpop.f32.mrb[0].mxu0
        %v1288 = vadd.f32 0.0, %v1287
        %v1289 = vpop.f32.mrb[0].mxu0
        %1290 = vmatprep.mubr.f32.mxu0 0.0
        %1291 = vmatmul.mubr.f32.gmra.mrb[0].mxu0 %v1169
        %v1292 = vpop.f32.mrb[0].mxu0
        %v1293 = vadd.f32 0.0, %v1292
        %v1294 = vpop.f32.mrb[0].mxu0
        %1295 = vmatprep.mubr.f32.mxu0 0.0
        %1296 = vmatmul.mubr.f32.gmra.mrb[0].mxu0 %v1170
        %v1297 = vpop.f32.mrb[0].mxu0
        %v1298 = vadd.f32 0.0, %v1297
        %v1299 = vpop.f32.mrb[0].mxu0
        %1300 = vmatprep.mubr.f32.mxu0 0.0
        %1301 = vmatmul.mubr.f32.gmra.mrb[0].mxu0 %v1171
        %v1302 = vpop.f32.mrb[0].mxu0
        %v1303 = vadd.f32 0.0, %v1302
        %v1304 = vpop.f32.mrb[0].mxu0
        %1305 = vmatprep.mubr.f32.mxu0 0.0
        %1306 = vmatmul.mubr.f32.gmra.mrb[0].mxu0 %v1172
        %v1307 = vpop.f32.mrb[0].mxu0
        %v1308 = vadd.f32 0.0, %v1307
        %v1309 = vpop.f32.mrb[0].mxu0
        %1310 = vmatprep.mubr.f32.mxu0 0.0
        %1311 = vmatmul.mubr.f32.gmra.mrb[0].mxu0 %v1173
        %v1312 = vpop.f32.mrb[0].mxu0
        %v1313 = vadd.f32 0.0, %v1312
        %v1314 = vpop.f32.mrb[0].mxu0
        %1315 = vmatprep.mubr.f32.mxu0 0.0
        %1316 = vmatmul.mubr.f32.gmra.mrb[0].mxu0 %v1174
        %v1317 = vpop.f32.mrb[0].mxu0
        %v1318 = vadd.f32 0.0, %v1317
        %v1319 = vpop.f32.mrb[0].mxu0
        %1320 = vmatprep.mubr.f32.mxu0 0.0
        %1321 = vmatmul.mubr.f32.gmra.mrb[0].mxu0 %v1175
        %v1322 = vpop.f32.mrb[0].mxu0
        %v1323 = vadd.f32 0.0, %v1322
        %v1324 = vpop.f32.mrb[0].mxu0
        %1325 = vmatprep.mubr.f32.mxu0 0.0
        %1326 = vmatmul.mubr.f32.gmra.mrb[0].mxu0 %v1176
        %v1327 = vpop.f32.mrb[0].mxu0
        %v1328 = vadd.f32 0.0, %v1327
        %v1329 = vpop.f32.mrb[0].mxu0
        %1330 = vmatprep.mubr.f32.mxu0 0.0
        %1331 = vmatmul.mubr.f32.gmra.mrb[0].mxu0 %v1177
        %v1332 = vpop.f32.mrb[0].mxu0
        %v1333 = vadd.f32 0.0, %v1332
        %v1334 = vpop.f32.mrb[0].mxu0
        %1335 = vmatprep.mubr.f32.mxu0 0.0
        %1336 = vmatmul.mubr.f32.gmra.mrb[0].mxu0 %v1178
        %v1337 = vpop.f32.mrb[0].mxu0
        %v1338 = vadd.f32 0.0, %v1337
        %v1339 = vpop.f32.mrb[0].mxu0
        %1340 = vmatprep.mubr.f32.mxu0 0.0
        %1341 = vmatmul.mubr.f32.gmra.mrb[0].mxu0 %v1179
        %v1342 = vpop.f32.mrb[0].mxu0
        %v1343 = vadd.f32 0.0, %v1342
        %v1344 = vpop.f32.mrb[0].mxu0
        %1345 = vmatprep.mubr.f32.mxu0 0.0
        %1346 = vmatmul.mubr.f32.gmra.mrb[0].mxu0 %v1180
        %v1347 = vpop.f32.mrb[0].mxu0
        %v1348 = vadd.f32 0.0, %v1347
        %v1349 = vpop.f32.mrb[0].mxu0
        %1350 = vmatprep.mubr.f32.mxu0 0.0
        %1351 = vmatmul.mubr.f32.gmra.mrb[0].mxu0 %v1181
        %v1352 = vpop.f32.mrb[0].mxu0
        %v1353 = vadd.f32 0.0, %v1352
        %v1354 = vpop.f32.mrb[0].mxu0
        %1355 = vmatprep.mubr.f32.mxu0 0.0
        %1356 = vmatmul.mubr.f32.gmra.mrb[0].mxu0 %v1182
        %v1357 = vpop.f32.mrb[0].mxu0
        %v1358 = vadd.f32 0.0, %v1357
        %v1359 = vpop.f32.mrb[0].mxu0
        %1360 = vmatprep.mubr.f32.mxu0 0.0
        %1361 = vmatmul.mubr.f32.gmra.mrb[0].mxu0 %v1183
        %v1362 = vpop.f32.mrb[0].mxu0
        %v1363 = vadd.f32 0.0, %v1362
        %v1364 = vpop.f32.mrb[0].mxu0
        %1365 = vdwg.mxu0
        %v1366 = vadd.f32 %v1143, %v1268
        %v1367 = vadd.f32 %v1144, %v1273
        %v1368 = vadd.f32 %v1145, %v1278
        %v1369 = vadd.f32 %v1146, %v1283
        %v1370 = vadd.f32 %v1147, %v1288
        %v1371 = vadd.f32 %v1148, %v1293
        %v1372 = vadd.f32 %v1149, %v1298
        %v1373 = vadd.f32 %v1150, %v1303
        %v1374 = vadd.f32 %v1151, %v1308
        %v1375 = vadd.f32 %v1152, %v1313
        %v1376 = vadd.f32 %v1153, %v1318
        %v1377 = vadd.f32 %v1154, %v1323
        %v1378 = vadd.f32 %v1155, %v1328
        %v1379 = vadd.f32 %v1156, %v1333
        %v1380 = vadd.f32 %v1157, %v1338
        %v1381 = vadd.f32 %v1158, %v1343
        %v1382 = vadd.f32 %v1159, %v1348
        %v1383 = vadd.f32 %v1160, %v1353
        %v1384 = vadd.f32 %v1161, %v1358
        %v1385 = vadd.f32 %v1162, %v1363
        %v1386 = vld [vmem:[%s1163 + $0x1] sm:$0xff]
        %v1387 = vld [vmem:[%s1163 + $0x9] sm:$0xff]
        %v1388 = vld [vmem:[%s1163 + $0x19] sm:$0xff]
        %v1389 = vld [vmem:[%s1163 + $0x21] sm:$0xff]
        %v1390 = vld [vmem:[%s1163 + $0x31] sm:$0xff]
        %v1391 = vld [vmem:[%s1163 + $0x39] sm:$0xff]
        %v1392 = vld [vmem:[%s1163 + $0x49] sm:$0xff]
        %v1393 = vld [vmem:[%s1163 + $0x51] sm:$0xff]
        %v1394 = vld [vmem:[%s1163 + $0x61] sm:$0xff]
        %v1395 = vld [vmem:[%s1163 + $0x69] sm:$0xff]
        %v1396 = vld [vmem:[%s1163 + $0x79] sm:$0xff]
        %v1397 = vld [vmem:[%s1163 + $0x81] sm:$0xff]
        %v1398 = vld [vmem:[%s1163 + $0x91] sm:$0xff]
        %v1399 = vld [vmem:[%s1163 + $0x99] sm:$0xff]
        %v1400 = vld [vmem:[%s1163 + $0xa9] sm:$0xff]
        %v1401 = vld [vmem:[%s1163 + $0xb1] sm:$0xff]
        %v1402 = vld [vmem:[%s1163 + $0xc1] sm:$0xff]
        %v1403 = vld [vmem:[%s1163 + $0xc9] sm:$0xff]
        %v1404 = vld [vmem:[%s1163 + $0xd9] sm:$0xff]
        %v1405 = vld [vmem:[%s1163 + $0xe1] sm:$0xff]
        %s1406 = scalar_lea.vmem %s2, 512
        %v1407 = vld [vmem:[%s1406] sm:$0xff]
        %v1408 = vld [vmem:[%s1406 + $0x8] sm:$0xff]
        %v1409 = vld [vmem:[%s1406 + $0x10] sm:$0xff]
        %v1410 = vld [vmem:[%s1406 + $0x18] sm:$0xff]
        %v1411 = vld [vmem:[%s1406 + $0x20] sm:$0xff]
        %v1412 = vld [vmem:[%s1406 + $0x28] sm:$0xff]
        %v1413 = vld [vmem:[%s1406 + $0x30] sm:$0xff]
        %v1414 = vld [vmem:[%s1406 + $0x38] sm:$0xff]
        %v1415 = vld [vmem:[%s1406 + $0x40] sm:$0xff]
        %v1416 = vld [vmem:[%s1406 + $0x48] sm:$0xff]
        %v1417 = vld [vmem:[%s1406 + $0x50] sm:$0xff]
        %v1418 = vld [vmem:[%s1406 + $0x58] sm:$0xff]
        %v1419 = vld [vmem:[%s1406 + $0x60] sm:$0xff]
        %v1420 = vld [vmem:[%s1406 + $0x68] sm:$0xff]
        %v1421 = vld [vmem:[%s1406 + $0x70] sm:$0xff]
        %v1422 = vld [vmem:[%s1406 + $0x78] sm:$0xff]
        %1423 = vmatprep.subr.mxu0 0.0
        %1424 = vmatpush1.msra.mxu0 %v1407
        %1425 = vmatprep.subr.mxu0 0.0
        %1426 = vmatpush1.msra.mxu0 %v1408
        %1427 = vmatprep.subr.mxu0 0.0
        %1428 = vmatpush1.msra.mxu0 %v1409
        %1429 = vmatprep.subr.mxu0 0.0
        %1430 = vmatpush1.msra.mxu0 %v1410
        %1431 = vmatprep.subr.mxu0 0.0
        %1432 = vmatpush1.msra.mxu0 %v1411
        %1433 = vmatprep.subr.mxu0 0.0
        %1434 = vmatpush1.msra.mxu0 %v1412
        %1435 = vmatprep.subr.mxu0 0.0
        %1436 = vmatpush1.msra.mxu0 %v1413
        %1437 = vmatprep.subr.mxu0 0.0
        %1438 = vmatpush1.msra.mxu0 %v1414
        %1439 = vmatprep.subr.mxu0 0.0
        %1440 = vmatpush1.msra.mxu0 %v1415
        %1441 = vmatprep.subr.mxu0 0.0
        %1442 = vmatpush1.msra.mxu0 %v1416
        %1443 = vmatprep.subr.mxu0 0.0
        %1444 = vmatpush1.msra.mxu0 %v1417
        %1445 = vmatprep.subr.mxu0 0.0
        %1446 = vmatpush1.msra.mxu0 %v1418
        %1447 = vmatprep.subr.mxu0 0.0
        %1448 = vmatpush1.msra.mxu0 %v1419
        %1449 = vmatprep.subr.mxu0 0.0
        %1450 = vmatpush1.msra.mxu0 %v1420
        %1451 = vmatprep.subr.mxu0 0.0
        %1452 = vmatpush1.msra.mxu0 %v1421
        %1453 = vmatprep.subr.mxu0 0.0
        %1454 = vmatpush1.msra.mxu0 %v1422
        %1455 = vmatprep.subr.mxu0 0.0
        %1456 = vmatpush1.msra.mxu0 0.0
        %1457 = vmatprep.subr.mxu0 0.0
        %1458 = vmatpush1.msra.mxu0 0.0
        %1459 = vmatprep.subr.mxu0 0.0
        %1460 = vmatpush1.msra.mxu0 0.0
        %1461 = vmatprep.subr.mxu0 0.0
        %1462 = vmatpush1.msra.mxu0 0.0
        %1463 = vmatprep.subr.mxu0 0.0
        %1464 = vmatpush1.msra.mxu0 0.0
        %1465 = vmatprep.subr.mxu0 0.0
        %1466 = vmatpush1.msra.mxu0 0.0
        %1467 = vmatprep.subr.mxu0 0.0
        %1468 = vmatpush1.msra.mxu0 0.0
        %1469 = vmatprep.subr.mxu0 0.0
        %1470 = vmatpush1.msra.mxu0 0.0
        %1471 = vmatprep.subr.mxu0 0.0
        %1472 = vmatpush1.msra.mxu0 0.0
        %1473 = vmatprep.subr.mxu0 0.0
        %1474 = vmatpush1.msra.mxu0 0.0
        %1475 = vmatprep.subr.mxu0 0.0
        %1476 = vmatpush1.msra.mxu0 0.0
        %1477 = vmatprep.subr.mxu0 0.0
        %1478 = vmatpush1.msra.mxu0 0.0
        %1479 = vmatprep.subr.mxu0 0.0
        %1480 = vmatpush1.msra.mxu0 0.0
        %1481 = vmatprep.subr.mxu0 0.0
        %1482 = vmatpush1.msra.mxu0 0.0
        %1483 = vmatprep.subr.mxu0 0.0
        %1484 = vmatpush1.msra.mxu0 0.0
        %1485 = vmatprep.subr.mxu0 0.0
        %1486 = vmatpush1.msra.mxu0 0.0
        %1487 = vmatprep.mubr.f32.mxu0 0.0
        %1488 = vmatmul.mubr.f32.gmra.mrb[0].mxu0 %v1386
        %v1489 = vpop.f32.mrb[0].mxu0
        %v1490 = vadd.f32 0.0, %v1489
        %v1491 = vpop.f32.mrb[0].mxu0
        %1492 = vmatprep.mubr.f32.mxu0 0.0
        %1493 = vmatmul.mubr.f32.gmra.mrb[0].mxu0 %v1387
        %v1494 = vpop.f32.mrb[0].mxu0
        %v1495 = vadd.f32 0.0, %v1494
        %v1496 = vpop.f32.mrb[0].mxu0
        %1497 = vmatprep.mubr.f32.mxu0 0.0
        %1498 = vmatmul.mubr.f32.gmra.mrb[0].mxu0 %v1388
        %v1499 = vpop.f32.mrb[0].mxu0
        %v1500 = vadd.f32 0.0, %v1499
        %v1501 = vpop.f32.mrb[0].mxu0
        %1502 = vmatprep.mubr.f32.mxu0 0.0
        %1503 = vmatmul.mubr.f32.gmra.mrb[0].mxu0 %v1389
        %v1504 = vpop.f32.mrb[0].mxu0
        %v1505 = vadd.f32 0.0, %v1504
        %v1506 = vpop.f32.mrb[0].mxu0
        %1507 = vmatprep.mubr.f32.mxu0 0.0
        %1508 = vmatmul.mubr.f32.gmra.mrb[0].mxu0 %v1390
        %v1509 = vpop.f32.mrb[0].mxu0
        %v1510 = vadd.f32 0.0, %v1509
        %v1511 = vpop.f32.mrb[0].mxu0
        %1512 = vmatprep.mubr.f32.mxu0 0.0
        %1513 = vmatmul.mubr.f32.gmra.mrb[0].mxu0 %v1391
        %v1514 = vpop.f32.mrb[0].mxu0
        %v1515 = vadd.f32 0.0, %v1514
        %v1516 = vpop.f32.mrb[0].mxu0
        %1517 = vmatprep.mubr.f32.mxu0 0.0
        %1518 = vmatmul.mubr.f32.gmra.mrb[0].mxu0 %v1392
        %v1519 = vpop.f32.mrb[0].mxu0
        %v1520 = vadd.f32 0.0, %v1519
        %v1521 = vpop.f32.mrb[0].mxu0
        %1522 = vmatprep.mubr.f32.mxu0 0.0
        %1523 = vmatmul.mubr.f32.gmra.mrb[0].mxu0 %v1393
        %v1524 = vpop.f32.mrb[0].mxu0
        %v1525 = vadd.f32 0.0, %v1524
        %v1526 = vpop.f32.mrb[0].mxu0
        %1527 = vmatprep.mubr.f32.mxu0 0.0
        %1528 = vmatmul.mubr.f32.gmra.mrb[0].mxu0 %v1394
        %v1529 = vpop.f32.mrb[0].mxu0
        %v1530 = vadd.f32 0.0, %v1529
        %v1531 = vpop.f32.mrb[0].mxu0
        %1532 = vmatprep.mubr.f32.mxu0 0.0
        %1533 = vmatmul.mubr.f32.gmra.mrb[0].mxu0 %v1395
        %v1534 = vpop.f32.mrb[0].mxu0
        %v1535 = vadd.f32 0.0, %v1534
        %v1536 = vpop.f32.mrb[0].mxu0
        %1537 = vmatprep.mubr.f32.mxu0 0.0
        %1538 = vmatmul.mubr.f32.gmra.mrb[0].mxu0 %v1396
        %v1539 = vpop.f32.mrb[0].mxu0
        %v1540 = vadd.f32 0.0, %v1539
        %v1541 = vpop.f32.mrb[0].mxu0
        %1542 = vmatprep.mubr.f32.mxu0 0.0
        %1543 = vmatmul.mubr.f32.gmra.mrb[0].mxu0 %v1397
        %v1544 = vpop.f32.mrb[0].mxu0
        %v1545 = vadd.f32 0.0, %v1544
        %v1546 = vpop.f32.mrb[0].mxu0
        %1547 = vmatprep.mubr.f32.mxu0 0.0
        %1548 = vmatmul.mubr.f32.gmra.mrb[0].mxu0 %v1398
        %v1549 = vpop.f32.mrb[0].mxu0
        %v1550 = vadd.f32 0.0, %v1549
        %v1551 = vpop.f32.mrb[0].mxu0
        %1552 = vmatprep.mubr.f32.mxu0 0.0
        %1553 = vmatmul.mubr.f32.gmra.mrb[0].mxu0 %v1399
        %v1554 = vpop.f32.mrb[0].mxu0
        %v1555 = vadd.f32 0.0, %v1554
        %v1556 = vpop.f32.mrb[0].mxu0
        %1557 = vmatprep.mubr.f32.mxu0 0.0
        %1558 = vmatmul.mubr.f32.gmra.mrb[0].mxu0 %v1400
        %v1559 = vpop.f32.mrb[0].mxu0
        %v1560 = vadd.f32 0.0, %v1559
        %v1561 = vpop.f32.mrb[0].mxu0
        %1562 = vmatprep.mubr.f32.mxu0 0.0
        %1563 = vmatmul.mubr.f32.gmra.mrb[0].mxu0 %v1401
        %v1564 = vpop.f32.mrb[0].mxu0
        %v1565 = vadd.f32 0.0, %v1564
        %v1566 = vpop.f32.mrb[0].mxu0
        %1567 = vmatprep.mubr.f32.mxu0 0.0
        %1568 = vmatmul.mubr.f32.gmra.mrb[0].mxu0 %v1402
        %v1569 = vpop.f32.mrb[0].mxu0
        %v1570 = vadd.f32 0.0, %v1569
        %v1571 = vpop.f32.mrb[0].mxu0
        %1572 = vmatprep.mubr.f32.mxu0 0.0
        %1573 = vmatmul.mubr.f32.gmra.mrb[0].mxu0 %v1403
        %v1574 = vpop.f32.mrb[0].mxu0
        %v1575 = vadd.f32 0.0, %v1574
        %v1576 = vpop.f32.mrb[0].mxu0
        %1577 = vmatprep.mubr.f32.mxu0 0.0
        %1578 = vmatmul.mubr.f32.gmra.mrb[0].mxu0 %v1404
        %v1579 = vpop.f32.mrb[0].mxu0
        %v1580 = vadd.f32 0.0, %v1579
        %v1581 = vpop.f32.mrb[0].mxu0
        %1582 = vmatprep.mubr.f32.mxu0 0.0
        %1583 = vmatmul.mubr.f32.gmra.mrb[0].mxu0 %v1405
        %v1584 = vpop.f32.mrb[0].mxu0
        %v1585 = vadd.f32 0.0, %v1584
        %v1586 = vpop.f32.mrb[0].mxu0
        %1587 = vdwg.mxu0
        %v1588 = vadd.f32 %v1366, %v1490
        %v1589 = vadd.f32 %v1367, %v1495
        %v1590 = vadd.f32 %v1368, %v1500
        %v1591 = vadd.f32 %v1369, %v1505
        %v1592 = vadd.f32 %v1370, %v1510
        %v1593 = vadd.f32 %v1371, %v1515
        %v1594 = vadd.f32 %v1372, %v1520
        %v1595 = vadd.f32 %v1373, %v1525
        %v1596 = vadd.f32 %v1374, %v1530
        %v1597 = vadd.f32 %v1375, %v1535
        %v1598 = vadd.f32 %v1376, %v1540
        %v1599 = vadd.f32 %v1377, %v1545
        %v1600 = vadd.f32 %v1378, %v1550
        %v1601 = vadd.f32 %v1379, %v1555
        %v1602 = vadd.f32 %v1380, %v1560
        %v1603 = vadd.f32 %v1381, %v1565
        %v1604 = vadd.f32 %v1382, %v1570
        %v1605 = vadd.f32 %v1383, %v1575
        %v1606 = vadd.f32 %v1384, %v1580
        %v1607 = vadd.f32 %v1385, %v1585
        %v1608 = vld [vmem:[%s1163 + $0x2] sm:$0xff]
        %v1609 = vld [vmem:[%s1163 + $0xa] sm:$0xff]
        %v1610 = vld [vmem:[%s1163 + $0x1a] sm:$0xff]
        %v1611 = vld [vmem:[%s1163 + $0x22] sm:$0xff]
        %v1612 = vld [vmem:[%s1163 + $0x32] sm:$0xff]
        %v1613 = vld [vmem:[%s1163 + $0x3a] sm:$0xff]
        %v1614 = vld [vmem:[%s1163 + $0x4a] sm:$0xff]
        %v1615 = vld [vmem:[%s1163 + $0x52] sm:$0xff]
        %v1616 = vld [vmem:[%s1163 + $0x62] sm:$0xff]
        %v1617 = vld [vmem:[%s1163 + $0x6a] sm:$0xff]
        %v1618 = vld [vmem:[%s1163 + $0x7a] sm:$0xff]
        %v1619 = vld [vmem:[%s1163 + $0x82] sm:$0xff]
        %v1620 = vld [vmem:[%s1163 + $0x92] sm:$0xff]
        %v1621 = vld [vmem:[%s1163 + $0x9a] sm:$0xff]
        %v1622 = vld [vmem:[%s1163 + $0xaa] sm:$0xff]
        %v1623 = vld [vmem:[%s1163 + $0xb2] sm:$0xff]
        %v1624 = vld [vmem:[%s1163 + $0xc2] sm:$0xff]
        %v1625 = vld [vmem:[%s1163 + $0xca] sm:$0xff]
        %v1626 = vld [vmem:[%s1163 + $0xda] sm:$0xff]
        %v1627 = vld [vmem:[%s1163 + $0xe2] sm:$0xff]
        %s1628 = scalar_lea.vmem %s2, 640
        %v1629 = vld [vmem:[%s1628] sm:$0xff]
        %v1630 = vld [vmem:[%s1628 + $0x8] sm:$0xff]
        %v1631 = vld [vmem:[%s1628 + $0x10] sm:$0xff]
        %v1632 = vld [vmem:[%s1628 + $0x18] sm:$0xff]
        %v1633 = vld [vmem:[%s1628 + $0x20] sm:$0xff]
        %v1634 = vld [vmem:[%s1628 + $0x28] sm:$0xff]
        %v1635 = vld [vmem:[%s1628 + $0x30] sm:$0xff]
        %v1636 = vld [vmem:[%s1628 + $0x38] sm:$0xff]
        %v1637 = vld [vmem:[%s1628 + $0x40] sm:$0xff]
        %v1638 = vld [vmem:[%s1628 + $0x48] sm:$0xff]
        %v1639 = vld [vmem:[%s1628 + $0x50] sm:$0xff]
        %v1640 = vld [vmem:[%s1628 + $0x58] sm:$0xff]
        %v1641 = vld [vmem:[%s1628 + $0x60] sm:$0xff]
        %v1642 = vld [vmem:[%s1628 + $0x68] sm:$0xff]
        %v1643 = vld [vmem:[%s1628 + $0x70] sm:$0xff]
        %v1644 = vld [vmem:[%s1628 + $0x78] sm:$0xff]
        %1645 = vmatprep.subr.mxu0 0.0
        %1646 = vmatpush1.msra.mxu0 %v1629
        %1647 = vmatprep.subr.mxu0 0.0
        %1648 = vmatpush1.msra.mxu0 %v1630
        %1649 = vmatprep.subr.mxu0 0.0
        %1650 = vmatpush1.msra.mxu0 %v1631
        %1651 = vmatprep.subr.mxu0 0.0
        %1652 = vmatpush1.msra.mxu0 %v1632
        %1653 = vmatprep.subr.mxu0 0.0
        %1654 = vmatpush1.msra.mxu0 %v1633
        %1655 = vmatprep.subr.mxu0 0.0
        %1656 = vmatpush1.msra.mxu0 %v1634
        %1657 = vmatprep.subr.mxu0 0.0
        %1658 = vmatpush1.msra.mxu0 %v1635
        %1659 = vmatprep.subr.mxu0 0.0
        %1660 = vmatpush1.msra.mxu0 %v1636
        %1661 = vmatprep.subr.mxu0 0.0
        %1662 = vmatpush1.msra.mxu0 %v1637
        %1663 = vmatprep.subr.mxu0 0.0
        %1664 = vmatpush1.msra.mxu0 %v1638
        %1665 = vmatprep.subr.mxu0 0.0
        %1666 = vmatpush1.msra.mxu0 %v1639
        %1667 = vmatprep.subr.mxu0 0.0
        %1668 = vmatpush1.msra.mxu0 %v1640
        %1669 = vmatprep.subr.mxu0 0.0
        %1670 = vmatpush1.msra.mxu0 %v1641
        %1671 = vmatprep.subr.mxu0 0.0
        %1672 = vmatpush1.msra.mxu0 %v1642
        %1673 = vmatprep.subr.mxu0 0.0
        %1674 = vmatpush1.msra.mxu0 %v1643
        %1675 = vmatprep.subr.mxu0 0.0
        %1676 = vmatpush1.msra.mxu0 %v1644
        %1677 = vmatprep.subr.mxu0 0.0
        %1678 = vmatpush1.msra.mxu0 0.0
        %1679 = vmatprep.subr.mxu0 0.0
        %1680 = vmatpush1.msra.mxu0 0.0
        %1681 = vmatprep.subr.mxu0 0.0
        %1682 = vmatpush1.msra.mxu0 0.0
        %1683 = vmatprep.subr.mxu0 0.0
        %1684 = vmatpush1.msra.mxu0 0.0
        %1685 = vmatprep.subr.mxu0 0.0
        %1686 = vmatpush1.msra.mxu0 0.0
        %1687 = vmatprep.subr.mxu0 0.0
        %1688 = vmatpush1.msra.mxu0 0.0
        %1689 = vmatprep.subr.mxu0 0.0
        %1690 = vmatpush1.msra.mxu0 0.0
        %1691 = vmatprep.subr.mxu0 0.0
        %1692 = vmatpush1.msra.mxu0 0.0
        %1693 = vmatprep.subr.mxu0 0.0
        %1694 = vmatpush1.msra.mxu0 0.0
        %1695 = vmatprep.subr.mxu0 0.0
        %1696 = vmatpush1.msra.mxu0 0.0
        %1697 = vmatprep.subr.mxu0 0.0
        %1698 = vmatpush1.msra.mxu0 0.0
        %1699 = vmatprep.subr.mxu0 0.0
        %1700 = vmatpush1.msra.mxu0 0.0
        %1701 = vmatprep.subr.mxu0 0.0
        %1702 = vmatpush1.msra.mxu0 0.0
        %1703 = vmatprep.subr.mxu0 0.0
        %1704 = vmatpush1.msra.mxu0 0.0
        %1705 = vmatprep.subr.mxu0 0.0
        %1706 = vmatpush1.msra.mxu0 0.0
        %1707 = vmatprep.subr.mxu0 0.0
        %1708 = vmatpush1.msra.mxu0 0.0
        %1709 = vmatprep.mubr.f32.mxu0 0.0
        %1710 = vmatmul.mubr.f32.gmra.mrb[0].mxu0 %v1608
        %v1711 = vpop.f32.mrb[0].mxu0
        %v1712 = vadd.f32 0.0, %v1711
        %v1713 = vpop.f32.mrb[0].mxu0
        %1714 = vmatprep.mubr.f32.mxu0 0.0
        %1715 = vmatmul.mubr.f32.gmra.mrb[0].mxu0 %v1609
        %v1716 = vpop.f32.mrb[0].mxu0
        %v1717 = vadd.f32 0.0, %v1716
        %v1718 = vpop.f32.mrb[0].mxu0
        %1719 = vmatprep.mubr.f32.mxu0 0.0
        %1720 = vmatmul.mubr.f32.gmra.mrb[0].mxu0 %v1610
        %v1721 = vpop.f32.mrb[0].mxu0
        %v1722 = vadd.f32 0.0, %v1721
        %v1723 = vpop.f32.mrb[0].mxu0
        %1724 = vmatprep.mubr.f32.mxu0 0.0
        %1725 = vmatmul.mubr.f32.gmra.mrb[0].mxu0 %v1611
        %v1726 = vpop.f32.mrb[0].mxu0
        %v1727 = vadd.f32 0.0, %v1726
        %v1728 = vpop.f32.mrb[0].mxu0
        %1729 = vmatprep.mubr.f32.mxu0 0.0
        %1730 = vmatmul.mubr.f32.gmra.mrb[0].mxu0 %v1612
        %v1731 = vpop.f32.mrb[0].mxu0
        %v1732 = vadd.f32 0.0, %v1731
        %v1733 = vpop.f32.mrb[0].mxu0
        %1734 = vmatprep.mubr.f32.mxu0 0.0
        %1735 = vmatmul.mubr.f32.gmra.mrb[0].mxu0 %v1613
        %v1736 = vpop.f32.mrb[0].mxu0
        %v1737 = vadd.f32 0.0, %v1736
        %v1738 = vpop.f32.mrb[0].mxu0
        %1739 = vmatprep.mubr.f32.mxu0 0.0
        %1740 = vmatmul.mubr.f32.gmra.mrb[0].mxu0 %v1614
        %v1741 = vpop.f32.mrb[0].mxu0
        %v1742 = vadd.f32 0.0, %v1741
        %v1743 = vpop.f32.mrb[0].mxu0
        %1744 = vmatprep.mubr.f32.mxu0 0.0
        %1745 = vmatmul.mubr.f32.gmra.mrb[0].mxu0 %v1615
        %v1746 = vpop.f32.mrb[0].mxu0
        %v1747 = vadd.f32 0.0, %v1746
        %v1748 = vpop.f32.mrb[0].mxu0
        %1749 = vmatprep.mubr.f32.mxu0 0.0
        %1750 = vmatmul.mubr.f32.gmra.mrb[0].mxu0 %v1616
        %v1751 = vpop.f32.mrb[0].mxu0
        %v1752 = vadd.f32 0.0, %v1751
        %v1753 = vpop.f32.mrb[0].mxu0
        %1754 = vmatprep.mubr.f32.mxu0 0.0
        %1755 = vmatmul.mubr.f32.gmra.mrb[0].mxu0 %v1617
        %v1756 = vpop.f32.mrb[0].mxu0
        %v1757 = vadd.f32 0.0, %v1756
        %v1758 = vpop.f32.mrb[0].mxu0
        %1759 = vmatprep.mubr.f32.mxu0 0.0
        %1760 = vmatmul.mubr.f32.gmra.mrb[0].mxu0 %v1618
        %v1761 = vpop.f32.mrb[0].mxu0
        %v1762 = vadd.f32 0.0, %v1761
        %v1763 = vpop.f32.mrb[0].mxu0
        %1764 = vmatprep.mubr.f32.mxu0 0.0
        %1765 = vmatmul.mubr.f32.gmra.mrb[0].mxu0 %v1619
        %v1766 = vpop.f32.mrb[0].mxu0
        %v1767 = vadd.f32 0.0, %v1766
        %v1768 = vpop.f32.mrb[0].mxu0
        %1769 = vmatprep.mubr.f32.mxu0 0.0
        %1770 = vmatmul.mubr.f32.gmra.mrb[0].mxu0 %v1620
        %v1771 = vpop.f32.mrb[0].mxu0
        %v1772 = vadd.f32 0.0, %v1771
        %v1773 = vpop.f32.mrb[0].mxu0
        %1774 = vmatprep.mubr.f32.mxu0 0.0
        %1775 = vmatmul.mubr.f32.gmra.mrb[0].mxu0 %v1621
        %v1776 = vpop.f32.mrb[0].mxu0
        %v1777 = vadd.f32 0.0, %v1776
        %v1778 = vpop.f32.mrb[0].mxu0
        %1779 = vmatprep.mubr.f32.mxu0 0.0
        %1780 = vmatmul.mubr.f32.gmra.mrb[0].mxu0 %v1622
        %v1781 = vpop.f32.mrb[0].mxu0
        %v1782 = vadd.f32 0.0, %v1781
        %v1783 = vpop.f32.mrb[0].mxu0
        %1784 = vmatprep.mubr.f32.mxu0 0.0
        %1785 = vmatmul.mubr.f32.gmra.mrb[0].mxu0 %v1623
        %v1786 = vpop.f32.mrb[0].mxu0
        %v1787 = vadd.f32 0.0, %v1786
        %v1788 = vpop.f32.mrb[0].mxu0
        %1789 = vmatprep.mubr.f32.mxu0 0.0
        %1790 = vmatmul.mubr.f32.gmra.mrb[0].mxu0 %v1624
        %v1791 = vpop.f32.mrb[0].mxu0
        %v1792 = vadd.f32 0.0, %v1791
        %v1793 = vpop.f32.mrb[0].mxu0
        %1794 = vmatprep.mubr.f32.mxu0 0.0
        %1795 = vmatmul.mubr.f32.gmra.mrb[0].mxu0 %v1625
        %v1796 = vpop.f32.mrb[0].mxu0
        %v1797 = vadd.f32 0.0, %v1796
        %v1798 = vpop.f32.mrb[0].mxu0
        %1799 = vmatprep.mubr.f32.mxu0 0.0
        %1800 = vmatmul.mubr.f32.gmra.mrb[0].mxu0 %v1626
        %v1801 = vpop.f32.mrb[0].mxu0
        %v1802 = vadd.f32 0.0, %v1801
        %v1803 = vpop.f32.mrb[0].mxu0
        %1804 = vmatprep.mubr.f32.mxu0 0.0
        %1805 = vmatmul.mubr.f32.gmra.mrb[0].mxu0 %v1627
        %v1806 = vpop.f32.mrb[0].mxu0
        %v1807 = vadd.f32 0.0, %v1806
        %v1808 = vpop.f32.mrb[0].mxu0
        %1809 = vdwg.mxu0
        %v1810 = vadd.f32 %v1588, %v1712
        %v1811 = vadd.f32 %v1589, %v1717
        %v1812 = vadd.f32 %v1590, %v1722
        %v1813 = vadd.f32 %v1591, %v1727
        %v1814 = vadd.f32 %v1592, %v1732
        %v1815 = vadd.f32 %v1593, %v1737
        %v1816 = vadd.f32 %v1594, %v1742
        %v1817 = vadd.f32 %v1595, %v1747
        %v1818 = vadd.f32 %v1596, %v1752
        %v1819 = vadd.f32 %v1597, %v1757
        %v1820 = vadd.f32 %v1598, %v1762
        %v1821 = vadd.f32 %v1599, %v1767
        %v1822 = vadd.f32 %v1600, %v1772
        %v1823 = vadd.f32 %v1601, %v1777
        %v1824 = vadd.f32 %v1602, %v1782
        %v1825 = vadd.f32 %v1603, %v1787
        %v1826 = vadd.f32 %v1604, %v1792
        %v1827 = vadd.f32 %v1605, %v1797
        %v1828 = vadd.f32 %v1606, %v1802
        %v1829 = vadd.f32 %v1607, %v1807
        %v1830 = vld [vmem:[%s431] sm:$0xff]
        %v1831 = vld [vmem:[%s431 + $0x8] sm:$0xff]
        %v1832 = vld [vmem:[%s431 + $0x18] sm:$0xff]
        %v1833 = vld [vmem:[%s431 + $0x20] sm:$0xff]
        %v1834 = vld [vmem:[%s431 + $0x30] sm:$0xff]
        %v1835 = vld [vmem:[%s431 + $0x38] sm:$0xff]
        %v1836 = vld [vmem:[%s431 + $0x48] sm:$0xff]
        %v1837 = vld [vmem:[%s431 + $0x50] sm:$0xff]
        %v1838 = vld [vmem:[%s431 + $0x60] sm:$0xff]
        %v1839 = vld [vmem:[%s431 + $0x68] sm:$0xff]
        %v1840 = vld [vmem:[%s431 + $0x78] sm:$0xff]
        %v1841 = vld [vmem:[%s431 + $0x80] sm:$0xff]
        %v1842 = vld [vmem:[%s431 + $0x90] sm:$0xff]
        %v1843 = vld [vmem:[%s431 + $0x98] sm:$0xff]
        %v1844 = vld [vmem:[%s431 + $0xa8] sm:$0xff]
        %v1845 = vld [vmem:[%s431 + $0xb0] sm:$0xff]
        %v1846 = vld [vmem:[%s431 + $0xc0] sm:$0xff]
        %v1847 = vld [vmem:[%s431 + $0xc8] sm:$0xff]
        %v1848 = vld [vmem:[%s431 + $0xd8] sm:$0xff]
        %v1849 = vld [vmem:[%s431 + $0xe0] sm:$0xff]
        %s1850 = scalar_lea.vmem %s2, 768
        %v1851 = vld [vmem:[%s1850] sm:$0xff]
        %v1852 = vld [vmem:[%s1850 + $0x8] sm:$0xff]
        %v1853 = vld [vmem:[%s1850 + $0x10] sm:$0xff]
        %v1854 = vld [vmem:[%s1850 + $0x18] sm:$0xff]
        %v1855 = vld [vmem:[%s1850 + $0x20] sm:$0xff]
        %v1856 = vld [vmem:[%s1850 + $0x28] sm:$0xff]
        %v1857 = vld [vmem:[%s1850 + $0x30] sm:$0xff]
        %v1858 = vld [vmem:[%s1850 + $0x38] sm:$0xff]
        %v1859 = vld [vmem:[%s1850 + $0x40] sm:$0xff]
        %v1860 = vld [vmem:[%s1850 + $0x48] sm:$0xff]
        %v1861 = vld [vmem:[%s1850 + $0x50] sm:$0xff]
        %v1862 = vld [vmem:[%s1850 + $0x58] sm:$0xff]
        %v1863 = vld [vmem:[%s1850 + $0x60] sm:$0xff]
        %v1864 = vld [vmem:[%s1850 + $0x68] sm:$0xff]
        %v1865 = vld [vmem:[%s1850 + $0x70] sm:$0xff]
        %v1866 = vld [vmem:[%s1850 + $0x78] sm:$0xff]
        %1867 = vmatprep.subr.mxu0 0.0
        %1868 = vmatpush1.msra.mxu0 %v1851
        %1869 = vmatprep.subr.mxu0 0.0
        %1870 = vmatpush1.msra.mxu0 %v1852
        %1871 = vmatprep.subr.mxu0 0.0
        %1872 = vmatpush1.msra.mxu0 %v1853
        %1873 = vmatprep.subr.mxu0 0.0
        %1874 = vmatpush1.msra.mxu0 %v1854
        %1875 = vmatprep.subr.mxu0 0.0
        %1876 = vmatpush1.msra.mxu0 %v1855
        %1877 = vmatprep.subr.mxu0 0.0
        %1878 = vmatpush1.msra.mxu0 %v1856
        %1879 = vmatprep.subr.mxu0 0.0
        %1880 = vmatpush1.msra.mxu0 %v1857
        %1881 = vmatprep.subr.mxu0 0.0
        %1882 = vmatpush1.msra.mxu0 %v1858
        %1883 = vmatprep.subr.mxu0 0.0
        %1884 = vmatpush1.msra.mxu0 %v1859
        %1885 = vmatprep.subr.mxu0 0.0
        %1886 = vmatpush1.msra.mxu0 %v1860
        %1887 = vmatprep.subr.mxu0 0.0
        %1888 = vmatpush1.msra.mxu0 %v1861
        %1889 = vmatprep.subr.mxu0 0.0
        %1890 = vmatpush1.msra.mxu0 %v1862
        %1891 = vmatprep.subr.mxu0 0.0
        %1892 = vmatpush1.msra.mxu0 %v1863
        %1893 = vmatprep.subr.mxu0 0.0
        %1894 = vmatpush1.msra.mxu0 %v1864
        %1895 = vmatprep.subr.mxu0 0.0
        %1896 = vmatpush1.msra.mxu0 %v1865
        %1897 = vmatprep.subr.mxu0 0.0
        %1898 = vmatpush1.msra.mxu0 %v1866
        %1899 = vmatprep.subr.mxu0 0.0
        %1900 = vmatpush1.msra.mxu0 0.0
        %1901 = vmatprep.subr.mxu0 0.0
        %1902 = vmatpush1.msra.mxu0 0.0
        %1903 = vmatprep.subr.mxu0 0.0
        %1904 = vmatpush1.msra.mxu0 0.0
        %1905 = vmatprep.subr.mxu0 0.0
        %1906 = vmatpush1.msra.mxu0 0.0
        %1907 = vmatprep.subr.mxu0 0.0
        %1908 = vmatpush1.msra.mxu0 0.0
        %1909 = vmatprep.subr.mxu0 0.0
        %1910 = vmatpush1.msra.mxu0 0.0
        %1911 = vmatprep.subr.mxu0 0.0
        %1912 = vmatpush1.msra.mxu0 0.0
        %1913 = vmatprep.subr.mxu0 0.0
        %1914 = vmatpush1.msra.mxu0 0.0
        %1915 = vmatprep.subr.mxu0 0.0
        %1916 = vmatpush1.msra.mxu0 0.0
        %1917 = vmatprep.subr.mxu0 0.0
        %1918 = vmatpush1.msra.mxu0 0.0
        %1919 = vmatprep.subr.mxu0 0.0
        %1920 = vmatpush1.msra.mxu0 0.0
        %1921 = vmatprep.subr.mxu0 0.0
        %1922 = vmatpush1.msra.mxu0 0.0
        %1923 = vmatprep.subr.mxu0 0.0
        %1924 = vmatpush1.msra.mxu0 0.0
        %1925 = vmatprep.subr.mxu0 0.0
        %1926 = vmatpush1.msra.mxu0 0.0
        %1927 = vmatprep.subr.mxu0 0.0
        %1928 = vmatpush1.msra.mxu0 0.0
        %1929 = vmatprep.subr.mxu0 0.0
        %1930 = vmatpush1.msra.mxu0 0.0
        %1931 = vmatprep.mubr.f32.mxu0 0.0
        %1932 = vmatmul.mubr.f32.gmra.mrb[0].mxu0 %v1830
        %v1933 = vpop.f32.mrb[0].mxu0
        %v1934 = vadd.f32 0.0, %v1933
        %v1935 = vpop.f32.mrb[0].mxu0
        %1936 = vmatprep.mubr.f32.mxu0 0.0
        %1937 = vmatmul.mubr.f32.gmra.mrb[0].mxu0 %v1831
        %v1938 = vpop.f32.mrb[0].mxu0
        %v1939 = vadd.f32 0.0, %v1938
        %v1940 = vpop.f32.mrb[0].mxu0
        %1941 = vmatprep.mubr.f32.mxu0 0.0
        %1942 = vmatmul.mubr.f32.gmra.mrb[0].mxu0 %v1832
        %v1943 = vpop.f32.mrb[0].mxu0
        %v1944 = vadd.f32 0.0, %v1943
        %v1945 = vpop.f32.mrb[0].mxu0
        %1946 = vmatprep.mubr.f32.mxu0 0.0
        %1947 = vmatmul.mubr.f32.gmra.mrb[0].mxu0 %v1833
        %v1948 = vpop.f32.mrb[0].mxu0
        %v1949 = vadd.f32 0.0, %v1948
        %v1950 = vpop.f32.mrb[0].mxu0
        %1951 = vmatprep.mubr.f32.mxu0 0.0
        %1952 = vmatmul.mubr.f32.gmra.mrb[0].mxu0 %v1834
        %v1953 = vpop.f32.mrb[0].mxu0
        %v1954 = vadd.f32 0.0, %v1953
        %v1955 = vpop.f32.mrb[0].mxu0
        %1956 = vmatprep.mubr.f32.mxu0 0.0
        %1957 = vmatmul.mubr.f32.gmra.mrb[0].mxu0 %v1835
        %v1958 = vpop.f32.mrb[0].mxu0
        %v1959 = vadd.f32 0.0, %v1958
        %v1960 = vpop.f32.mrb[0].mxu0
        %1961 = vmatprep.mubr.f32.mxu0 0.0
        %1962 = vmatmul.mubr.f32.gmra.mrb[0].mxu0 %v1836
        %v1963 = vpop.f32.mrb[0].mxu0
        %v1964 = vadd.f32 0.0, %v1963
        %v1965 = vpop.f32.mrb[0].mxu0
        %1966 = vmatprep.mubr.f32.mxu0 0.0
        %1967 = vmatmul.mubr.f32.gmra.mrb[0].mxu0 %v1837
        %v1968 = vpop.f32.mrb[0].mxu0
        %v1969 = vadd.f32 0.0, %v1968
        %v1970 = vpop.f32.mrb[0].mxu0
        %1971 = vmatprep.mubr.f32.mxu0 0.0
        %1972 = vmatmul.mubr.f32.gmra.mrb[0].mxu0 %v1838
        %v1973 = vpop.f32.mrb[0].mxu0
        %v1974 = vadd.f32 0.0, %v1973
        %v1975 = vpop.f32.mrb[0].mxu0
        %1976 = vmatprep.mubr.f32.mxu0 0.0
        %1977 = vmatmul.mubr.f32.gmra.mrb[0].mxu0 %v1839
        %v1978 = vpop.f32.mrb[0].mxu0
        %v1979 = vadd.f32 0.0, %v1978
        %v1980 = vpop.f32.mrb[0].mxu0
        %1981 = vmatprep.mubr.f32.mxu0 0.0
        %1982 = vmatmul.mubr.f32.gmra.mrb[0].mxu0 %v1840
        %v1983 = vpop.f32.mrb[0].mxu0
        %v1984 = vadd.f32 0.0, %v1983
        %v1985 = vpop.f32.mrb[0].mxu0
        %1986 = vmatprep.mubr.f32.mxu0 0.0
        %1987 = vmatmul.mubr.f32.gmra.mrb[0].mxu0 %v1841
        %v1988 = vpop.f32.mrb[0].mxu0
        %v1989 = vadd.f32 0.0, %v1988
        %v1990 = vpop.f32.mrb[0].mxu0
        %1991 = vmatprep.mubr.f32.mxu0 0.0
        %1992 = vmatmul.mubr.f32.gmra.mrb[0].mxu0 %v1842
        %v1993 = vpop.f32.mrb[0].mxu0
        %v1994 = vadd.f32 0.0, %v1993
        %v1995 = vpop.f32.mrb[0].mxu0
        %1996 = vmatprep.mubr.f32.mxu0 0.0
        %1997 = vmatmul.mubr.f32.gmra.mrb[0].mxu0 %v1843
        %v1998 = vpop.f32.mrb[0].mxu0
        %v1999 = vadd.f32 0.0, %v1998
        %v2000 = vpop.f32.mrb[0].mxu0
        %2001 = vmatprep.mubr.f32.mxu0 0.0
        %2002 = vmatmul.mubr.f32.gmra.mrb[0].mxu0 %v1844
        %v2003 = vpop.f32.mrb[0].mxu0
        %v2004 = vadd.f32 0.0, %v2003
        %v2005 = vpop.f32.mrb[0].mxu0
        %2006 = vmatprep.mubr.f32.mxu0 0.0
        %2007 = vmatmul.mubr.f32.gmra.mrb[0].mxu0 %v1845
        %v2008 = vpop.f32.mrb[0].mxu0
        %v2009 = vadd.f32 0.0, %v2008
        %v2010 = vpop.f32.mrb[0].mxu0
        %2011 = vmatprep.mubr.f32.mxu0 0.0
        %2012 = vmatmul.mubr.f32.gmra.mrb[0].mxu0 %v1846
        %v2013 = vpop.f32.mrb[0].mxu0
        %v2014 = vadd.f32 0.0, %v2013
        %v2015 = vpop.f32.mrb[0].mxu0
        %2016 = vmatprep.mubr.f32.mxu0 0.0
        %2017 = vmatmul.mubr.f32.gmra.mrb[0].mxu0 %v1847
        %v2018 = vpop.f32.mrb[0].mxu0
        %v2019 = vadd.f32 0.0, %v2018
        %v2020 = vpop.f32.mrb[0].mxu0
        %2021 = vmatprep.mubr.f32.mxu0 0.0
        %2022 = vmatmul.mubr.f32.gmra.mrb[0].mxu0 %v1848
        %v2023 = vpop.f32.mrb[0].mxu0
        %v2024 = vadd.f32 0.0, %v2023
        %v2025 = vpop.f32.mrb[0].mxu0
        %2026 = vmatprep.mubr.f32.mxu0 0.0
        %2027 = vmatmul.mubr.f32.gmra.mrb[0].mxu0 %v1849
        %v2028 = vpop.f32.mrb[0].mxu0
        %v2029 = vadd.f32 0.0, %v2028
        %v2030 = vpop.f32.mrb[0].mxu0
        %2031 = vdwg.mxu0
        %v2032 = vadd.f32 %v1810, %v1934
        %v2033 = vadd.f32 %v1811, %v1939
        %v2034 = vadd.f32 %v1812, %v1944
        %v2035 = vadd.f32 %v1813, %v1949
        %v2036 = vadd.f32 %v1814, %v1954
        %v2037 = vadd.f32 %v1815, %v1959
        %v2038 = vadd.f32 %v1816, %v1964
        %v2039 = vadd.f32 %v1817, %v1969
        %v2040 = vadd.f32 %v1818, %v1974
        %v2041 = vadd.f32 %v1819, %v1979
        %v2042 = vadd.f32 %v1820, %v1984
        %v2043 = vadd.f32 %v1821, %v1989
        %v2044 = vadd.f32 %v1822, %v1994
        %v2045 = vadd.f32 %v1823, %v1999
        %v2046 = vadd.f32 %v1824, %v2004
        %v2047 = vadd.f32 %v1825, %v2009
        %v2048 = vadd.f32 %v1826, %v2014
        %v2049 = vadd.f32 %v1827, %v2019
        %v2050 = vadd.f32 %v1828, %v2024
        %v2051 = vadd.f32 %v1829, %v2029
        %v2052 = vld [vmem:[%s431 + $0x1] sm:$0xff]
        %v2053 = vld [vmem:[%s431 + $0x9] sm:$0xff]
        %v2054 = vld [vmem:[%s431 + $0x19] sm:$0xff]
        %v2055 = vld [vmem:[%s431 + $0x21] sm:$0xff]
        %v2056 = vld [vmem:[%s431 + $0x31] sm:$0xff]
        %v2057 = vld [vmem:[%s431 + $0x39] sm:$0xff]
        %v2058 = vld [vmem:[%s431 + $0x49] sm:$0xff]
        %v2059 = vld [vmem:[%s431 + $0x51] sm:$0xff]
        %v2060 = vld [vmem:[%s431 + $0x61] sm:$0xff]
        %v2061 = vld [vmem:[%s431 + $0x69] sm:$0xff]
        %v2062 = vld [vmem:[%s431 + $0x79] sm:$0xff]
        %v2063 = vld [vmem:[%s431 + $0x81] sm:$0xff]
        %v2064 = vld [vmem:[%s431 + $0x91] sm:$0xff]
        %v2065 = vld [vmem:[%s431 + $0x99] sm:$0xff]
        %v2066 = vld [vmem:[%s431 + $0xa9] sm:$0xff]
        %v2067 = vld [vmem:[%s431 + $0xb1] sm:$0xff]
        %v2068 = vld [vmem:[%s431 + $0xc1] sm:$0xff]
        %v2069 = vld [vmem:[%s431 + $0xc9] sm:$0xff]
        %v2070 = vld [vmem:[%s431 + $0xd9] sm:$0xff]
        %v2071 = vld [vmem:[%s431 + $0xe1] sm:$0xff]
        %s2072 = scalar_lea.vmem %s2, 896
        %v2073 = vld [vmem:[%s2072] sm:$0xff]
        %v2074 = vld [vmem:[%s2072 + $0x8] sm:$0xff]
        %v2075 = vld [vmem:[%s2072 + $0x10] sm:$0xff]
        %v2076 = vld [vmem:[%s2072 + $0x18] sm:$0xff]
        %v2077 = vld [vmem:[%s2072 + $0x20] sm:$0xff]
        %v2078 = vld [vmem:[%s2072 + $0x28] sm:$0xff]
        %v2079 = vld [vmem:[%s2072 + $0x30] sm:$0xff]
        %v2080 = vld [vmem:[%s2072 + $0x38] sm:$0xff]
        %v2081 = vld [vmem:[%s2072 + $0x40] sm:$0xff]
        %v2082 = vld [vmem:[%s2072 + $0x48] sm:$0xff]
        %v2083 = vld [vmem:[%s2072 + $0x50] sm:$0xff]
        %v2084 = vld [vmem:[%s2072 + $0x58] sm:$0xff]
        %v2085 = vld [vmem:[%s2072 + $0x60] sm:$0xff]
        %v2086 = vld [vmem:[%s2072 + $0x68] sm:$0xff]
        %v2087 = vld [vmem:[%s2072 + $0x70] sm:$0xff]
        %v2088 = vld [vmem:[%s2072 + $0x78] sm:$0xff]
        %2089 = vmatprep.subr.mxu0 0.0
        %2090 = vmatpush1.msra.mxu0 %v2073
        %2091 = vmatprep.subr.mxu0 0.0
        %2092 = vmatpush1.msra.mxu0 %v2074
        %2093 = vmatprep.subr.mxu0 0.0
        %2094 = vmatpush1.msra.mxu0 %v2075
        %2095 = vmatprep.subr.mxu0 0.0
        %2096 = vmatpush1.msra.mxu0 %v2076
        %2097 = vmatprep.subr.mxu0 0.0
        %2098 = vmatpush1.msra.mxu0 %v2077
        %2099 = vmatprep.subr.mxu0 0.0
        %2100 = vmatpush1.msra.mxu0 %v2078
        %2101 = vmatprep.subr.mxu0 0.0
        %2102 = vmatpush1.msra.mxu0 %v2079
        %2103 = vmatprep.subr.mxu0 0.0
        %2104 = vmatpush1.msra.mxu0 %v2080
        %2105 = vmatprep.subr.mxu0 0.0
        %2106 = vmatpush1.msra.mxu0 %v2081
        %2107 = vmatprep.subr.mxu0 0.0
        %2108 = vmatpush1.msra.mxu0 %v2082
        %2109 = vmatprep.subr.mxu0 0.0
        %2110 = vmatpush1.msra.mxu0 %v2083
        %2111 = vmatprep.subr.mxu0 0.0
        %2112 = vmatpush1.msra.mxu0 %v2084
        %2113 = vmatprep.subr.mxu0 0.0
        %2114 = vmatpush1.msra.mxu0 %v2085
        %2115 = vmatprep.subr.mxu0 0.0
        %2116 = vmatpush1.msra.mxu0 %v2086
        %2117 = vmatprep.subr.mxu0 0.0
        %2118 = vmatpush1.msra.mxu0 %v2087
        %2119 = vmatprep.subr.mxu0 0.0
        %2120 = vmatpush1.msra.mxu0 %v2088
        %2121 = vmatprep.subr.mxu0 0.0
        %2122 = vmatpush1.msra.mxu0 0.0
        %2123 = vmatprep.subr.mxu0 0.0
        %2124 = vmatpush1.msra.mxu0 0.0
        %2125 = vmatprep.subr.mxu0 0.0
        %2126 = vmatpush1.msra.mxu0 0.0
        %2127 = vmatprep.subr.mxu0 0.0
        %2128 = vmatpush1.msra.mxu0 0.0
        %2129 = vmatprep.subr.mxu0 0.0
        %2130 = vmatpush1.msra.mxu0 0.0
        %2131 = vmatprep.subr.mxu0 0.0
        %2132 = vmatpush1.msra.mxu0 0.0
        %2133 = vmatprep.subr.mxu0 0.0
        %2134 = vmatpush1.msra.mxu0 0.0
        %2135 = vmatprep.subr.mxu0 0.0
        %2136 = vmatpush1.msra.mxu0 0.0
        %2137 = vmatprep.subr.mxu0 0.0
        %2138 = vmatpush1.msra.mxu0 0.0
        %2139 = vmatprep.subr.mxu0 0.0
        %2140 = vmatpush1.msra.mxu0 0.0
        %2141 = vmatprep.subr.mxu0 0.0
        %2142 = vmatpush1.msra.mxu0 0.0
        %2143 = vmatprep.subr.mxu0 0.0
        %2144 = vmatpush1.msra.mxu0 0.0
        %2145 = vmatprep.subr.mxu0 0.0
        %2146 = vmatpush1.msra.mxu0 0.0
        %2147 = vmatprep.subr.mxu0 0.0
        %2148 = vmatpush1.msra.mxu0 0.0
        %2149 = vmatprep.subr.mxu0 0.0
        %2150 = vmatpush1.msra.mxu0 0.0
        %2151 = vmatprep.subr.mxu0 0.0
        %2152 = vmatpush1.msra.mxu0 0.0
        %2153 = vmatprep.mubr.f32.mxu0 0.0
        %2154 = vmatmul.mubr.f32.gmra.mrb[0].mxu0 %v2052
        %v2155 = vpop.f32.mrb[0].mxu0
        %v2156 = vadd.f32 0.0, %v2155
        %v2157 = vpop.f32.mrb[0].mxu0
        %2158 = vmatprep.mubr.f32.mxu0 0.0
        %2159 = vmatmul.mubr.f32.gmra.mrb[0].mxu0 %v2053
        %v2160 = vpop.f32.mrb[0].mxu0
        %v2161 = vadd.f32 0.0, %v2160
        %v2162 = vpop.f32.mrb[0].mxu0
        %2163 = vmatprep.mubr.f32.mxu0 0.0
        %2164 = vmatmul.mubr.f32.gmra.mrb[0].mxu0 %v2054
        %v2165 = vpop.f32.mrb[0].mxu0
        %v2166 = vadd.f32 0.0, %v2165
        %v2167 = vpop.f32.mrb[0].mxu0
        %2168 = vmatprep.mubr.f32.mxu0 0.0
        %2169 = vmatmul.mubr.f32.gmra.mrb[0].mxu0 %v2055
        %v2170 = vpop.f32.mrb[0].mxu0
        %v2171 = vadd.f32 0.0, %v2170
        %v2172 = vpop.f32.mrb[0].mxu0
        %2173 = vmatprep.mubr.f32.mxu0 0.0
        %2174 = vmatmul.mubr.f32.gmra.mrb[0].mxu0 %v2056
        %v2175 = vpop.f32.mrb[0].mxu0
        %v2176 = vadd.f32 0.0, %v2175
        %v2177 = vpop.f32.mrb[0].mxu0
        %2178 = vmatprep.mubr.f32.mxu0 0.0
        %2179 = vmatmul.mubr.f32.gmra.mrb[0].mxu0 %v2057
        %v2180 = vpop.f32.mrb[0].mxu0
        %v2181 = vadd.f32 0.0, %v2180
        %v2182 = vpop.f32.mrb[0].mxu0
        %2183 = vmatprep.mubr.f32.mxu0 0.0
        %2184 = vmatmul.mubr.f32.gmra.mrb[0].mxu0 %v2058
        %v2185 = vpop.f32.mrb[0].mxu0
        %v2186 = vadd.f32 0.0, %v2185
        %v2187 = vpop.f32.mrb[0].mxu0
        %2188 = vmatprep.mubr.f32.mxu0 0.0
        %2189 = vmatmul.mubr.f32.gmra.mrb[0].mxu0 %v2059
        %v2190 = vpop.f32.mrb[0].mxu0
        %v2191 = vadd.f32 0.0, %v2190
        %v2192 = vpop.f32.mrb[0].mxu0
        %2193 = vmatprep.mubr.f32.mxu0 0.0
        %2194 = vmatmul.mubr.f32.gmra.mrb[0].mxu0 %v2060
        %v2195 = vpop.f32.mrb[0].mxu0
        %v2196 = vadd.f32 0.0, %v2195
        %v2197 = vpop.f32.mrb[0].mxu0
        %2198 = vmatprep.mubr.f32.mxu0 0.0
        %2199 = vmatmul.mubr.f32.gmra.mrb[0].mxu0 %v2061
        %v2200 = vpop.f32.mrb[0].mxu0
        %v2201 = vadd.f32 0.0, %v2200
        %v2202 = vpop.f32.mrb[0].mxu0
        %2203 = vmatprep.mubr.f32.mxu0 0.0
        %2204 = vmatmul.mubr.f32.gmra.mrb[0].mxu0 %v2062
        %v2205 = vpop.f32.mrb[0].mxu0
        %v2206 = vadd.f32 0.0, %v2205
        %v2207 = vpop.f32.mrb[0].mxu0
        %2208 = vmatprep.mubr.f32.mxu0 0.0
        %2209 = vmatmul.mubr.f32.gmra.mrb[0].mxu0 %v2063
        %v2210 = vpop.f32.mrb[0].mxu0
        %v2211 = vadd.f32 0.0, %v2210
        %v2212 = vpop.f32.mrb[0].mxu0
        %2213 = vmatprep.mubr.f32.mxu0 0.0
        %2214 = vmatmul.mubr.f32.gmra.mrb[0].mxu0 %v2064
        %v2215 = vpop.f32.mrb[0].mxu0
        %v2216 = vadd.f32 0.0, %v2215
        %v2217 = vpop.f32.mrb[0].mxu0
        %2218 = vmatprep.mubr.f32.mxu0 0.0
        %2219 = vmatmul.mubr.f32.gmra.mrb[0].mxu0 %v2065
        %v2220 = vpop.f32.mrb[0].mxu0
        %v2221 = vadd.f32 0.0, %v2220
        %v2222 = vpop.f32.mrb[0].mxu0
        %2223 = vmatprep.mubr.f32.mxu0 0.0
        %2224 = vmatmul.mubr.f32.gmra.mrb[0].mxu0 %v2066
        %v2225 = vpop.f32.mrb[0].mxu0
        %v2226 = vadd.f32 0.0, %v2225
        %v2227 = vpop.f32.mrb[0].mxu0
        %2228 = vmatprep.mubr.f32.mxu0 0.0
        %2229 = vmatmul.mubr.f32.gmra.mrb[0].mxu0 %v2067
        %v2230 = vpop.f32.mrb[0].mxu0
        %v2231 = vadd.f32 0.0, %v2230
        %v2232 = vpop.f32.mrb[0].mxu0
        %2233 = vmatprep.mubr.f32.mxu0 0.0
        %2234 = vmatmul.mubr.f32.gmra.mrb[0].mxu0 %v2068
        %v2235 = vpop.f32.mrb[0].mxu0
        %v2236 = vadd.f32 0.0, %v2235
        %v2237 = vpop.f32.mrb[0].mxu0
        %2238 = vmatprep.mubr.f32.mxu0 0.0
        %2239 = vmatmul.mubr.f32.gmra.mrb[0].mxu0 %v2069
        %v2240 = vpop.f32.mrb[0].mxu0
        %v2241 = vadd.f32 0.0, %v2240
        %v2242 = vpop.f32.mrb[0].mxu0
        %2243 = vmatprep.mubr.f32.mxu0 0.0
        %2244 = vmatmul.mubr.f32.gmra.mrb[0].mxu0 %v2070
        %v2245 = vpop.f32.mrb[0].mxu0
        %v2246 = vadd.f32 0.0, %v2245
        %v2247 = vpop.f32.mrb[0].mxu0
        %2248 = vmatprep.mubr.f32.mxu0 0.0
        %2249 = vmatmul.mubr.f32.gmra.mrb[0].mxu0 %v2071
        %v2250 = vpop.f32.mrb[0].mxu0
        %v2251 = vadd.f32 0.0, %v2250
        %v2252 = vpop.f32.mrb[0].mxu0
        %2253 = vdwg.mxu0
        %v2254 = vadd.f32 %v2032, %v2156
        %v2255 = vadd.f32 %v2033, %v2161
        %v2256 = vadd.f32 %v2034, %v2166
        %v2257 = vadd.f32 %v2035, %v2171
        %v2258 = vadd.f32 %v2036, %v2176
        %v2259 = vadd.f32 %v2037, %v2181
        %v2260 = vadd.f32 %v2038, %v2186
        %v2261 = vadd.f32 %v2039, %v2191
        %v2262 = vadd.f32 %v2040, %v2196
        %v2263 = vadd.f32 %v2041, %v2201
        %v2264 = vadd.f32 %v2042, %v2206
        %v2265 = vadd.f32 %v2043, %v2211
        %v2266 = vadd.f32 %v2044, %v2216
        %v2267 = vadd.f32 %v2045, %v2221
        %v2268 = vadd.f32 %v2046, %v2226
        %v2269 = vadd.f32 %v2047, %v2231
        %v2270 = vadd.f32 %v2048, %v2236
        %v2271 = vadd.f32 %v2049, %v2241
        %v2272 = vadd.f32 %v2050, %v2246
        %v2273 = vadd.f32 %v2051, %v2251
        %v2274 = vld [vmem:[%s431 + $0x2] sm:$0xff]
        %v2275 = vld [vmem:[%s431 + $0xa] sm:$0xff]
        %v2276 = vld [vmem:[%s431 + $0x1a] sm:$0xff]
        %v2277 = vld [vmem:[%s431 + $0x22] sm:$0xff]
        %v2278 = vld [vmem:[%s431 + $0x32] sm:$0xff]
        %v2279 = vld [vmem:[%s431 + $0x3a] sm:$0xff]
        %v2280 = vld [vmem:[%s431 + $0x4a] sm:$0xff]
        %v2281 = vld [vmem:[%s431 + $0x52] sm:$0xff]
        %v2282 = vld [vmem:[%s431 + $0x62] sm:$0xff]
        %v2283 = vld [vmem:[%s431 + $0x6a] sm:$0xff]
        %v2284 = vld [vmem:[%s431 + $0x7a] sm:$0xff]
        %v2285 = vld [vmem:[%s431 + $0x82] sm:$0xff]
        %v2286 = vld [vmem:[%s431 + $0x92] sm:$0xff]
        %v2287 = vld [vmem:[%s431 + $0x9a] sm:$0xff]
        %v2288 = vld [vmem:[%s431 + $0xaa] sm:$0xff]
        %v2289 = vld [vmem:[%s431 + $0xb2] sm:$0xff]
        %v2290 = vld [vmem:[%s431 + $0xc2] sm:$0xff]
        %v2291 = vld [vmem:[%s431 + $0xca] sm:$0xff]
        %v2292 = vld [vmem:[%s431 + $0xda] sm:$0xff]
        %v2293 = vld [vmem:[%s431 + $0xe2] sm:$0xff]
        %s2294 = scalar_lea.vmem %s2, 1024
        %v2295 = vld [vmem:[%s2294] sm:$0xff]
        %v2296 = vld [vmem:[%s2294 + $0x8] sm:$0xff]
        %v2297 = vld [vmem:[%s2294 + $0x10] sm:$0xff]
        %v2298 = vld [vmem:[%s2294 + $0x18] sm:$0xff]
        %v2299 = vld [vmem:[%s2294 + $0x20] sm:$0xff]
        %v2300 = vld [vmem:[%s2294 + $0x28] sm:$0xff]
        %v2301 = vld [vmem:[%s2294 + $0x30] sm:$0xff]
        %v2302 = vld [vmem:[%s2294 + $0x38] sm:$0xff]
        %v2303 = vld [vmem:[%s2294 + $0x40] sm:$0xff]
        %v2304 = vld [vmem:[%s2294 + $0x48] sm:$0xff]
        %v2305 = vld [vmem:[%s2294 + $0x50] sm:$0xff]
        %v2306 = vld [vmem:[%s2294 + $0x58] sm:$0xff]
        %v2307 = vld [vmem:[%s2294 + $0x60] sm:$0xff]
        %v2308 = vld [vmem:[%s2294 + $0x68] sm:$0xff]
        %v2309 = vld [vmem:[%s2294 + $0x70] sm:$0xff]
        %v2310 = vld [vmem:[%s2294 + $0x78] sm:$0xff]
        %2311 = vmatprep.subr.mxu0 0.0
        %2312 = vmatpush1.msra.mxu0 %v2295
        %2313 = vmatprep.subr.mxu0 0.0
        %2314 = vmatpush1.msra.mxu0 %v2296
        %2315 = vmatprep.subr.mxu0 0.0
        %2316 = vmatpush1.msra.mxu0 %v2297
        %2317 = vmatprep.subr.mxu0 0.0
        %2318 = vmatpush1.msra.mxu0 %v2298
        %2319 = vmatprep.subr.mxu0 0.0
        %2320 = vmatpush1.msra.mxu0 %v2299
        %2321 = vmatprep.subr.mxu0 0.0
        %2322 = vmatpush1.msra.mxu0 %v2300
        %2323 = vmatprep.subr.mxu0 0.0
        %2324 = vmatpush1.msra.mxu0 %v2301
        %2325 = vmatprep.subr.mxu0 0.0
        %2326 = vmatpush1.msra.mxu0 %v2302
        %2327 = vmatprep.subr.mxu0 0.0
        %2328 = vmatpush1.msra.mxu0 %v2303
        %2329 = vmatprep.subr.mxu0 0.0
        %2330 = vmatpush1.msra.mxu0 %v2304
        %2331 = vmatprep.subr.mxu0 0.0
        %2332 = vmatpush1.msra.mxu0 %v2305
        %2333 = vmatprep.subr.mxu0 0.0
        %2334 = vmatpush1.msra.mxu0 %v2306
        %2335 = vmatprep.subr.mxu0 0.0
        %2336 = vmatpush1.msra.mxu0 %v2307
        %2337 = vmatprep.subr.mxu0 0.0
        %2338 = vmatpush1.msra.mxu0 %v2308
        %2339 = vmatprep.subr.mxu0 0.0
        %2340 = vmatpush1.msra.mxu0 %v2309
        %2341 = vmatprep.subr.mxu0 0.0
        %2342 = vmatpush1.msra.mxu0 %v2310
        %2343 = vmatprep.subr.mxu0 0.0
        %2344 = vmatpush1.msra.mxu0 0.0
        %2345 = vmatprep.subr.mxu0 0.0
        %2346 = vmatpush1.msra.mxu0 0.0
        %2347 = vmatprep.subr.mxu0 0.0
        %2348 = vmatpush1.msra.mxu0 0.0
        %2349 = vmatprep.subr.mxu0 0.0
        %2350 = vmatpush1.msra.mxu0 0.0
        %2351 = vmatprep.subr.mxu0 0.0
        %2352 = vmatpush1.msra.mxu0 0.0
        %2353 = vmatprep.subr.mxu0 0.0
        %2354 = vmatpush1.msra.mxu0 0.0
        %2355 = vmatprep.subr.mxu0 0.0
        %2356 = vmatpush1.msra.mxu0 0.0
        %2357 = vmatprep.subr.mxu0 0.0
        %2358 = vmatpush1.msra.mxu0 0.0
        %2359 = vmatprep.subr.mxu0 0.0
        %2360 = vmatpush1.msra.mxu0 0.0
        %2361 = vmatprep.subr.mxu0 0.0
        %2362 = vmatpush1.msra.mxu0 0.0
        %2363 = vmatprep.subr.mxu0 0.0
        %2364 = vmatpush1.msra.mxu0 0.0
        %2365 = vmatprep.subr.mxu0 0.0
        %2366 = vmatpush1.msra.mxu0 0.0
        %2367 = vmatprep.subr.mxu0 0.0
        %2368 = vmatpush1.msra.mxu0 0.0
        %2369 = vmatprep.subr.mxu0 0.0
        %2370 = vmatpush1.msra.mxu0 0.0
        %2371 = vmatprep.subr.mxu0 0.0
        %2372 = vmatpush1.msra.mxu0 0.0
        %2373 = vmatprep.subr.mxu0 0.0
        %2374 = vmatpush1.msra.mxu0 0.0
        %2375 = vmatprep.mubr.f32.mxu0 0.0
        %2376 = vmatmul.mubr.f32.gmra.mrb[0].mxu0 %v2274
        %v2377 = vpop.f32.mrb[0].mxu0
        %v2378 = vadd.f32 0.0, %v2377
        %v2379 = vpop.f32.mrb[0].mxu0
        %2380 = vmatprep.mubr.f32.mxu0 0.0
        %2381 = vmatmul.mubr.f32.gmra.mrb[0].mxu0 %v2275
        %v2382 = vpop.f32.mrb[0].mxu0
        %v2383 = vadd.f32 0.0, %v2382
        %v2384 = vpop.f32.mrb[0].mxu0
        %2385 = vmatprep.mubr.f32.mxu0 0.0
        %2386 = vmatmul.mubr.f32.gmra.mrb[0].mxu0 %v2276
        %v2387 = vpop.f32.mrb[0].mxu0
        %v2388 = vadd.f32 0.0, %v2387
        %v2389 = vpop.f32.mrb[0].mxu0
        %2390 = vmatprep.mubr.f32.mxu0 0.0
        %2391 = vmatmul.mubr.f32.gmra.mrb[0].mxu0 %v2277
        %v2392 = vpop.f32.mrb[0].mxu0
        %v2393 = vadd.f32 0.0, %v2392
        %v2394 = vpop.f32.mrb[0].mxu0
        %2395 = vmatprep.mubr.f32.mxu0 0.0
        %2396 = vmatmul.mubr.f32.gmra.mrb[0].mxu0 %v2278
        %v2397 = vpop.f32.mrb[0].mxu0
        %v2398 = vadd.f32 0.0, %v2397
        %v2399 = vpop.f32.mrb[0].mxu0
        %2400 = vmatprep.mubr.f32.mxu0 0.0
        %2401 = vmatmul.mubr.f32.gmra.mrb[0].mxu0 %v2279
        %v2402 = vpop.f32.mrb[0].mxu0
        %v2403 = vadd.f32 0.0, %v2402
        %v2404 = vpop.f32.mrb[0].mxu0
        %2405 = vmatprep.mubr.f32.mxu0 0.0
        %2406 = vmatmul.mubr.f32.gmra.mrb[0].mxu0 %v2280
        %v2407 = vpop.f32.mrb[0].mxu0
        %v2408 = vadd.f32 0.0, %v2407
        %v2409 = vpop.f32.mrb[0].mxu0
        %2410 = vmatprep.mubr.f32.mxu0 0.0
        %2411 = vmatmul.mubr.f32.gmra.mrb[0].mxu0 %v2281
        %v2412 = vpop.f32.mrb[0].mxu0
        %v2413 = vadd.f32 0.0, %v2412
        %v2414 = vpop.f32.mrb[0].mxu0
        %2415 = vmatprep.mubr.f32.mxu0 0.0
        %2416 = vmatmul.mubr.f32.gmra.mrb[0].mxu0 %v2282
        %v2417 = vpop.f32.mrb[0].mxu0
        %v2418 = vadd.f32 0.0, %v2417
        %v2419 = vpop.f32.mrb[0].mxu0
        %2420 = vmatprep.mubr.f32.mxu0 0.0
        %2421 = vmatmul.mubr.f32.gmra.mrb[0].mxu0 %v2283
        %v2422 = vpop.f32.mrb[0].mxu0
        %v2423 = vadd.f32 0.0, %v2422
        %v2424 = vpop.f32.mrb[0].mxu0
        %2425 = vmatprep.mubr.f32.mxu0 0.0
        %2426 = vmatmul.mubr.f32.gmra.mrb[0].mxu0 %v2284
        %v2427 = vpop.f32.mrb[0].mxu0
        %v2428 = vadd.f32 0.0, %v2427
        %v2429 = vpop.f32.mrb[0].mxu0
        %2430 = vmatprep.mubr.f32.mxu0 0.0
        %2431 = vmatmul.mubr.f32.gmra.mrb[0].mxu0 %v2285
        %v2432 = vpop.f32.mrb[0].mxu0
        %v2433 = vadd.f32 0.0, %v2432
        %v2434 = vpop.f32.mrb[0].mxu0
        %2435 = vmatprep.mubr.f32.mxu0 0.0
        %2436 = vmatmul.mubr.f32.gmra.mrb[0].mxu0 %v2286
        %v2437 = vpop.f32.mrb[0].mxu0
        %v2438 = vadd.f32 0.0, %v2437
        %v2439 = vpop.f32.mrb[0].mxu0
        %2440 = vmatprep.mubr.f32.mxu0 0.0
        %2441 = vmatmul.mubr.f32.gmra.mrb[0].mxu0 %v2287
        %v2442 = vpop.f32.mrb[0].mxu0
        %v2443 = vadd.f32 0.0, %v2442
        %v2444 = vpop.f32.mrb[0].mxu0
        %2445 = vmatprep.mubr.f32.mxu0 0.0
        %2446 = vmatmul.mubr.f32.gmra.mrb[0].mxu0 %v2288
        %v2447 = vpop.f32.mrb[0].mxu0
        %v2448 = vadd.f32 0.0, %v2447
        %v2449 = vpop.f32.mrb[0].mxu0
        %2450 = vmatprep.mubr.f32.mxu0 0.0
        %2451 = vmatmul.mubr.f32.gmra.mrb[0].mxu0 %v2289
        %v2452 = vpop.f32.mrb[0].mxu0
        %v2453 = vadd.f32 0.0, %v2452
        %v2454 = vpop.f32.mrb[0].mxu0
        %2455 = vmatprep.mubr.f32.mxu0 0.0
        %2456 = vmatmul.mubr.f32.gmra.mrb[0].mxu0 %v2290
        %v2457 = vpop.f32.mrb[0].mxu0
        %v2458 = vadd.f32 0.0, %v2457
        %v2459 = vpop.f32.mrb[0].mxu0
        %2460 = vmatprep.mubr.f32.mxu0 0.0
        %2461 = vmatmul.mubr.f32.gmra.mrb[0].mxu0 %v2291
        %v2462 = vpop.f32.mrb[0].mxu0
        %v2463 = vadd.f32 0.0, %v2462
        %v2464 = vpop.f32.mrb[0].mxu0
        %2465 = vmatprep.mubr.f32.mxu0 0.0
        %2466 = vmatmul.mubr.f32.gmra.mrb[0].mxu0 %v2292
        %v2467 = vpop.f32.mrb[0].mxu0
        %v2468 = vadd.f32 0.0, %v2467
        %v2469 = vpop.f32.mrb[0].mxu0
        %2470 = vmatprep.mubr.f32.mxu0 0.0
        %2471 = vmatmul.mubr.f32.gmra.mrb[0].mxu0 %v2293
        %v2472 = vpop.f32.mrb[0].mxu0
        %v2473 = vadd.f32 0.0, %v2472
        %v2474 = vpop.f32.mrb[0].mxu0
        %2475 = vdwg.mxu0
        %v2476 = vadd.f32 %v2254, %v2378
        %v2477 = vadd.f32 %v2255, %v2383
        %v2478 = vadd.f32 %v2256, %v2388
        %v2479 = vadd.f32 %v2257, %v2393
        %v2480 = vadd.f32 %v2258, %v2398
        %v2481 = vadd.f32 %v2259, %v2403
        %v2482 = vadd.f32 %v2260, %v2408
        %v2483 = vadd.f32 %v2261, %v2413
        %v2484 = vadd.f32 %v2262, %v2418
        %v2485 = vadd.f32 %v2263, %v2423
        %v2486 = vadd.f32 %v2264, %v2428
        %v2487 = vadd.f32 %v2265, %v2433
        %v2488 = vadd.f32 %v2266, %v2438
        %v2489 = vadd.f32 %v2267, %v2443
        %v2490 = vadd.f32 %v2268, %v2448
        %v2491 = vadd.f32 %v2269, %v2453
        %v2492 = vadd.f32 %v2270, %v2458
        %v2493 = vadd.f32 %v2271, %v2463
        %v2494 = vadd.f32 %v2272, %v2468
        %v2495 = vadd.f32 %v2273, %v2473
        %v2496 = vld [vmem:[%s3] sm:$0x1]
        %v2498 = vlaneseq
        %v2499 = vshrl.u32 %v2498, 7
        %v2500 = vsub.s32 0, %v2499
        %v2501 = vrot.slane %v2496, %v2500
        %v2503 = vadd.f32 %v2476, %v2501
        %v2504 = vadd.f32 %v2477, %v2501
        %v2505 = vadd.f32 %v2478, %v2501
        %v2506 = vadd.f32 %v2479, %v2501
        %v2507 = vadd.f32 %v2480, %v2501
        %v2508 = vadd.f32 %v2481, %v2501
        %v2509 = vadd.f32 %v2482, %v2501
        %v2510 = vadd.f32 %v2483, %v2501
        %v2511 = vadd.f32 %v2484, %v2501
        %v2512 = vadd.f32 %v2485, %v2501
        %v2513 = vadd.f32 %v2486, %v2501
        %v2514 = vadd.f32 %v2487, %v2501
        %v2515 = vadd.f32 %v2488, %v2501
        %v2516 = vadd.f32 %v2489, %v2501
        %v2517 = vadd.f32 %v2490, %v2501
        %v2518 = vadd.f32 %v2491, %v2501
        %v2519 = vadd.f32 %v2492, %v2501
        %v2520 = vadd.f32 %v2493, %v2501
        %v2521 = vadd.f32 %v2494, %v2501
        %v2522 = vadd.f32 %v2495, %v2501
        %v2523 = vmax.f32 %v2503, 0.0
        %v2524 = vmax.f32 %v2504, 0.0
        %v2525 = vmax.f32 %v2505, 0.0
        %v2526 = vmax.f32 %v2506, 0.0
        %v2527 = vmax.f32 %v2507, 0.0
        %v2528 = vmax.f32 %v2508, 0.0
        %v2529 = vmax.f32 %v2509, 0.0
        %v2530 = vmax.f32 %v2510, 0.0
        %v2531 = vmax.f32 %v2511, 0.0
        %v2532 = vmax.f32 %v2512, 0.0
        %v2533 = vmax.f32 %v2513, 0.0
        %v2534 = vmax.f32 %v2514, 0.0
        %v2535 = vmax.f32 %v2515, 0.0
        %v2536 = vmax.f32 %v2516, 0.0
        %v2537 = vmax.f32 %v2517, 0.0
        %v2538 = vmax.f32 %v2518, 0.0
        %v2539 = vmax.f32 %v2519, 0.0
        %v2540 = vmax.f32 %v2520, 0.0
        %v2541 = vmax.f32 %v2521, 0.0
        %v2542 = vmax.f32 %v2522, 0.0
        %2543 = vst [vmem:[#allocation4 + $0x1] sm:$0xff] %v2523
        %2544 = vst [vmem:[#allocation4 + $0x9] sm:$0xff] %v2524
        %2545 = vst [vmem:[#allocation4 + $0x19] sm:$0xff] %v2525
        %2546 = vst [vmem:[#allocation4 + $0x21] sm:$0xff] %v2526
        %2547 = vst [vmem:[#allocation4 + $0x31] sm:$0xff] %v2527
        %2548 = vst [vmem:[#allocation4 + $0x39] sm:$0xff] %v2528
        %2549 = vst [vmem:[#allocation4 + $0x49] sm:$0xff] %v2529
        %2550 = vst [vmem:[#allocation4 + $0x51] sm:$0xff] %v2530
        %2551 = vst [vmem:[#allocation4 + $0x61] sm:$0xff] %v2531
        %2552 = vst [vmem:[#allocation4 + $0x69] sm:$0xff] %v2532
        %2553 = vst [vmem:[#allocation4 + $0x79] sm:$0xff] %v2533
        %2554 = vst [vmem:[#allocation4 + $0x81] sm:$0xff] %v2534
        %2555 = vst [vmem:[#allocation4 + $0x91] sm:$0xff] %v2535
        %2556 = vst [vmem:[#allocation4 + $0x99] sm:$0xff] %v2536
        %2557 = vst [vmem:[#allocation4 + $0xa9] sm:$0xff] %v2537
        %2558 = vst [vmem:[#allocation4 + $0xb1] sm:$0xff] %v2538
        %2559 = vst [vmem:[#allocation4 + $0xc1] sm:$0xff] %v2539
        %2560 = vst [vmem:[#allocation4 + $0xc9] sm:$0xff] %v2540
        %2561 = vst [vmem:[#allocation4 + $0xd9] sm:$0xff] %v2541
        %2562 = vst [vmem:[#allocation4 + $0xe1] sm:$0xff] %v2542
        // Predicated region
        $region139: #{tpu_custom_call.1} parent=39 // pred_check
          %p2563 = pneg %p476
        $region140: #{tpu_custom_call.1} parent=39 // pred_check_branch
          %2565 = sbr.rel (%p2563) target = $region142
        $region141: #{tpu_custom_call.1} parent=39 // pred_region
          %2566 = vst [vmem:[#allocation4] sm:$0xff] 0.0
          %2567 = vst [vmem:[#allocation4 + $0x8] sm:$0xff] 0.0
          %2568 = vst [vmem:[#allocation4 + $0x10] sm:$0x3] 0.0
        $region142: #{tpu_custom_call.1} parent=39 // pred_fallthru
          _
        // Predicated region
        $region143: #{tpu_custom_call.1} parent=39 // pred_check
          %p2569 = pneg %p505
        $region144: #{tpu_custom_call.1} parent=39 // pred_check_branch
          %2571 = sbr.rel (%p2569) target = $region146
        $region145: #{tpu_custom_call.1} parent=39 // pred_region
          %s2572 = scalar_lea.vmem [#allocation4], 216
          %2573 = vst [vmem:[%s2572] sm:$0xff] 0.0
          %2574 = vst [vmem:[%s2572 + $0x8] sm:$0xff] 0.0
          %2575 = vst [vmem:[%s2572 + $0x10] sm:$0x3] 0.0
        $region146: #{tpu_custom_call.1} parent=39 // pred_fallthru
          _
        %v2576 = vld [vmem:[#allocation4] sm:$0xff]
        %v2577 = vld [vmem:[#allocation4 + $0x8] sm:$0xff]
        %v2578 = vld [vmem:[#allocation4 + $0x18] sm:$0xff]
        %v2579 = vld [vmem:[#allocation4 + $0x20] sm:$0xff]
        %v2580 = vld [vmem:[#allocation4 + $0x30] sm:$0xff]
        %v2581 = vld [vmem:[#allocation4 + $0x38] sm:$0xff]
        %v2582 = vld [vmem:[#allocation4 + $0x48] sm:$0xff]
        %v2583 = vld [vmem:[#allocation4 + $0x50] sm:$0xff]
        %v2584 = vld [vmem:[#allocation4 + $0x60] sm:$0xff]
        %v2585 = vld [vmem:[#allocation4 + $0x68] sm:$0xff]
        %v2586 = vld [vmem:[#allocation4 + $0x78] sm:$0xff]
        %v2587 = vld [vmem:[#allocation4 + $0x80] sm:$0xff]
        %v2588 = vld [vmem:[#allocation4 + $0x90] sm:$0xff]
        %v2589 = vld [vmem:[#allocation4 + $0x98] sm:$0xff]
        %v2590 = vld [vmem:[#allocation4 + $0xa8] sm:$0xff]
        %v2591 = vld [vmem:[#allocation4 + $0xb0] sm:$0xff]
        %v2592 = vld [vmem:[%s4] sm:$0xff]
        %v2593 = vld [vmem:[%s4 + $0x8] sm:$0xff]
        %v2594 = vld [vmem:[%s4 + $0x10] sm:$0xff]
        %v2595 = vld [vmem:[%s4 + $0x18] sm:$0xff]
        %v2596 = vld [vmem:[%s4 + $0x20] sm:$0xff]
        %v2597 = vld [vmem:[%s4 + $0x28] sm:$0xff]
        %v2598 = vld [vmem:[%s4 + $0x30] sm:$0xff]
        %v2599 = vld [vmem:[%s4 + $0x38] sm:$0xff]
        %v2600 = vld [vmem:[%s4 + $0x40] sm:$0xff]
        %v2601 = vld [vmem:[%s4 + $0x48] sm:$0xff]
        %v2602 = vld [vmem:[%s4 + $0x50] sm:$0xff]
        %v2603 = vld [vmem:[%s4 + $0x58] sm:$0xff]
        %v2604 = vld [vmem:[%s4 + $0x60] sm:$0xff]
        %v2605 = vld [vmem:[%s4 + $0x68] sm:$0xff]
        %v2606 = vld [vmem:[%s4 + $0x70] sm:$0xff]
        %v2607 = vld [vmem:[%s4 + $0x78] sm:$0xff]
        %v2608 = vld [vmem:[#allocation4 + $0x1] sm:$0xff]
        %v2609 = vld [vmem:[#allocation4 + $0x9] sm:$0xff]
        %v2610 = vld [vmem:[#allocation4 + $0x19] sm:$0xff]
        %v2611 = vld [vmem:[#allocation4 + $0x21] sm:$0xff]
        %v2612 = vld [vmem:[#allocation4 + $0x31] sm:$0xff]
        %v2613 = vld [vmem:[#allocation4 + $0x39] sm:$0xff]
        %v2614 = vld [vmem:[#allocation4 + $0x49] sm:$0xff]
        %v2615 = vld [vmem:[#allocation4 + $0x51] sm:$0xff]
        %v2616 = vld [vmem:[#allocation4 + $0x61] sm:$0xff]
        %v2617 = vld [vmem:[#allocation4 + $0x69] sm:$0xff]
        %v2618 = vld [vmem:[#allocation4 + $0x79] sm:$0xff]
        %v2619 = vld [vmem:[#allocation4 + $0x81] sm:$0xff]
        %v2620 = vld [vmem:[#allocation4 + $0x91] sm:$0xff]
        %v2621 = vld [vmem:[#allocation4 + $0x99] sm:$0xff]
        %v2622 = vld [vmem:[#allocation4 + $0xa9] sm:$0xff]
        %v2623 = vld [vmem:[#allocation4 + $0xb1] sm:$0xff]
        %s2624 = scalar_lea.vmem %s4, 128
        %v2625 = vld [vmem:[%s2624] sm:$0xff]
        %v2626 = vld [vmem:[%s2624 + $0x8] sm:$0xff]
        %v2627 = vld [vmem:[%s2624 + $0x10] sm:$0xff]
        %v2628 = vld [vmem:[%s2624 + $0x18] sm:$0xff]
        %v2629 = vld [vmem:[%s2624 + $0x20] sm:$0xff]
        %v2630 = vld [vmem:[%s2624 + $0x28] sm:$0xff]
        %v2631 = vld [vmem:[%s2624 + $0x30] sm:$0xff]
        %v2632 = vld [vmem:[%s2624 + $0x38] sm:$0xff]
        %v2633 = vld [vmem:[%s2624 + $0x40] sm:$0xff]
        %v2634 = vld [vmem:[%s2624 + $0x48] sm:$0xff]
        %v2635 = vld [vmem:[%s2624 + $0x50] sm:$0xff]
        %v2636 = vld [vmem:[%s2624 + $0x58] sm:$0xff]
        %v2637 = vld [vmem:[%s2624 + $0x60] sm:$0xff]
        %v2638 = vld [vmem:[%s2624 + $0x68] sm:$0xff]
        %v2639 = vld [vmem:[%s2624 + $0x70] sm:$0xff]
        %v2640 = vld [vmem:[%s2624 + $0x78] sm:$0xff]
        %2641 = vmatprep.subr.mxu0 0.0
        %2642 = vmatpush1.msra.mxu0 %v2625
        %2643 = vmatprep.subr.mxu0 0.0
        %2644 = vmatpush1.msra.mxu0 %v2626
        %2645 = vmatprep.subr.mxu0 0.0
        %2646 = vmatpush1.msra.mxu0 %v2627
        %2647 = vmatprep.subr.mxu0 0.0
        %2648 = vmatpush1.msra.mxu0 %v2628
        %2649 = vmatprep.subr.mxu0 0.0
        %2650 = vmatpush1.msra.mxu0 %v2629
        %2651 = vmatprep.subr.mxu0 0.0
        %2652 = vmatpush1.msra.mxu0 %v2630
        %2653 = vmatprep.subr.mxu0 0.0
        %2654 = vmatpush1.msra.mxu0 %v2631
        %2655 = vmatprep.subr.mxu0 0.0
        %2656 = vmatpush1.msra.mxu0 %v2632
        %2657 = vmatprep.subr.mxu0 0.0
        %2658 = vmatpush1.msra.mxu0 %v2633
        %2659 = vmatprep.subr.mxu0 0.0
        %2660 = vmatpush1.msra.mxu0 %v2634
        %2661 = vmatprep.subr.mxu0 0.0
        %2662 = vmatpush1.msra.mxu0 %v2635
        %2663 = vmatprep.subr.mxu0 0.0
        %2664 = vmatpush1.msra.mxu0 %v2636
        %2665 = vmatprep.subr.mxu0 0.0
        %2666 = vmatpush1.msra.mxu0 %v2637
        %2667 = vmatprep.subr.mxu0 0.0
        %2668 = vmatpush1.msra.mxu0 %v2638
        %2669 = vmatprep.subr.mxu0 0.0
        %2670 = vmatpush1.msra.mxu0 %v2639
        %2671 = vmatprep.subr.mxu0 0.0
        %2672 = vmatpush1.msra.mxu0 %v2640
        %2673 = vmatprep.subr.mxu0 0.0
        %2674 = vmatpush1.msra.mxu0 0.0
        %2675 = vmatprep.subr.mxu0 0.0
        %2676 = vmatpush1.msra.mxu0 0.0
        %2677 = vmatprep.subr.mxu0 0.0
        %2678 = vmatpush1.msra.mxu0 0.0
        %2679 = vmatprep.subr.mxu0 0.0
        %2680 = vmatpush1.msra.mxu0 0.0
        %2681 = vmatprep.subr.mxu0 0.0
        %2682 = vmatpush1.msra.mxu0 0.0
        %2683 = vmatprep.subr.mxu0 0.0
        %2684 = vmatpush1.msra.mxu0 0.0
        %2685 = vmatprep.subr.mxu0 0.0
        %2686 = vmatpush1.msra.mxu0 0.0
        %2687 = vmatprep.subr.mxu0 0.0
        %2688 = vmatpush1.msra.mxu0 0.0
        %2689 = vmatprep.subr.mxu0 0.0
        %2690 = vmatpush1.msra.mxu0 0.0
        %2691 = vmatprep.subr.mxu0 0.0
        %2692 = vmatpush1.msra.mxu0 0.0
        %2693 = vmatprep.subr.mxu0 0.0
        %2694 = vmatpush1.msra.mxu0 0.0
        %2695 = vmatprep.subr.mxu0 0.0
        %2696 = vmatpush1.msra.mxu0 0.0
        %2697 = vmatprep.subr.mxu0 0.0
        %2698 = vmatpush1.msra.mxu0 0.0
        %2699 = vmatprep.subr.mxu0 0.0
        %2700 = vmatpush1.msra.mxu0 0.0
        %2701 = vmatprep.subr.mxu0 0.0
        %2702 = vmatpush1.msra.mxu0 0.0
        %2703 = vmatprep.subr.mxu0 0.0
        %2704 = vmatpush1.msra.mxu0 0.0
        %2705 = vmatprep.mubr.f32.mxu0 0.0
        %2706 = vmatmul.mubr.f32.gmra.mrb[0].mxu0 %v2608
        %v2707 = vpop.f32.mrb[0].mxu0
        %v2708 = vadd.f32 0.0, %v2707
        %v2709 = vpop.f32.mrb[0].mxu0
        %2710 = vmatprep.mubr.f32.mxu0 0.0
        %2711 = vmatmul.mubr.f32.gmra.mrb[0].mxu0 %v2609
        %v2712 = vpop.f32.mrb[0].mxu0
        %v2713 = vadd.f32 0.0, %v2712
        %v2714 = vpop.f32.mrb[0].mxu0
        %2715 = vmatprep.mubr.f32.mxu0 0.0
        %2716 = vmatmul.mubr.f32.gmra.mrb[0].mxu0 %v2610
        %v2717 = vpop.f32.mrb[0].mxu0
        %v2718 = vadd.f32 0.0, %v2717
        %v2719 = vpop.f32.mrb[0].mxu0
        %2720 = vmatprep.mubr.f32.mxu0 0.0
        %2721 = vmatmul.mubr.f32.gmra.mrb[0].mxu0 %v2611
        %v2722 = vpop.f32.mrb[0].mxu0
        %v2723 = vadd.f32 0.0, %v2722
        %v2724 = vpop.f32.mrb[0].mxu0
        %2725 = vmatprep.mubr.f32.mxu0 0.0
        %2726 = vmatmul.mubr.f32.gmra.mrb[0].mxu0 %v2612
        %v2727 = vpop.f32.mrb[0].mxu0
        %v2728 = vadd.f32 0.0, %v2727
        %v2729 = vpop.f32.mrb[0].mxu0
        %2730 = vmatprep.mubr.f32.mxu0 0.0
        %2731 = vmatmul.mubr.f32.gmra.mrb[0].mxu0 %v2613
        %v2732 = vpop.f32.mrb[0].mxu0
        %v2733 = vadd.f32 0.0, %v2732
        %v2734 = vpop.f32.mrb[0].mxu0
        %2735 = vmatprep.mubr.f32.mxu0 0.0
        %2736 = vmatmul.mubr.f32.gmra.mrb[0].mxu0 %v2614
        %v2737 = vpop.f32.mrb[0].mxu0
        %v2738 = vadd.f32 0.0, %v2737
        %v2739 = vpop.f32.mrb[0].mxu0
        %2740 = vmatprep.mubr.f32.mxu0 0.0
        %2741 = vmatmul.mubr.f32.gmra.mrb[0].mxu0 %v2615
        %v2742 = vpop.f32.mrb[0].mxu0
        %v2743 = vadd.f32 0.0, %v2742
        %v2744 = vpop.f32.mrb[0].mxu0
        %2745 = vmatprep.mubr.f32.mxu0 0.0
        %2746 = vmatmul.mubr.f32.gmra.mrb[0].mxu0 %v2616
        %v2747 = vpop.f32.mrb[0].mxu0
        %v2748 = vadd.f32 0.0, %v2747
        %v2749 = vpop.f32.mrb[0].mxu0
        %2750 = vmatprep.mubr.f32.mxu0 0.0
        %2751 = vmatmul.mubr.f32.gmra.mrb[0].mxu0 %v2617
        %v2752 = vpop.f32.mrb[0].mxu0
        %v2753 = vadd.f32 0.0, %v2752
        %v2754 = vpop.f32.mrb[0].mxu0
        %2755 = vmatprep.mubr.f32.mxu0 0.0
        %2756 = vmatmul.mubr.f32.gmra.mrb[0].mxu0 %v2618
        %v2757 = vpop.f32.mrb[0].mxu0
        %v2758 = vadd.f32 0.0, %v2757
        %v2759 = vpop.f32.mrb[0].mxu0
        %2760 = vmatprep.mubr.f32.mxu0 0.0
        %2761 = vmatmul.mubr.f32.gmra.mrb[0].mxu0 %v2619
        %v2762 = vpop.f32.mrb[0].mxu0
        %v2763 = vadd.f32 0.0, %v2762
        %v2764 = vpop.f32.mrb[0].mxu0
        %2765 = vmatprep.mubr.f32.mxu0 0.0
        %2766 = vmatmul.mubr.f32.gmra.mrb[0].mxu0 %v2620
        %v2767 = vpop.f32.mrb[0].mxu0
        %v2768 = vadd.f32 0.0, %v2767
        %v2769 = vpop.f32.mrb[0].mxu0
        %2770 = vmatprep.mubr.f32.mxu0 0.0
        %2771 = vmatmul.mubr.f32.gmra.mrb[0].mxu0 %v2621
        %v2772 = vpop.f32.mrb[0].mxu0
        %v2773 = vadd.f32 0.0, %v2772
        %v2774 = vpop.f32.mrb[0].mxu0
        %2775 = vmatprep.mubr.f32.mxu0 0.0
        %2776 = vmatmul.mubr.f32.gmra.mrb[0].mxu0 %v2622
        %v2777 = vpop.f32.mrb[0].mxu0
        %v2778 = vadd.f32 0.0, %v2777
        %v2779 = vpop.f32.mrb[0].mxu0
        %2780 = vmatprep.mubr.f32.mxu0 0.0
        %2781 = vmatmul.mubr.f32.gmra.mrb[0].mxu0 %v2623
        %v2782 = vpop.f32.mrb[0].mxu0
        %v2783 = vadd.f32 0.0, %v2782
        %v2784 = vpop.f32.mrb[0].mxu0
        %2785 = vdwg.mxu0
        %2786 = vmatprep.subr.mxu0 0.0
        %2787 = vmatpush1.msra.mxu0 %v2592
        %2788 = vmatprep.subr.mxu0 0.0
        %2789 = vmatpush1.msra.mxu0 %v2593
        %2790 = vmatprep.subr.mxu0 0.0
        %2791 = vmatpush1.msra.mxu0 %v2594
        %2792 = vmatprep.subr.mxu0 0.0
        %2793 = vmatpush1.msra.mxu0 %v2595
        %2794 = vmatprep.subr.mxu0 0.0
        %2795 = vmatpush1.msra.mxu0 %v2596
        %2796 = vmatprep.subr.mxu0 0.0
        %2797 = vmatpush1.msra.mxu0 %v2597
        %2798 = vmatprep.subr.mxu0 0.0
        %2799 = vmatpush1.msra.mxu0 %v2598
        %2800 = vmatprep.subr.mxu0 0.0
        %2801 = vmatpush1.msra.mxu0 %v2599
        %2802 = vmatprep.subr.mxu0 0.0
        %2803 = vmatpush1.msra.mxu0 %v2600
        %2804 = vmatprep.subr.mxu0 0.0
        %2805 = vmatpush1.msra.mxu0 %v2601
        %2806 = vmatprep.subr.mxu0 0.0
        %2807 = vmatpush1.msra.mxu0 %v2602
        %2808 = vmatprep.subr.mxu0 0.0
        %2809 = vmatpush1.msra.mxu0 %v2603
        %2810 = vmatprep.subr.mxu0 0.0
        %2811 = vmatpush1.msra.mxu0 %v2604
        %2812 = vmatprep.subr.mxu0 0.0
        %2813 = vmatpush1.msra.mxu0 %v2605
        %2814 = vmatprep.subr.mxu0 0.0
        %2815 = vmatpush1.msra.mxu0 %v2606
        %2816 = vmatprep.subr.mxu0 0.0
        %2817 = vmatpush1.msra.mxu0 %v2607
        %2818 = vmatprep.subr.mxu0 0.0
        %2819 = vmatpush1.msra.mxu0 0.0
        %2820 = vmatprep.subr.mxu0 0.0
        %2821 = vmatpush1.msra.mxu0 0.0
        %2822 = vmatprep.subr.mxu0 0.0
        %2823 = vmatpush1.msra.mxu0 0.0
        %2824 = vmatprep.subr.mxu0 0.0
        %2825 = vmatpush1.msra.mxu0 0.0
        %2826 = vmatprep.subr.mxu0 0.0
        %2827 = vmatpush1.msra.mxu0 0.0
        %2828 = vmatprep.subr.mxu0 0.0
        %2829 = vmatpush1.msra.mxu0 0.0
        %2830 = vmatprep.subr.mxu0 0.0
        %2831 = vmatpush1.msra.mxu0 0.0
        %2832 = vmatprep.subr.mxu0 0.0
        %2833 = vmatpush1.msra.mxu0 0.0
        %2834 = vmatprep.subr.mxu0 0.0
        %2835 = vmatpush1.msra.mxu0 0.0
        %2836 = vmatprep.subr.mxu0 0.0
        %2837 = vmatpush1.msra.mxu0 0.0
        %2838 = vmatprep.subr.mxu0 0.0
        %2839 = vmatpush1.msra.mxu0 0.0
        %2840 = vmatprep.subr.mxu0 0.0
        %2841 = vmatpush1.msra.mxu0 0.0
        %2842 = vmatprep.subr.mxu0 0.0
        %2843 = vmatpush1.msra.mxu0 0.0
        %2844 = vmatprep.subr.mxu0 0.0
        %2845 = vmatpush1.msra.mxu0 0.0
        %2846 = vmatprep.subr.mxu0 0.0
        %2847 = vmatpush1.msra.mxu0 0.0
        %2848 = vmatprep.subr.mxu0 0.0
        %2849 = vmatpush1.msra.mxu0 0.0
        %2850 = vmatprep.mubr.f32.mxu0 0.0
        %2851 = vmatmul.mubr.f32.gmra.mrb[0].mxu0 %v2576
        %v2852 = vpop.f32.mrb[0].mxu0
        %v2853 = vadd.f32 %v2708, %v2852
        %v2854 = vpop.f32.mrb[0].mxu0
        %2855 = vmatprep.mubr.f32.mxu0 0.0
        %2856 = vmatmul.mubr.f32.gmra.mrb[0].mxu0 %v2577
        %v2857 = vpop.f32.mrb[0].mxu0
        %v2858 = vadd.f32 %v2713, %v2857
        %v2859 = vpop.f32.mrb[0].mxu0
        %2860 = vmatprep.mubr.f32.mxu0 0.0
        %2861 = vmatmul.mubr.f32.gmra.mrb[0].mxu0 %v2578
        %v2862 = vpop.f32.mrb[0].mxu0
        %v2863 = vadd.f32 %v2718, %v2862
        %v2864 = vpop.f32.mrb[0].mxu0
        %2865 = vmatprep.mubr.f32.mxu0 0.0
        %2866 = vmatmul.mubr.f32.gmra.mrb[0].mxu0 %v2579
        %v2867 = vpop.f32.mrb[0].mxu0
        %v2868 = vadd.f32 %v2723, %v2867
        %v2869 = vpop.f32.mrb[0].mxu0
        %2870 = vmatprep.mubr.f32.mxu0 0.0
        %2871 = vmatmul.mubr.f32.gmra.mrb[0].mxu0 %v2580
        %v2872 = vpop.f32.mrb[0].mxu0
        %v2873 = vadd.f32 %v2728, %v2872
        %v2874 = vpop.f32.mrb[0].mxu0
        %2875 = vmatprep.mubr.f32.mxu0 0.0
        %2876 = vmatmul.mubr.f32.gmra.mrb[0].mxu0 %v2581
        %v2877 = vpop.f32.mrb[0].mxu0
        %v2878 = vadd.f32 %v2733, %v2877
        %v2879 = vpop.f32.mrb[0].mxu0
        %2880 = vmatprep.mubr.f32.mxu0 0.0
        %2881 = vmatmul.mubr.f32.gmra.mrb[0].mxu0 %v2582
        %v2882 = vpop.f32.mrb[0].mxu0
        %v2883 = vadd.f32 %v2738, %v2882
        %v2884 = vpop.f32.mrb[0].mxu0
        %2885 = vmatprep.mubr.f32.mxu0 0.0
        %2886 = vmatmul.mubr.f32.gmra.mrb[0].mxu0 %v2583
        %v2887 = vpop.f32.mrb[0].mxu0
        %v2888 = vadd.f32 %v2743, %v2887
        %v2889 = vpop.f32.mrb[0].mxu0
        %2890 = vmatprep.mubr.f32.mxu0 0.0
        %2891 = vmatmul.mubr.f32.gmra.mrb[0].mxu0 %v2584
        %v2892 = vpop.f32.mrb[0].mxu0
        %v2893 = vadd.f32 %v2748, %v2892
        %v2894 = vpop.f32.mrb[0].mxu0
        %2895 = vmatprep.mubr.f32.mxu0 0.0
        %2896 = vmatmul.mubr.f32.gmra.mrb[0].mxu0 %v2585
        %v2897 = vpop.f32.mrb[0].mxu0
        %v2898 = vadd.f32 %v2753, %v2897
        %v2899 = vpop.f32.mrb[0].mxu0
        %2900 = vmatprep.mubr.f32.mxu0 0.0
        %2901 = vmatmul.mubr.f32.gmra.mrb[0].mxu0 %v2586
        %v2902 = vpop.f32.mrb[0].mxu0
        %v2903 = vadd.f32 %v2758, %v2902
        %v2904 = vpop.f32.mrb[0].mxu0
        %2905 = vmatprep.mubr.f32.mxu0 0.0
        %2906 = vmatmul.mubr.f32.gmra.mrb[0].mxu0 %v2587
        %v2907 = vpop.f32.mrb[0].mxu0
        %v2908 = vadd.f32 %v2763, %v2907
        %v2909 = vpop.f32.mrb[0].mxu0
        %2910 = vmatprep.mubr.f32.mxu0 0.0
        %2911 = vmatmul.mubr.f32.gmra.mrb[0].mxu0 %v2588
        %v2912 = vpop.f32.mrb[0].mxu0
        %v2913 = vadd.f32 %v2768, %v2912
        %v2914 = vpop.f32.mrb[0].mxu0
        %2915 = vmatprep.mubr.f32.mxu0 0.0
        %2916 = vmatmul.mubr.f32.gmra.mrb[0].mxu0 %v2589
        %v2917 = vpop.f32.mrb[0].mxu0
        %v2918 = vadd.f32 %v2773, %v2917
        %v2919 = vpop.f32.mrb[0].mxu0
        %2920 = vmatprep.mubr.f32.mxu0 0.0
        %2921 = vmatmul.mubr.f32.gmra.mrb[0].mxu0 %v2590
        %v2922 = vpop.f32.mrb[0].mxu0
        %v2923 = vadd.f32 %v2778, %v2922
        %v2924 = vpop.f32.mrb[0].mxu0
        %2925 = vmatprep.mubr.f32.mxu0 0.0
        %2926 = vmatmul.mubr.f32.gmra.mrb[0].mxu0 %v2591
        %v2927 = vpop.f32.mrb[0].mxu0
        %v2928 = vadd.f32 %v2783, %v2927
        %v2929 = vpop.f32.mrb[0].mxu0
        %2930 = vdwg.mxu0
        %v2931 = vld [vmem:[#allocation4 + $0x2] sm:$0xff]
        %v2932 = vld [vmem:[#allocation4 + $0xa] sm:$0xff]
        %v2933 = vld [vmem:[#allocation4 + $0x1a] sm:$0xff]
        %v2934 = vld [vmem:[#allocation4 + $0x22] sm:$0xff]
        %v2935 = vld [vmem:[#allocation4 + $0x32] sm:$0xff]
        %v2936 = vld [vmem:[#allocation4 + $0x3a] sm:$0xff]
        %v2937 = vld [vmem:[#allocation4 + $0x4a] sm:$0xff]
        %v2938 = vld [vmem:[#allocation4 + $0x52] sm:$0xff]
        %v2939 = vld [vmem:[#allocation4 + $0x62] sm:$0xff]
        %v2940 = vld [vmem:[#allocation4 + $0x6a] sm:$0xff]
        %v2941 = vld [vmem:[#allocation4 + $0x7a] sm:$0xff]
        %v2942 = vld [vmem:[#allocation4 + $0x82] sm:$0xff]
        %v2943 = vld [vmem:[#allocation4 + $0x92] sm:$0xff]
        %v2944 = vld [vmem:[#allocation4 + $0x9a] sm:$0xff]
        %v2945 = vld [vmem:[#allocation4 + $0xaa] sm:$0xff]
        %v2946 = vld [vmem:[#allocation4 + $0xb2] sm:$0xff]
        %s2947 = scalar_lea.vmem %s4, 256
        %v2948 = vld [vmem:[%s2947] sm:$0xff]
        %v2949 = vld [vmem:[%s2947 + $0x8] sm:$0xff]
        %v2950 = vld [vmem:[%s2947 + $0x10] sm:$0xff]
        %v2951 = vld [vmem:[%s2947 + $0x18] sm:$0xff]
        %v2952 = vld [vmem:[%s2947 + $0x20] sm:$0xff]
        %v2953 = vld [vmem:[%s2947 + $0x28] sm:$0xff]
        %v2954 = vld [vmem:[%s2947 + $0x30] sm:$0xff]
        %v2955 = vld [vmem:[%s2947 + $0x38] sm:$0xff]
        %v2956 = vld [vmem:[%s2947 + $0x40] sm:$0xff]
        %v2957 = vld [vmem:[%s2947 + $0x48] sm:$0xff]
        %v2958 = vld [vmem:[%s2947 + $0x50] sm:$0xff]
        %v2959 = vld [vmem:[%s2947 + $0x58] sm:$0xff]
        %v2960 = vld [vmem:[%s2947 + $0x60] sm:$0xff]
        %v2961 = vld [vmem:[%s2947 + $0x68] sm:$0xff]
        %v2962 = vld [vmem:[%s2947 + $0x70] sm:$0xff]
        %v2963 = vld [vmem:[%s2947 + $0x78] sm:$0xff]
        %2964 = vmatprep.subr.mxu0 0.0
        %2965 = vmatpush1.msra.mxu0 %v2948
        %2966 = vmatprep.subr.mxu0 0.0
        %2967 = vmatpush1.msra.mxu0 %v2949
        %2968 = vmatprep.subr.mxu0 0.0
        %2969 = vmatpush1.msra.mxu0 %v2950
        %2970 = vmatprep.subr.mxu0 0.0
        %2971 = vmatpush1.msra.mxu0 %v2951
        %2972 = vmatprep.subr.mxu0 0.0
        %2973 = vmatpush1.msra.mxu0 %v2952
        %2974 = vmatprep.subr.mxu0 0.0
        %2975 = vmatpush1.msra.mxu0 %v2953
        %2976 = vmatprep.subr.mxu0 0.0
        %2977 = vmatpush1.msra.mxu0 %v2954
        %2978 = vmatprep.subr.mxu0 0.0
        %2979 = vmatpush1.msra.mxu0 %v2955
        %2980 = vmatprep.subr.mxu0 0.0
        %2981 = vmatpush1.msra.mxu0 %v2956
        %2982 = vmatprep.subr.mxu0 0.0
        %2983 = vmatpush1.msra.mxu0 %v2957
        %2984 = vmatprep.subr.mxu0 0.0
        %2985 = vmatpush1.msra.mxu0 %v2958
        %2986 = vmatprep.subr.mxu0 0.0
        %2987 = vmatpush1.msra.mxu0 %v2959
        %2988 = vmatprep.subr.mxu0 0.0
        %2989 = vmatpush1.msra.mxu0 %v2960
        %2990 = vmatprep.subr.mxu0 0.0
        %2991 = vmatpush1.msra.mxu0 %v2961
        %2992 = vmatprep.subr.mxu0 0.0
        %2993 = vmatpush1.msra.mxu0 %v2962
        %2994 = vmatprep.subr.mxu0 0.0
        %2995 = vmatpush1.msra.mxu0 %v2963
        %2996 = vmatprep.subr.mxu0 0.0
        %2997 = vmatpush1.msra.mxu0 0.0
        %2998 = vmatprep.subr.mxu0 0.0
        %2999 = vmatpush1.msra.mxu0 0.0
        %3000 = vmatprep.subr.mxu0 0.0
        %3001 = vmatpush1.msra.mxu0 0.0
        %3002 = vmatprep.subr.mxu0 0.0
        %3003 = vmatpush1.msra.mxu0 0.0
        %3004 = vmatprep.subr.mxu0 0.0
        %3005 = vmatpush1.msra.mxu0 0.0
        %3006 = vmatprep.subr.mxu0 0.0
        %3007 = vmatpush1.msra.mxu0 0.0
        %3008 = vmatprep.subr.mxu0 0.0
        %3009 = vmatpush1.msra.mxu0 0.0
        %3010 = vmatprep.subr.mxu0 0.0
        %3011 = vmatpush1.msra.mxu0 0.0
        %3012 = vmatprep.subr.mxu0 0.0
        %3013 = vmatpush1.msra.mxu0 0.0
        %3014 = vmatprep.subr.mxu0 0.0
        %3015 = vmatpush1.msra.mxu0 0.0
        %3016 = vmatprep.subr.mxu0 0.0
        %3017 = vmatpush1.msra.mxu0 0.0
        %3018 = vmatprep.subr.mxu0 0.0
        %3019 = vmatpush1.msra.mxu0 0.0
        %3020 = vmatprep.subr.mxu0 0.0
        %3021 = vmatpush1.msra.mxu0 0.0
        %3022 = vmatprep.subr.mxu0 0.0
        %3023 = vmatpush1.msra.mxu0 0.0
        %3024 = vmatprep.subr.mxu0 0.0
        %3025 = vmatpush1.msra.mxu0 0.0
        %3026 = vmatprep.subr.mxu0 0.0
        %3027 = vmatpush1.msra.mxu0 0.0
        %3028 = vmatprep.mubr.f32.mxu0 0.0
        %3029 = vmatmul.mubr.f32.gmra.mrb[0].mxu0 %v2931
        %v3030 = vpop.f32.mrb[0].mxu0
        %v3031 = vadd.f32 0.0, %v3030
        %v3032 = vpop.f32.mrb[0].mxu0
        %3033 = vmatprep.mubr.f32.mxu0 0.0
        %3034 = vmatmul.mubr.f32.gmra.mrb[0].mxu0 %v2932
        %v3035 = vpop.f32.mrb[0].mxu0
        %v3036 = vadd.f32 0.0, %v3035
        %v3037 = vpop.f32.mrb[0].mxu0
        %3038 = vmatprep.mubr.f32.mxu0 0.0
        %3039 = vmatmul.mubr.f32.gmra.mrb[0].mxu0 %v2933
        %v3040 = vpop.f32.mrb[0].mxu0
        %v3041 = vadd.f32 0.0, %v3040
        %v3042 = vpop.f32.mrb[0].mxu0
        %3043 = vmatprep.mubr.f32.mxu0 0.0
        %3044 = vmatmul.mubr.f32.gmra.mrb[0].mxu0 %v2934
        %v3045 = vpop.f32.mrb[0].mxu0
        %v3046 = vadd.f32 0.0, %v3045
        %v3047 = vpop.f32.mrb[0].mxu0
        %3048 = vmatprep.mubr.f32.mxu0 0.0
        %3049 = vmatmul.mubr.f32.gmra.mrb[0].mxu0 %v2935
        %v3050 = vpop.f32.mrb[0].mxu0
        %v3051 = vadd.f32 0.0, %v3050
        %v3052 = vpop.f32.mrb[0].mxu0
        %3053 = vmatprep.mubr.f32.mxu0 0.0
        %3054 = vmatmul.mubr.f32.gmra.mrb[0].mxu0 %v2936
        %v3055 = vpop.f32.mrb[0].mxu0
        %v3056 = vadd.f32 0.0, %v3055
        %v3057 = vpop.f32.mrb[0].mxu0
        %3058 = vmatprep.mubr.f32.mxu0 0.0
        %3059 = vmatmul.mubr.f32.gmra.mrb[0].mxu0 %v2937
        %v3060 = vpop.f32.mrb[0].mxu0
        %v3061 = vadd.f32 0.0, %v3060
        %v3062 = vpop.f32.mrb[0].mxu0
        %3063 = vmatprep.mubr.f32.mxu0 0.0
        %3064 = vmatmul.mubr.f32.gmra.mrb[0].mxu0 %v2938
        %v3065 = vpop.f32.mrb[0].mxu0
        %v3066 = vadd.f32 0.0, %v3065
        %v3067 = vpop.f32.mrb[0].mxu0
        %3068 = vmatprep.mubr.f32.mxu0 0.0
        %3069 = vmatmul.mubr.f32.gmra.mrb[0].mxu0 %v2939
        %v3070 = vpop.f32.mrb[0].mxu0
        %v3071 = vadd.f32 0.0, %v3070
        %v3072 = vpop.f32.mrb[0].mxu0
        %3073 = vmatprep.mubr.f32.mxu0 0.0
        %3074 = vmatmul.mubr.f32.gmra.mrb[0].mxu0 %v2940
        %v3075 = vpop.f32.mrb[0].mxu0
        %v3076 = vadd.f32 0.0, %v3075
        %v3077 = vpop.f32.mrb[0].mxu0
        %3078 = vmatprep.mubr.f32.mxu0 0.0
        %3079 = vmatmul.mubr.f32.gmra.mrb[0].mxu0 %v2941
        %v3080 = vpop.f32.mrb[0].mxu0
        %v3081 = vadd.f32 0.0, %v3080
        %v3082 = vpop.f32.mrb[0].mxu0
        %3083 = vmatprep.mubr.f32.mxu0 0.0
        %3084 = vmatmul.mubr.f32.gmra.mrb[0].mxu0 %v2942
        %v3085 = vpop.f32.mrb[0].mxu0
        %v3086 = vadd.f32 0.0, %v3085
        %v3087 = vpop.f32.mrb[0].mxu0
        %3088 = vmatprep.mubr.f32.mxu0 0.0
        %3089 = vmatmul.mubr.f32.gmra.mrb[0].mxu0 %v2943
        %v3090 = vpop.f32.mrb[0].mxu0
        %v3091 = vadd.f32 0.0, %v3090
        %v3092 = vpop.f32.mrb[0].mxu0
        %3093 = vmatprep.mubr.f32.mxu0 0.0
        %3094 = vmatmul.mubr.f32.gmra.mrb[0].mxu0 %v2944
        %v3095 = vpop.f32.mrb[0].mxu0
        %v3096 = vadd.f32 0.0, %v3095
        %v3097 = vpop.f32.mrb[0].mxu0
        %3098 = vmatprep.mubr.f32.mxu0 0.0
        %3099 = vmatmul.mubr.f32.gmra.mrb[0].mxu0 %v2945
        %v3100 = vpop.f32.mrb[0].mxu0
        %v3101 = vadd.f32 0.0, %v3100
        %v3102 = vpop.f32.mrb[0].mxu0
        %3103 = vmatprep.mubr.f32.mxu0 0.0
        %3104 = vmatmul.mubr.f32.gmra.mrb[0].mxu0 %v2946
        %v3105 = vpop.f32.mrb[0].mxu0
        %v3106 = vadd.f32 0.0, %v3105
        %v3107 = vpop.f32.mrb[0].mxu0
        %3108 = vdwg.mxu0
        %v3109 = vadd.f32 %v2853, %v3031
        %v3110 = vadd.f32 %v2858, %v3036
        %v3111 = vadd.f32 %v2863, %v3041
        %v3112 = vadd.f32 %v2868, %v3046
        %v3113 = vadd.f32 %v2873, %v3051
        %v3114 = vadd.f32 %v2878, %v3056
        %v3115 = vadd.f32 %v2883, %v3061
        %v3116 = vadd.f32 %v2888, %v3066
        %v3117 = vadd.f32 %v2893, %v3071
        %v3118 = vadd.f32 %v2898, %v3076
        %v3119 = vadd.f32 %v2903, %v3081
        %v3120 = vadd.f32 %v2908, %v3086
        %v3121 = vadd.f32 %v2913, %v3091
        %v3122 = vadd.f32 %v2918, %v3096
        %v3123 = vadd.f32 %v2923, %v3101
        %v3124 = vadd.f32 %v2928, %v3106
        %s3125 = scalar_lea.vmem [#allocation4], 24
        %v3126 = vld [vmem:[%s3125] sm:$0xff]
        %v3127 = vld [vmem:[%s3125 + $0x8] sm:$0xff]
        %v3128 = vld [vmem:[%s3125 + $0x18] sm:$0xff]
        %v3129 = vld [vmem:[%s3125 + $0x20] sm:$0xff]
        %v3130 = vld [vmem:[%s3125 + $0x30] sm:$0xff]
        %v3131 = vld [vmem:[%s3125 + $0x38] sm:$0xff]
        %v3132 = vld [vmem:[%s3125 + $0x48] sm:$0xff]
        %v3133 = vld [vmem:[%s3125 + $0x50] sm:$0xff]
        %v3134 = vld [vmem:[%s3125 + $0x60] sm:$0xff]
        %v3135 = vld [vmem:[%s3125 + $0x68] sm:$0xff]
        %v3136 = vld [vmem:[%s3125 + $0x78] sm:$0xff]
        %v3137 = vld [vmem:[%s3125 + $0x80] sm:$0xff]
        %v3138 = vld [vmem:[%s3125 + $0x90] sm:$0xff]
        %v3139 = vld [vmem:[%s3125 + $0x98] sm:$0xff]
        %v3140 = vld [vmem:[%s3125 + $0xa8] sm:$0xff]
        %v3141 = vld [vmem:[%s3125 + $0xb0] sm:$0xff]
        %s3142 = scalar_lea.vmem %s4, 384
        %v3143 = vld [vmem:[%s3142] sm:$0xff]
        %v3144 = vld [vmem:[%s3142 + $0x8] sm:$0xff]
        %v3145 = vld [vmem:[%s3142 + $0x10] sm:$0xff]
        %v3146 = vld [vmem:[%s3142 + $0x18] sm:$0xff]
        %v3147 = vld [vmem:[%s3142 + $0x20] sm:$0xff]
        %v3148 = vld [vmem:[%s3142 + $0x28] sm:$0xff]
        %v3149 = vld [vmem:[%s3142 + $0x30] sm:$0xff]
        %v3150 = vld [vmem:[%s3142 + $0x38] sm:$0xff]
        %v3151 = vld [vmem:[%s3142 + $0x40] sm:$0xff]
        %v3152 = vld [vmem:[%s3142 + $0x48] sm:$0xff]
        %v3153 = vld [vmem:[%s3142 + $0x50] sm:$0xff]
        %v3154 = vld [vmem:[%s3142 + $0x58] sm:$0xff]
        %v3155 = vld [vmem:[%s3142 + $0x60] sm:$0xff]
        %v3156 = vld [vmem:[%s3142 + $0x68] sm:$0xff]
        %v3157 = vld [vmem:[%s3142 + $0x70] sm:$0xff]
        %v3158 = vld [vmem:[%s3142 + $0x78] sm:$0xff]
        %3159 = vmatprep.subr.mxu0 0.0
        %3160 = vmatpush1.msra.mxu0 %v3143
        %3161 = vmatprep.subr.mxu0 0.0
        %3162 = vmatpush1.msra.mxu0 %v3144
        %3163 = vmatprep.subr.mxu0 0.0
        %3164 = vmatpush1.msra.mxu0 %v3145
        %3165 = vmatprep.subr.mxu0 0.0
        %3166 = vmatpush1.msra.mxu0 %v3146
        %3167 = vmatprep.subr.mxu0 0.0
        %3168 = vmatpush1.msra.mxu0 %v3147
        %3169 = vmatprep.subr.mxu0 0.0
        %3170 = vmatpush1.msra.mxu0 %v3148
        %3171 = vmatprep.subr.mxu0 0.0
        %3172 = vmatpush1.msra.mxu0 %v3149
        %3173 = vmatprep.subr.mxu0 0.0
        %3174 = vmatpush1.msra.mxu0 %v3150
        %3175 = vmatprep.subr.mxu0 0.0
        %3176 = vmatpush1.msra.mxu0 %v3151
        %3177 = vmatprep.subr.mxu0 0.0
        %3178 = vmatpush1.msra.mxu0 %v3152
        %3179 = vmatprep.subr.mxu0 0.0
        %3180 = vmatpush1.msra.mxu0 %v3153
        %3181 = vmatprep.subr.mxu0 0.0
        %3182 = vmatpush1.msra.mxu0 %v3154
        %3183 = vmatprep.subr.mxu0 0.0
        %3184 = vmatpush1.msra.mxu0 %v3155
        %3185 = vmatprep.subr.mxu0 0.0
        %3186 = vmatpush1.msra.mxu0 %v3156
        %3187 = vmatprep.subr.mxu0 0.0
        %3188 = vmatpush1.msra.mxu0 %v3157
        %3189 = vmatprep.subr.mxu0 0.0
        %3190 = vmatpush1.msra.mxu0 %v3158
        %3191 = vmatprep.subr.mxu0 0.0
        %3192 = vmatpush1.msra.mxu0 0.0
        %3193 = vmatprep.subr.mxu0 0.0
        %3194 = vmatpush1.msra.mxu0 0.0
        %3195 = vmatprep.subr.mxu0 0.0
        %3196 = vmatpush1.msra.mxu0 0.0
        %3197 = vmatprep.subr.mxu0 0.0
        %3198 = vmatpush1.msra.mxu0 0.0
        %3199 = vmatprep.subr.mxu0 0.0
        %3200 = vmatpush1.msra.mxu0 0.0
        %3201 = vmatprep.subr.mxu0 0.0
        %3202 = vmatpush1.msra.mxu0 0.0
        %3203 = vmatprep.subr.mxu0 0.0
        %3204 = vmatpush1.msra.mxu0 0.0
        %3205 = vmatprep.subr.mxu0 0.0
        %3206 = vmatpush1.msra.mxu0 0.0
        %3207 = vmatprep.subr.mxu0 0.0
        %3208 = vmatpush1.msra.mxu0 0.0
        %3209 = vmatprep.subr.mxu0 0.0
        %3210 = vmatpush1.msra.mxu0 0.0
        %3211 = vmatprep.subr.mxu0 0.0
        %3212 = vmatpush1.msra.mxu0 0.0
        %3213 = vmatprep.subr.mxu0 0.0
        %3214 = vmatpush1.msra.mxu0 0.0
        %3215 = vmatprep.subr.mxu0 0.0
        %3216 = vmatpush1.msra.mxu0 0.0
        %3217 = vmatprep.subr.mxu0 0.0
        %3218 = vmatpush1.msra.mxu0 0.0
        %3219 = vmatprep.subr.mxu0 0.0
        %3220 = vmatpush1.msra.mxu0 0.0
        %3221 = vmatprep.subr.mxu0 0.0
        %3222 = vmatpush1.msra.mxu0 0.0
        %3223 = vmatprep.mubr.f32.mxu0 0.0
        %3224 = vmatmul.mubr.f32.gmra.mrb[0].mxu0 %v3126
        %v3225 = vpop.f32.mrb[0].mxu0
        %v3226 = vadd.f32 0.0, %v3225
        %v3227 = vpop.f32.mrb[0].mxu0
        %3228 = vmatprep.mubr.f32.mxu0 0.0
        %3229 = vmatmul.mubr.f32.gmra.mrb[0].mxu0 %v3127
        %v3230 = vpop.f32.mrb[0].mxu0
        %v3231 = vadd.f32 0.0, %v3230
        %v3232 = vpop.f32.mrb[0].mxu0
        %3233 = vmatprep.mubr.f32.mxu0 0.0
        %3234 = vmatmul.mubr.f32.gmra.mrb[0].mxu0 %v3128
        %v3235 = vpop.f32.mrb[0].mxu0
        %v3236 = vadd.f32 0.0, %v3235
        %v3237 = vpop.f32.mrb[0].mxu0
        %3238 = vmatprep.mubr.f32.mxu0 0.0
        %3239 = vmatmul.mubr.f32.gmra.mrb[0].mxu0 %v3129
        %v3240 = vpop.f32.mrb[0].mxu0
        %v3241 = vadd.f32 0.0, %v3240
        %v3242 = vpop.f32.mrb[0].mxu0
        %3243 = vmatprep.mubr.f32.mxu0 0.0
        %3244 = vmatmul.mubr.f32.gmra.mrb[0].mxu0 %v3130
        %v3245 = vpop.f32.mrb[0].mxu0
        %v3246 = vadd.f32 0.0, %v3245
        %v3247 = vpop.f32.mrb[0].mxu0
        %3248 = vmatprep.mubr.f32.mxu0 0.0
        %3249 = vmatmul.mubr.f32.gmra.mrb[0].mxu0 %v3131
        %v3250 = vpop.f32.mrb[0].mxu0
        %v3251 = vadd.f32 0.0, %v3250
        %v3252 = vpop.f32.mrb[0].mxu0
        %3253 = vmatprep.mubr.f32.mxu0 0.0
        %3254 = vmatmul.mubr.f32.gmra.mrb[0].mxu0 %v3132
        %v3255 = vpop.f32.mrb[0].mxu0
        %v3256 = vadd.f32 0.0, %v3255
        %v3257 = vpop.f32.mrb[0].mxu0
        %3258 = vmatprep.mubr.f32.mxu0 0.0
        %3259 = vmatmul.mubr.f32.gmra.mrb[0].mxu0 %v3133
        %v3260 = vpop.f32.mrb[0].mxu0
        %v3261 = vadd.f32 0.0, %v3260
        %v3262 = vpop.f32.mrb[0].mxu0
        %3263 = vmatprep.mubr.f32.mxu0 0.0
        %3264 = vmatmul.mubr.f32.gmra.mrb[0].mxu0 %v3134
        %v3265 = vpop.f32.mrb[0].mxu0
        %v3266 = vadd.f32 0.0, %v3265
        %v3267 = vpop.f32.mrb[0].mxu0
        %3268 = vmatprep.mubr.f32.mxu0 0.0
        %3269 = vmatmul.mubr.f32.gmra.mrb[0].mxu0 %v3135
        %v3270 = vpop.f32.mrb[0].mxu0
        %v3271 = vadd.f32 0.0, %v3270
        %v3272 = vpop.f32.mrb[0].mxu0
        %3273 = vmatprep.mubr.f32.mxu0 0.0
        %3274 = vmatmul.mubr.f32.gmra.mrb[0].mxu0 %v3136
        %v3275 = vpop.f32.mrb[0].mxu0
        %v3276 = vadd.f32 0.0, %v3275
        %v3277 = vpop.f32.mrb[0].mxu0
        %3278 = vmatprep.mubr.f32.mxu0 0.0
        %3279 = vmatmul.mubr.f32.gmra.mrb[0].mxu0 %v3137
        %v3280 = vpop.f32.mrb[0].mxu0
        %v3281 = vadd.f32 0.0, %v3280
        %v3282 = vpop.f32.mrb[0].mxu0
        %3283 = vmatprep.mubr.f32.mxu0 0.0
        %3284 = vmatmul.mubr.f32.gmra.mrb[0].mxu0 %v3138
        %v3285 = vpop.f32.mrb[0].mxu0
        %v3286 = vadd.f32 0.0, %v3285
        %v3287 = vpop.f32.mrb[0].mxu0
        %3288 = vmatprep.mubr.f32.mxu0 0.0
        %3289 = vmatmul.mubr.f32.gmra.mrb[0].mxu0 %v3139
        %v3290 = vpop.f32.mrb[0].mxu0
        %v3291 = vadd.f32 0.0, %v3290
        %v3292 = vpop.f32.mrb[0].mxu0
        %3293 = vmatprep.mubr.f32.mxu0 0.0
        %3294 = vmatmul.mubr.f32.gmra.mrb[0].mxu0 %v3140
        %v3295 = vpop.f32.mrb[0].mxu0
        %v3296 = vadd.f32 0.0, %v3295
        %v3297 = vpop.f32.mrb[0].mxu0
        %3298 = vmatprep.mubr.f32.mxu0 0.0
        %3299 = vmatmul.mubr.f32.gmra.mrb[0].mxu0 %v3141
        %v3300 = vpop.f32.mrb[0].mxu0
        %v3301 = vadd.f32 0.0, %v3300
        %v3302 = vpop.f32.mrb[0].mxu0
        %3303 = vdwg.mxu0
        %v3304 = vadd.f32 %v3109, %v3226
        %v3305 = vadd.f32 %v3110, %v3231
        %v3306 = vadd.f32 %v3111, %v3236
        %v3307 = vadd.f32 %v3112, %v3241
        %v3308 = vadd.f32 %v3113, %v3246
        %v3309 = vadd.f32 %v3114, %v3251
        %v3310 = vadd.f32 %v3115, %v3256
        %v3311 = vadd.f32 %v3116, %v3261
        %v3312 = vadd.f32 %v3117, %v3266
        %v3313 = vadd.f32 %v3118, %v3271
        %v3314 = vadd.f32 %v3119, %v3276
        %v3315 = vadd.f32 %v3120, %v3281
        %v3316 = vadd.f32 %v3121, %v3286
        %v3317 = vadd.f32 %v3122, %v3291
        %v3318 = vadd.f32 %v3123, %v3296
        %v3319 = vadd.f32 %v3124, %v3301
        %v3320 = vld [vmem:[%s3125 + $0x1] sm:$0xff]
        %v3321 = vld [vmem:[%s3125 + $0x9] sm:$0xff]
        %v3322 = vld [vmem:[%s3125 + $0x19] sm:$0xff]
        %v3323 = vld [vmem:[%s3125 + $0x21] sm:$0xff]
        %v3324 = vld [vmem:[%s3125 + $0x31] sm:$0xff]
        %v3325 = vld [vmem:[%s3125 + $0x39] sm:$0xff]
        %v3326 = vld [vmem:[%s3125 + $0x49] sm:$0xff]
        %v3327 = vld [vmem:[%s3125 + $0x51] sm:$0xff]
        %v3328 = vld [vmem:[%s3125 + $0x61] sm:$0xff]
        %v3329 = vld [vmem:[%s3125 + $0x69] sm:$0xff]
        %v3330 = vld [vmem:[%s3125 + $0x79] sm:$0xff]
        %v3331 = vld [vmem:[%s3125 + $0x81] sm:$0xff]
        %v3332 = vld [vmem:[%s3125 + $0x91] sm:$0xff]
        %v3333 = vld [vmem:[%s3125 + $0x99] sm:$0xff]
        %v3334 = vld [vmem:[%s3125 + $0xa9] sm:$0xff]
        %v3335 = vld [vmem:[%s3125 + $0xb1] sm:$0xff]
        %s3336 = scalar_lea.vmem %s4, 512
        %v3337 = vld [vmem:[%s3336] sm:$0xff]
        %v3338 = vld [vmem:[%s3336 + $0x8] sm:$0xff]
        %v3339 = vld [vmem:[%s3336 + $0x10] sm:$0xff]
        %v3340 = vld [vmem:[%s3336 + $0x18] sm:$0xff]
        %v3341 = vld [vmem:[%s3336 + $0x20] sm:$0xff]
        %v3342 = vld [vmem:[%s3336 + $0x28] sm:$0xff]
        %v3343 = vld [vmem:[%s3336 + $0x30] sm:$0xff]
        %v3344 = vld [vmem:[%s3336 + $0x38] sm:$0xff]
        %v3345 = vld [vmem:[%s3336 + $0x40] sm:$0xff]
        %v3346 = vld [vmem:[%s3336 + $0x48] sm:$0xff]
        %v3347 = vld [vmem:[%s3336 + $0x50] sm:$0xff]
        %v3348 = vld [vmem:[%s3336 + $0x58] sm:$0xff]
        %v3349 = vld [vmem:[%s3336 + $0x60] sm:$0xff]
        %v3350 = vld [vmem:[%s3336 + $0x68] sm:$0xff]
        %v3351 = vld [vmem:[%s3336 + $0x70] sm:$0xff]
        %v3352 = vld [vmem:[%s3336 + $0x78] sm:$0xff]
        %3353 = vmatprep.subr.mxu0 0.0
        %3354 = vmatpush1.msra.mxu0 %v3337
        %3355 = vmatprep.subr.mxu0 0.0
        %3356 = vmatpush1.msra.mxu0 %v3338
        %3357 = vmatprep.subr.mxu0 0.0
        %3358 = vmatpush1.msra.mxu0 %v3339
        %3359 = vmatprep.subr.mxu0 0.0
        %3360 = vmatpush1.msra.mxu0 %v3340
        %3361 = vmatprep.subr.mxu0 0.0
        %3362 = vmatpush1.msra.mxu0 %v3341
        %3363 = vmatprep.subr.mxu0 0.0
        %3364 = vmatpush1.msra.mxu0 %v3342
        %3365 = vmatprep.subr.mxu0 0.0
        %3366 = vmatpush1.msra.mxu0 %v3343
        %3367 = vmatprep.subr.mxu0 0.0
        %3368 = vmatpush1.msra.mxu0 %v3344
        %3369 = vmatprep.subr.mxu0 0.0
        %3370 = vmatpush1.msra.mxu0 %v3345
        %3371 = vmatprep.subr.mxu0 0.0
        %3372 = vmatpush1.msra.mxu0 %v3346
        %3373 = vmatprep.subr.mxu0 0.0
        %3374 = vmatpush1.msra.mxu0 %v3347
        %3375 = vmatprep.subr.mxu0 0.0
        %3376 = vmatpush1.msra.mxu0 %v3348
        %3377 = vmatprep.subr.mxu0 0.0
        %3378 = vmatpush1.msra.mxu0 %v3349
        %3379 = vmatprep.subr.mxu0 0.0
        %3380 = vmatpush1.msra.mxu0 %v3350
        %3381 = vmatprep.subr.mxu0 0.0
        %3382 = vmatpush1.msra.mxu0 %v3351
        %3383 = vmatprep.subr.mxu0 0.0
        %3384 = vmatpush1.msra.mxu0 %v3352
        %3385 = vmatprep.subr.mxu0 0.0
        %3386 = vmatpush1.msra.mxu0 0.0
        %3387 = vmatprep.subr.mxu0 0.0
        %3388 = vmatpush1.msra.mxu0 0.0
        %3389 = vmatprep.subr.mxu0 0.0
        %3390 = vmatpush1.msra.mxu0 0.0
        %3391 = vmatprep.subr.mxu0 0.0
        %3392 = vmatpush1.msra.mxu0 0.0
        %3393 = vmatprep.subr.mxu0 0.0
        %3394 = vmatpush1.msra.mxu0 0.0
        %3395 = vmatprep.subr.mxu0 0.0
        %3396 = vmatpush1.msra.mxu0 0.0
        %3397 = vmatprep.subr.mxu0 0.0
        %3398 = vmatpush1.msra.mxu0 0.0
        %3399 = vmatprep.subr.mxu0 0.0
        %3400 = vmatpush1.msra.mxu0 0.0
        %3401 = vmatprep.subr.mxu0 0.0
        %3402 = vmatpush1.msra.mxu0 0.0
        %3403 = vmatprep.subr.mxu0 0.0
        %3404 = vmatpush1.msra.mxu0 0.0
        %3405 = vmatprep.subr.mxu0 0.0
        %3406 = vmatpush1.msra.mxu0 0.0
        %3407 = vmatprep.subr.mxu0 0.0
        %3408 = vmatpush1.msra.mxu0 0.0
        %3409 = vmatprep.subr.mxu0 0.0
        %3410 = vmatpush1.msra.mxu0 0.0
        %3411 = vmatprep.subr.mxu0 0.0
        %3412 = vmatpush1.msra.mxu0 0.0
        %3413 = vmatprep.subr.mxu0 0.0
        %3414 = vmatpush1.msra.mxu0 0.0
        %3415 = vmatprep.subr.mxu0 0.0
        %3416 = vmatpush1.msra.mxu0 0.0
        %3417 = vmatprep.mubr.f32.mxu0 0.0
        %3418 = vmatmul.mubr.f32.gmra.mrb[0].mxu0 %v3320
        %v3419 = vpop.f32.mrb[0].mxu0
        %v3420 = vadd.f32 0.0, %v3419
        %v3421 = vpop.f32.mrb[0].mxu0
        %3422 = vmatprep.mubr.f32.mxu0 0.0
        %3423 = vmatmul.mubr.f32.gmra.mrb[0].mxu0 %v3321
        %v3424 = vpop.f32.mrb[0].mxu0
        %v3425 = vadd.f32 0.0, %v3424
        %v3426 = vpop.f32.mrb[0].mxu0
        %3427 = vmatprep.mubr.f32.mxu0 0.0
        %3428 = vmatmul.mubr.f32.gmra.mrb[0].mxu0 %v3322
        %v3429 = vpop.f32.mrb[0].mxu0
        %v3430 = vadd.f32 0.0, %v3429
        %v3431 = vpop.f32.mrb[0].mxu0
        %3432 = vmatprep.mubr.f32.mxu0 0.0
        %3433 = vmatmul.mubr.f32.gmra.mrb[0].mxu0 %v3323
        %v3434 = vpop.f32.mrb[0].mxu0
        %v3435 = vadd.f32 0.0, %v3434
        %v3436 = vpop.f32.mrb[0].mxu0
        %3437 = vmatprep.mubr.f32.mxu0 0.0
        %3438 = vmatmul.mubr.f32.gmra.mrb[0].mxu0 %v3324
        %v3439 = vpop.f32.mrb[0].mxu0
        %v3440 = vadd.f32 0.0, %v3439
        %v3441 = vpop.f32.mrb[0].mxu0
        %3442 = vmatprep.mubr.f32.mxu0 0.0
        %3443 = vmatmul.mubr.f32.gmra.mrb[0].mxu0 %v3325
        %v3444 = vpop.f32.mrb[0].mxu0
        %v3445 = vadd.f32 0.0, %v3444
        %v3446 = vpop.f32.mrb[0].mxu0
        %3447 = vmatprep.mubr.f32.mxu0 0.0
        %3448 = vmatmul.mubr.f32.gmra.mrb[0].mxu0 %v3326
        %v3449 = vpop.f32.mrb[0].mxu0
        %v3450 = vadd.f32 0.0, %v3449
        %v3451 = vpop.f32.mrb[0].mxu0
        %3452 = vmatprep.mubr.f32.mxu0 0.0
        %3453 = vmatmul.mubr.f32.gmra.mrb[0].mxu0 %v3327
        %v3454 = vpop.f32.mrb[0].mxu0
        %v3455 = vadd.f32 0.0, %v3454
        %v3456 = vpop.f32.mrb[0].mxu0
        %3457 = vmatprep.mubr.f32.mxu0 0.0
        %3458 = vmatmul.mubr.f32.gmra.mrb[0].mxu0 %v3328
        %v3459 = vpop.f32.mrb[0].mxu0
        %v3460 = vadd.f32 0.0, %v3459
        %v3461 = vpop.f32.mrb[0].mxu0
        %3462 = vmatprep.mubr.f32.mxu0 0.0
        %3463 = vmatmul.mubr.f32.gmra.mrb[0].mxu0 %v3329
        %v3464 = vpop.f32.mrb[0].mxu0
        %v3465 = vadd.f32 0.0, %v3464
        %v3466 = vpop.f32.mrb[0].mxu0
        %3467 = vmatprep.mubr.f32.mxu0 0.0
        %3468 = vmatmul.mubr.f32.gmra.mrb[0].mxu0 %v3330
        %v3469 = vpop.f32.mrb[0].mxu0
        %v3470 = vadd.f32 0.0, %v3469
        %v3471 = vpop.f32.mrb[0].mxu0
        %3472 = vmatprep.mubr.f32.mxu0 0.0
        %3473 = vmatmul.mubr.f32.gmra.mrb[0].mxu0 %v3331
        %v3474 = vpop.f32.mrb[0].mxu0
        %v3475 = vadd.f32 0.0, %v3474
        %v3476 = vpop.f32.mrb[0].mxu0
        %3477 = vmatprep.mubr.f32.mxu0 0.0
        %3478 = vmatmul.mubr.f32.gmra.mrb[0].mxu0 %v3332
        %v3479 = vpop.f32.mrb[0].mxu0
        %v3480 = vadd.f32 0.0, %v3479
        %v3481 = vpop.f32.mrb[0].mxu0
        %3482 = vmatprep.mubr.f32.mxu0 0.0
        %3483 = vmatmul.mubr.f32.gmra.mrb[0].mxu0 %v3333
        %v3484 = vpop.f32.mrb[0].mxu0
        %v3485 = vadd.f32 0.0, %v3484
        %v3486 = vpop.f32.mrb[0].mxu0
        %3487 = vmatprep.mubr.f32.mxu0 0.0
        %3488 = vmatmul.mubr.f32.gmra.mrb[0].mxu0 %v3334
        %v3489 = vpop.f32.mrb[0].mxu0
        %v3490 = vadd.f32 0.0, %v3489
        %v3491 = vpop.f32.mrb[0].mxu0
        %3492 = vmatprep.mubr.f32.mxu0 0.0
        %3493 = vmatmul.mubr.f32.gmra.mrb[0].mxu0 %v3335
        %v3494 = vpop.f32.mrb[0].mxu0
        %v3495 = vadd.f32 0.0, %v3494
        %v3496 = vpop.f32.mrb[0].mxu0
        %3497 = vdwg.mxu0
        %v3498 = vadd.f32 %v3304, %v3420
        %v3499 = vadd.f32 %v3305, %v3425
        %v3500 = vadd.f32 %v3306, %v3430
        %v3501 = vadd.f32 %v3307, %v3435
        %v3502 = vadd.f32 %v3308, %v3440
        %v3503 = vadd.f32 %v3309, %v3445
        %v3504 = vadd.f32 %v3310, %v3450
        %v3505 = vadd.f32 %v3311, %v3455
        %v3506 = vadd.f32 %v3312, %v3460
        %v3507 = vadd.f32 %v3313, %v3465
        %v3508 = vadd.f32 %v3314, %v3470
        %v3509 = vadd.f32 %v3315, %v3475
        %v3510 = vadd.f32 %v3316, %v3480
        %v3511 = vadd.f32 %v3317, %v3485
        %v3512 = vadd.f32 %v3318, %v3490
        %v3513 = vadd.f32 %v3319, %v3495
        %v3514 = vld [vmem:[%s3125 + $0x2] sm:$0xff]
        %v3515 = vld [vmem:[%s3125 + $0xa] sm:$0xff]
        %v3516 = vld [vmem:[%s3125 + $0x1a] sm:$0xff]
        %v3517 = vld [vmem:[%s3125 + $0x22] sm:$0xff]
        %v3518 = vld [vmem:[%s3125 + $0x32] sm:$0xff]
        %v3519 = vld [vmem:[%s3125 + $0x3a] sm:$0xff]
        %v3520 = vld [vmem:[%s3125 + $0x4a] sm:$0xff]
        %v3521 = vld [vmem:[%s3125 + $0x52] sm:$0xff]
        %v3522 = vld [vmem:[%s3125 + $0x62] sm:$0xff]
        %v3523 = vld [vmem:[%s3125 + $0x6a] sm:$0xff]
        %v3524 = vld [vmem:[%s3125 + $0x7a] sm:$0xff]
        %v3525 = vld [vmem:[%s3125 + $0x82] sm:$0xff]
        %v3526 = vld [vmem:[%s3125 + $0x92] sm:$0xff]
        %v3527 = vld [vmem:[%s3125 + $0x9a] sm:$0xff]
        %v3528 = vld [vmem:[%s3125 + $0xaa] sm:$0xff]
        %v3529 = vld [vmem:[%s3125 + $0xb2] sm:$0xff]
        %s3530 = scalar_lea.vmem %s4, 640
        %v3531 = vld [vmem:[%s3530] sm:$0xff]
        %v3532 = vld [vmem:[%s3530 + $0x8] sm:$0xff]
        %v3533 = vld [vmem:[%s3530 + $0x10] sm:$0xff]
        %v3534 = vld [vmem:[%s3530 + $0x18] sm:$0xff]
        %v3535 = vld [vmem:[%s3530 + $0x20] sm:$0xff]
        %v3536 = vld [vmem:[%s3530 + $0x28] sm:$0xff]
        %v3537 = vld [vmem:[%s3530 + $0x30] sm:$0xff]
        %v3538 = vld [vmem:[%s3530 + $0x38] sm:$0xff]
        %v3539 = vld [vmem:[%s3530 + $0x40] sm:$0xff]
        %v3540 = vld [vmem:[%s3530 + $0x48] sm:$0xff]
        %v3541 = vld [vmem:[%s3530 + $0x50] sm:$0xff]
        %v3542 = vld [vmem:[%s3530 + $0x58] sm:$0xff]
        %v3543 = vld [vmem:[%s3530 + $0x60] sm:$0xff]
        %v3544 = vld [vmem:[%s3530 + $0x68] sm:$0xff]
        %v3545 = vld [vmem:[%s3530 + $0x70] sm:$0xff]
        %v3546 = vld [vmem:[%s3530 + $0x78] sm:$0xff]
        %3547 = vmatprep.subr.mxu0 0.0
        %3548 = vmatpush1.msra.mxu0 %v3531
        %3549 = vmatprep.subr.mxu0 0.0
        %3550 = vmatpush1.msra.mxu0 %v3532
        %3551 = vmatprep.subr.mxu0 0.0
        %3552 = vmatpush1.msra.mxu0 %v3533
        %3553 = vmatprep.subr.mxu0 0.0
        %3554 = vmatpush1.msra.mxu0 %v3534
        %3555 = vmatprep.subr.mxu0 0.0
        %3556 = vmatpush1.msra.mxu0 %v3535
        %3557 = vmatprep.subr.mxu0 0.0
        %3558 = vmatpush1.msra.mxu0 %v3536
        %3559 = vmatprep.subr.mxu0 0.0
        %3560 = vmatpush1.msra.mxu0 %v3537
        %3561 = vmatprep.subr.mxu0 0.0
        %3562 = vmatpush1.msra.mxu0 %v3538
        %3563 = vmatprep.subr.mxu0 0.0
        %3564 = vmatpush1.msra.mxu0 %v3539
        %3565 = vmatprep.subr.mxu0 0.0
        %3566 = vmatpush1.msra.mxu0 %v3540
        %3567 = vmatprep.subr.mxu0 0.0
        %3568 = vmatpush1.msra.mxu0 %v3541
        %3569 = vmatprep.subr.mxu0 0.0
        %3570 = vmatpush1.msra.mxu0 %v3542
        %3571 = vmatprep.subr.mxu0 0.0
        %3572 = vmatpush1.msra.mxu0 %v3543
        %3573 = vmatprep.subr.mxu0 0.0
        %3574 = vmatpush1.msra.mxu0 %v3544
        %3575 = vmatprep.subr.mxu0 0.0
        %3576 = vmatpush1.msra.mxu0 %v3545
        %3577 = vmatprep.subr.mxu0 0.0
        %3578 = vmatpush1.msra.mxu0 %v3546
        %3579 = vmatprep.subr.mxu0 0.0
        %3580 = vmatpush1.msra.mxu0 0.0
        %3581 = vmatprep.subr.mxu0 0.0
        %3582 = vmatpush1.msra.mxu0 0.0
        %3583 = vmatprep.subr.mxu0 0.0
        %3584 = vmatpush1.msra.mxu0 0.0
        %3585 = vmatprep.subr.mxu0 0.0
        %3586 = vmatpush1.msra.mxu0 0.0
        %3587 = vmatprep.subr.mxu0 0.0
        %3588 = vmatpush1.msra.mxu0 0.0
        %3589 = vmatprep.subr.mxu0 0.0
        %3590 = vmatpush1.msra.mxu0 0.0
        %3591 = vmatprep.subr.mxu0 0.0
        %3592 = vmatpush1.msra.mxu0 0.0
        %3593 = vmatprep.subr.mxu0 0.0
        %3594 = vmatpush1.msra.mxu0 0.0
        %3595 = vmatprep.subr.mxu0 0.0
        %3596 = vmatpush1.msra.mxu0 0.0
        %3597 = vmatprep.subr.mxu0 0.0
        %3598 = vmatpush1.msra.mxu0 0.0
        %3599 = vmatprep.subr.mxu0 0.0
        %3600 = vmatpush1.msra.mxu0 0.0
        %3601 = vmatprep.subr.mxu0 0.0
        %3602 = vmatpush1.msra.mxu0 0.0
        %3603 = vmatprep.subr.mxu0 0.0
        %3604 = vmatpush1.msra.mxu0 0.0
        %3605 = vmatprep.subr.mxu0 0.0
        %3606 = vmatpush1.msra.mxu0 0.0
        %3607 = vmatprep.subr.mxu0 0.0
        %3608 = vmatpush1.msra.mxu0 0.0
        %3609 = vmatprep.subr.mxu0 0.0
        %3610 = vmatpush1.msra.mxu0 0.0
        %3611 = vmatprep.mubr.f32.mxu0 0.0
        %3612 = vmatmul.mubr.f32.gmra.mrb[0].mxu0 %v3514
        %v3613 = vpop.f32.mrb[0].mxu0
        %v3614 = vadd.f32 0.0, %v3613
        %v3615 = vpop.f32.mrb[0].mxu0
        %3616 = vmatprep.mubr.f32.mxu0 0.0
        %3617 = vmatmul.mubr.f32.gmra.mrb[0].mxu0 %v3515
        %v3618 = vpop.f32.mrb[0].mxu0
        %v3619 = vadd.f32 0.0, %v3618
        %v3620 = vpop.f32.mrb[0].mxu0
        %3621 = vmatprep.mubr.f32.mxu0 0.0
        %3622 = vmatmul.mubr.f32.gmra.mrb[0].mxu0 %v3516
        %v3623 = vpop.f32.mrb[0].mxu0
        %v3624 = vadd.f32 0.0, %v3623
        %v3625 = vpop.f32.mrb[0].mxu0
        %3626 = vmatprep.mubr.f32.mxu0 0.0
        %3627 = vmatmul.mubr.f32.gmra.mrb[0].mxu0 %v3517
        %v3628 = vpop.f32.mrb[0].mxu0
        %v3629 = vadd.f32 0.0, %v3628
        %v3630 = vpop.f32.mrb[0].mxu0
        %3631 = vmatprep.mubr.f32.mxu0 0.0
        %3632 = vmatmul.mubr.f32.gmra.mrb[0].mxu0 %v3518
        %v3633 = vpop.f32.mrb[0].mxu0
        %v3634 = vadd.f32 0.0, %v3633
        %v3635 = vpop.f32.mrb[0].mxu0
        %3636 = vmatprep.mubr.f32.mxu0 0.0
        %3637 = vmatmul.mubr.f32.gmra.mrb[0].mxu0 %v3519
        %v3638 = vpop.f32.mrb[0].mxu0
        %v3639 = vadd.f32 0.0, %v3638
        %v3640 = vpop.f32.mrb[0].mxu0
        %3641 = vmatprep.mubr.f32.mxu0 0.0
        %3642 = vmatmul.mubr.f32.gmra.mrb[0].mxu0 %v3520
        %v3643 = vpop.f32.mrb[0].mxu0
        %v3644 = vadd.f32 0.0, %v3643
        %v3645 = vpop.f32.mrb[0].mxu0
        %3646 = vmatprep.mubr.f32.mxu0 0.0
        %3647 = vmatmul.mubr.f32.gmra.mrb[0].mxu0 %v3521
        %v3648 = vpop.f32.mrb[0].mxu0
        %v3649 = vadd.f32 0.0, %v3648
        %v3650 = vpop.f32.mrb[0].mxu0
        %3651 = vmatprep.mubr.f32.mxu0 0.0
        %3652 = vmatmul.mubr.f32.gmra.mrb[0].mxu0 %v3522
        %v3653 = vpop.f32.mrb[0].mxu0
        %v3654 = vadd.f32 0.0, %v3653
        %v3655 = vpop.f32.mrb[0].mxu0
        %3656 = vmatprep.mubr.f32.mxu0 0.0
        %3657 = vmatmul.mubr.f32.gmra.mrb[0].mxu0 %v3523
        %v3658 = vpop.f32.mrb[0].mxu0
        %v3659 = vadd.f32 0.0, %v3658
        %v3660 = vpop.f32.mrb[0].mxu0
        %3661 = vmatprep.mubr.f32.mxu0 0.0
        %3662 = vmatmul.mubr.f32.gmra.mrb[0].mxu0 %v3524
        %v3663 = vpop.f32.mrb[0].mxu0
        %v3664 = vadd.f32 0.0, %v3663
        %v3665 = vpop.f32.mrb[0].mxu0
        %3666 = vmatprep.mubr.f32.mxu0 0.0
        %3667 = vmatmul.mubr.f32.gmra.mrb[0].mxu0 %v3525
        %v3668 = vpop.f32.mrb[0].mxu0
        %v3669 = vadd.f32 0.0, %v3668
        %v3670 = vpop.f32.mrb[0].mxu0
        %3671 = vmatprep.mubr.f32.mxu0 0.0
        %3672 = vmatmul.mubr.f32.gmra.mrb[0].mxu0 %v3526
        %v3673 = vpop.f32.mrb[0].mxu0
        %v3674 = vadd.f32 0.0, %v3673
        %v3675 = vpop.f32.mrb[0].mxu0
        %3676 = vmatprep.mubr.f32.mxu0 0.0
        %3677 = vmatmul.mubr.f32.gmra.mrb[0].mxu0 %v3527
        %v3678 = vpop.f32.mrb[0].mxu0
        %v3679 = vadd.f32 0.0, %v3678
        %v3680 = vpop.f32.mrb[0].mxu0
        %3681 = vmatprep.mubr.f32.mxu0 0.0
        %3682 = vmatmul.mubr.f32.gmra.mrb[0].mxu0 %v3528
        %v3683 = vpop.f32.mrb[0].mxu0
        %v3684 = vadd.f32 0.0, %v3683
        %v3685 = vpop.f32.mrb[0].mxu0
        %3686 = vmatprep.mubr.f32.mxu0 0.0
        %3687 = vmatmul.mubr.f32.gmra.mrb[0].mxu0 %v3529
        %v3688 = vpop.f32.mrb[0].mxu0
        %v3689 = vadd.f32 0.0, %v3688
        %v3690 = vpop.f32.mrb[0].mxu0
        %3691 = vdwg.mxu0
        %v3692 = vadd.f32 %v3498, %v3614
        %v3693 = vadd.f32 %v3499, %v3619
        %v3694 = vadd.f32 %v3500, %v3624
        %v3695 = vadd.f32 %v3501, %v3629
        %v3696 = vadd.f32 %v3502, %v3634
        %v3697 = vadd.f32 %v3503, %v3639
        %v3698 = vadd.f32 %v3504, %v3644
        %v3699 = vadd.f32 %v3505, %v3649
        %v3700 = vadd.f32 %v3506, %v3654
        %v3701 = vadd.f32 %v3507, %v3659
        %v3702 = vadd.f32 %v3508, %v3664
        %v3703 = vadd.f32 %v3509, %v3669
        %v3704 = vadd.f32 %v3510, %v3674
        %v3705 = vadd.f32 %v3511, %v3679
        %v3706 = vadd.f32 %v3512, %v3684
        %v3707 = vadd.f32 %v3513, %v3689
        %s3708 = scalar_lea.vmem [#allocation4], 48
        %v3709 = vld [vmem:[%s3708] sm:$0xff]
        %v3710 = vld [vmem:[%s3708 + $0x8] sm:$0xff]
        %v3711 = vld [vmem:[%s3708 + $0x18] sm:$0xff]
        %v3712 = vld [vmem:[%s3708 + $0x20] sm:$0xff]
        %v3713 = vld [vmem:[%s3708 + $0x30] sm:$0xff]
        %v3714 = vld [vmem:[%s3708 + $0x38] sm:$0xff]
        %v3715 = vld [vmem:[%s3708 + $0x48] sm:$0xff]
        %v3716 = vld [vmem:[%s3708 + $0x50] sm:$0xff]
        %v3717 = vld [vmem:[%s3708 + $0x60] sm:$0xff]
        %v3718 = vld [vmem:[%s3708 + $0x68] sm:$0xff]
        %v3719 = vld [vmem:[%s3708 + $0x78] sm:$0xff]
        %v3720 = vld [vmem:[%s3708 + $0x80] sm:$0xff]
        %v3721 = vld [vmem:[%s3708 + $0x90] sm:$0xff]
        %v3722 = vld [vmem:[%s3708 + $0x98] sm:$0xff]
        %v3723 = vld [vmem:[%s3708 + $0xa8] sm:$0xff]
        %v3724 = vld [vmem:[%s3708 + $0xb0] sm:$0xff]
        %s3725 = scalar_lea.vmem %s4, 768
        %v3726 = vld [vmem:[%s3725] sm:$0xff]
        %v3727 = vld [vmem:[%s3725 + $0x8] sm:$0xff]
        %v3728 = vld [vmem:[%s3725 + $0x10] sm:$0xff]
        %v3729 = vld [vmem:[%s3725 + $0x18] sm:$0xff]
        %v3730 = vld [vmem:[%s3725 + $0x20] sm:$0xff]
        %v3731 = vld [vmem:[%s3725 + $0x28] sm:$0xff]
        %v3732 = vld [vmem:[%s3725 + $0x30] sm:$0xff]
        %v3733 = vld [vmem:[%s3725 + $0x38] sm:$0xff]
        %v3734 = vld [vmem:[%s3725 + $0x40] sm:$0xff]
        %v3735 = vld [vmem:[%s3725 + $0x48] sm:$0xff]
        %v3736 = vld [vmem:[%s3725 + $0x50] sm:$0xff]
        %v3737 = vld [vmem:[%s3725 + $0x58] sm:$0xff]
        %v3738 = vld [vmem:[%s3725 + $0x60] sm:$0xff]
        %v3739 = vld [vmem:[%s3725 + $0x68] sm:$0xff]
        %v3740 = vld [vmem:[%s3725 + $0x70] sm:$0xff]
        %v3741 = vld [vmem:[%s3725 + $0x78] sm:$0xff]
        %3742 = vmatprep.subr.mxu0 0.0
        %3743 = vmatpush1.msra.mxu0 %v3726
        %3744 = vmatprep.subr.mxu0 0.0
        %3745 = vmatpush1.msra.mxu0 %v3727
        %3746 = vmatprep.subr.mxu0 0.0
        %3747 = vmatpush1.msra.mxu0 %v3728
        %3748 = vmatprep.subr.mxu0 0.0
        %3749 = vmatpush1.msra.mxu0 %v3729
        %3750 = vmatprep.subr.mxu0 0.0
        %3751 = vmatpush1.msra.mxu0 %v3730
        %3752 = vmatprep.subr.mxu0 0.0
        %3753 = vmatpush1.msra.mxu0 %v3731
        %3754 = vmatprep.subr.mxu0 0.0
        %3755 = vmatpush1.msra.mxu0 %v3732
        %3756 = vmatprep.subr.mxu0 0.0
        %3757 = vmatpush1.msra.mxu0 %v3733
        %3758 = vmatprep.subr.mxu0 0.0
        %3759 = vmatpush1.msra.mxu0 %v3734
        %3760 = vmatprep.subr.mxu0 0.0
        %3761 = vmatpush1.msra.mxu0 %v3735
        %3762 = vmatprep.subr.mxu0 0.0
        %3763 = vmatpush1.msra.mxu0 %v3736
        %3764 = vmatprep.subr.mxu0 0.0
        %3765 = vmatpush1.msra.mxu0 %v3737
        %3766 = vmatprep.subr.mxu0 0.0
        %3767 = vmatpush1.msra.mxu0 %v3738
        %3768 = vmatprep.subr.mxu0 0.0
        %3769 = vmatpush1.msra.mxu0 %v3739
        %3770 = vmatprep.subr.mxu0 0.0
        %3771 = vmatpush1.msra.mxu0 %v3740
        %3772 = vmatprep.subr.mxu0 0.0
        %3773 = vmatpush1.msra.mxu0 %v3741
        %3774 = vmatprep.subr.mxu0 0.0
        %3775 = vmatpush1.msra.mxu0 0.0
        %3776 = vmatprep.subr.mxu0 0.0
        %3777 = vmatpush1.msra.mxu0 0.0
        %3778 = vmatprep.subr.mxu0 0.0
        %3779 = vmatpush1.msra.mxu0 0.0
        %3780 = vmatprep.subr.mxu0 0.0
        %3781 = vmatpush1.msra.mxu0 0.0
        %3782 = vmatprep.subr.mxu0 0.0
        %3783 = vmatpush1.msra.mxu0 0.0
        %3784 = vmatprep.subr.mxu0 0.0
        %3785 = vmatpush1.msra.mxu0 0.0
        %3786 = vmatprep.subr.mxu0 0.0
        %3787 = vmatpush1.msra.mxu0 0.0
        %3788 = vmatprep.subr.mxu0 0.0
        %3789 = vmatpush1.msra.mxu0 0.0
        %3790 = vmatprep.subr.mxu0 0.0
        %3791 = vmatpush1.msra.mxu0 0.0
        %3792 = vmatprep.subr.mxu0 0.0
        %3793 = vmatpush1.msra.mxu0 0.0
        %3794 = vmatprep.subr.mxu0 0.0
        %3795 = vmatpush1.msra.mxu0 0.0
        %3796 = vmatprep.subr.mxu0 0.0
        %3797 = vmatpush1.msra.mxu0 0.0
        %3798 = vmatprep.subr.mxu0 0.0
        %3799 = vmatpush1.msra.mxu0 0.0
        %3800 = vmatprep.subr.mxu0 0.0
        %3801 = vmatpush1.msra.mxu0 0.0
        %3802 = vmatprep.subr.mxu0 0.0
        %3803 = vmatpush1.msra.mxu0 0.0
        %3804 = vmatprep.subr.mxu0 0.0
        %3805 = vmatpush1.msra.mxu0 0.0
        %3806 = vmatprep.mubr.f32.mxu0 0.0
        %3807 = vmatmul.mubr.f32.gmra.mrb[0].mxu0 %v3709
        %v3808 = vpop.f32.mrb[0].mxu0
        %v3809 = vadd.f32 0.0, %v3808
        %v3810 = vpop.f32.mrb[0].mxu0
        %3811 = vmatprep.mubr.f32.mxu0 0.0
        %3812 = vmatmul.mubr.f32.gmra.mrb[0].mxu0 %v3710
        %v3813 = vpop.f32.mrb[0].mxu0
        %v3814 = vadd.f32 0.0, %v3813
        %v3815 = vpop.f32.mrb[0].mxu0
        %3816 = vmatprep.mubr.f32.mxu0 0.0
        %3817 = vmatmul.mubr.f32.gmra.mrb[0].mxu0 %v3711
        %v3818 = vpop.f32.mrb[0].mxu0
        %v3819 = vadd.f32 0.0, %v3818
        %v3820 = vpop.f32.mrb[0].mxu0
        %3821 = vmatprep.mubr.f32.mxu0 0.0
        %3822 = vmatmul.mubr.f32.gmra.mrb[0].mxu0 %v3712
        %v3823 = vpop.f32.mrb[0].mxu0
        %v3824 = vadd.f32 0.0, %v3823
        %v3825 = vpop.f32.mrb[0].mxu0
        %3826 = vmatprep.mubr.f32.mxu0 0.0
        %3827 = vmatmul.mubr.f32.gmra.mrb[0].mxu0 %v3713
        %v3828 = vpop.f32.mrb[0].mxu0
        %v3829 = vadd.f32 0.0, %v3828
        %v3830 = vpop.f32.mrb[0].mxu0
        %3831 = vmatprep.mubr.f32.mxu0 0.0
        %3832 = vmatmul.mubr.f32.gmra.mrb[0].mxu0 %v3714
        %v3833 = vpop.f32.mrb[0].mxu0
        %v3834 = vadd.f32 0.0, %v3833
        %v3835 = vpop.f32.mrb[0].mxu0
        %3836 = vmatprep.mubr.f32.mxu0 0.0
        %3837 = vmatmul.mubr.f32.gmra.mrb[0].mxu0 %v3715
        %v3838 = vpop.f32.mrb[0].mxu0
        %v3839 = vadd.f32 0.0, %v3838
        %v3840 = vpop.f32.mrb[0].mxu0
        %3841 = vmatprep.mubr.f32.mxu0 0.0
        %3842 = vmatmul.mubr.f32.gmra.mrb[0].mxu0 %v3716
        %v3843 = vpop.f32.mrb[0].mxu0
        %v3844 = vadd.f32 0.0, %v3843
        %v3845 = vpop.f32.mrb[0].mxu0
        %3846 = vmatprep.mubr.f32.mxu0 0.0
        %3847 = vmatmul.mubr.f32.gmra.mrb[0].mxu0 %v3717
        %v3848 = vpop.f32.mrb[0].mxu0
        %v3849 = vadd.f32 0.0, %v3848
        %v3850 = vpop.f32.mrb[0].mxu0
        %3851 = vmatprep.mubr.f32.mxu0 0.0
        %3852 = vmatmul.mubr.f32.gmra.mrb[0].mxu0 %v3718
        %v3853 = vpop.f32.mrb[0].mxu0
        %v3854 = vadd.f32 0.0, %v3853
        %v3855 = vpop.f32.mrb[0].mxu0
        %3856 = vmatprep.mubr.f32.mxu0 0.0
        %3857 = vmatmul.mubr.f32.gmra.mrb[0].mxu0 %v3719
        %v3858 = vpop.f32.mrb[0].mxu0
        %v3859 = vadd.f32 0.0, %v3858
        %v3860 = vpop.f32.mrb[0].mxu0
        %3861 = vmatprep.mubr.f32.mxu0 0.0
        %3862 = vmatmul.mubr.f32.gmra.mrb[0].mxu0 %v3720
        %v3863 = vpop.f32.mrb[0].mxu0
        %v3864 = vadd.f32 0.0, %v3863
        %v3865 = vpop.f32.mrb[0].mxu0
        %3866 = vmatprep.mubr.f32.mxu0 0.0
        %3867 = vmatmul.mubr.f32.gmra.mrb[0].mxu0 %v3721
        %v3868 = vpop.f32.mrb[0].mxu0
        %v3869 = vadd.f32 0.0, %v3868
        %v3870 = vpop.f32.mrb[0].mxu0
        %3871 = vmatprep.mubr.f32.mxu0 0.0
        %3872 = vmatmul.mubr.f32.gmra.mrb[0].mxu0 %v3722
        %v3873 = vpop.f32.mrb[0].mxu0
        %v3874 = vadd.f32 0.0, %v3873
        %v3875 = vpop.f32.mrb[0].mxu0
        %3876 = vmatprep.mubr.f32.mxu0 0.0
        %3877 = vmatmul.mubr.f32.gmra.mrb[0].mxu0 %v3723
        %v3878 = vpop.f32.mrb[0].mxu0
        %v3879 = vadd.f32 0.0, %v3878
        %v3880 = vpop.f32.mrb[0].mxu0
        %3881 = vmatprep.mubr.f32.mxu0 0.0
        %3882 = vmatmul.mubr.f32.gmra.mrb[0].mxu0 %v3724
        %v3883 = vpop.f32.mrb[0].mxu0
        %v3884 = vadd.f32 0.0, %v3883
        %v3885 = vpop.f32.mrb[0].mxu0
        %3886 = vdwg.mxu0
        %v3887 = vadd.f32 %v3692, %v3809
        %v3888 = vadd.f32 %v3693, %v3814
        %v3889 = vadd.f32 %v3694, %v3819
        %v3890 = vadd.f32 %v3695, %v3824
        %v3891 = vadd.f32 %v3696, %v3829
        %v3892 = vadd.f32 %v3697, %v3834
        %v3893 = vadd.f32 %v3698, %v3839
        %v3894 = vadd.f32 %v3699, %v3844
        %v3895 = vadd.f32 %v3700, %v3849
        %v3896 = vadd.f32 %v3701, %v3854
        %v3897 = vadd.f32 %v3702, %v3859
        %v3898 = vadd.f32 %v3703, %v3864
        %v3899 = vadd.f32 %v3704, %v3869
        %v3900 = vadd.f32 %v3705, %v3874
        %v3901 = vadd.f32 %v3706, %v3879
        %v3902 = vadd.f32 %v3707, %v3884
        %v3903 = vld [vmem:[%s3708 + $0x1] sm:$0xff]
        %v3904 = vld [vmem:[%s3708 + $0x9] sm:$0xff]
        %v3905 = vld [vmem:[%s3708 + $0x19] sm:$0xff]
        %v3906 = vld [vmem:[%s3708 + $0x21] sm:$0xff]
        %v3907 = vld [vmem:[%s3708 + $0x31] sm:$0xff]
        %v3908 = vld [vmem:[%s3708 + $0x39] sm:$0xff]
        %v3909 = vld [vmem:[%s3708 + $0x49] sm:$0xff]
        %v3910 = vld [vmem:[%s3708 + $0x51] sm:$0xff]
        %v3911 = vld [vmem:[%s3708 + $0x61] sm:$0xff]
        %v3912 = vld [vmem:[%s3708 + $0x69] sm:$0xff]
        %v3913 = vld [vmem:[%s3708 + $0x79] sm:$0xff]
        %v3914 = vld [vmem:[%s3708 + $0x81] sm:$0xff]
        %v3915 = vld [vmem:[%s3708 + $0x91] sm:$0xff]
        %v3916 = vld [vmem:[%s3708 + $0x99] sm:$0xff]
        %v3917 = vld [vmem:[%s3708 + $0xa9] sm:$0xff]
        %v3918 = vld [vmem:[%s3708 + $0xb1] sm:$0xff]
        %s3919 = scalar_lea.vmem %s4, 896
        %v3920 = vld [vmem:[%s3919] sm:$0xff]
        %v3921 = vld [vmem:[%s3919 + $0x8] sm:$0xff]
        %v3922 = vld [vmem:[%s3919 + $0x10] sm:$0xff]
        %v3923 = vld [vmem:[%s3919 + $0x18] sm:$0xff]
        %v3924 = vld [vmem:[%s3919 + $0x20] sm:$0xff]
        %v3925 = vld [vmem:[%s3919 + $0x28] sm:$0xff]
        %v3926 = vld [vmem:[%s3919 + $0x30] sm:$0xff]
        %v3927 = vld [vmem:[%s3919 + $0x38] sm:$0xff]
        %v3928 = vld [vmem:[%s3919 + $0x40] sm:$0xff]
        %v3929 = vld [vmem:[%s3919 + $0x48] sm:$0xff]
        %v3930 = vld [vmem:[%s3919 + $0x50] sm:$0xff]
        %v3931 = vld [vmem:[%s3919 + $0x58] sm:$0xff]
        %v3932 = vld [vmem:[%s3919 + $0x60] sm:$0xff]
        %v3933 = vld [vmem:[%s3919 + $0x68] sm:$0xff]
        %v3934 = vld [vmem:[%s3919 + $0x70] sm:$0xff]
        %v3935 = vld [vmem:[%s3919 + $0x78] sm:$0xff]
        %3936 = vmatprep.subr.mxu0 0.0
        %3937 = vmatpush1.msra.mxu0 %v3920
        %3938 = vmatprep.subr.mxu0 0.0
        %3939 = vmatpush1.msra.mxu0 %v3921
        %3940 = vmatprep.subr.mxu0 0.0
        %3941 = vmatpush1.msra.mxu0 %v3922
        %3942 = vmatprep.subr.mxu0 0.0
        %3943 = vmatpush1.msra.mxu0 %v3923
        %3944 = vmatprep.subr.mxu0 0.0
        %3945 = vmatpush1.msra.mxu0 %v3924
        %3946 = vmatprep.subr.mxu0 0.0
        %3947 = vmatpush1.msra.mxu0 %v3925
        %3948 = vmatprep.subr.mxu0 0.0
        %3949 = vmatpush1.msra.mxu0 %v3926
        %3950 = vmatprep.subr.mxu0 0.0
        %3951 = vmatpush1.msra.mxu0 %v3927
        %3952 = vmatprep.subr.mxu0 0.0
        %3953 = vmatpush1.msra.mxu0 %v3928
        %3954 = vmatprep.subr.mxu0 0.0
        %3955 = vmatpush1.msra.mxu0 %v3929
        %3956 = vmatprep.subr.mxu0 0.0
        %3957 = vmatpush1.msra.mxu0 %v3930
        %3958 = vmatprep.subr.mxu0 0.0
        %3959 = vmatpush1.msra.mxu0 %v3931
        %3960 = vmatprep.subr.mxu0 0.0
        %3961 = vmatpush1.msra.mxu0 %v3932
        %3962 = vmatprep.subr.mxu0 0.0
        %3963 = vmatpush1.msra.mxu0 %v3933
        %3964 = vmatprep.subr.mxu0 0.0
        %3965 = vmatpush1.msra.mxu0 %v3934
        %3966 = vmatprep.subr.mxu0 0.0
        %3967 = vmatpush1.msra.mxu0 %v3935
        %3968 = vmatprep.subr.mxu0 0.0
        %3969 = vmatpush1.msra.mxu0 0.0
        %3970 = vmatprep.subr.mxu0 0.0
        %3971 = vmatpush1.msra.mxu0 0.0
        %3972 = vmatprep.subr.mxu0 0.0
        %3973 = vmatpush1.msra.mxu0 0.0
        %3974 = vmatprep.subr.mxu0 0.0
        %3975 = vmatpush1.msra.mxu0 0.0
        %3976 = vmatprep.subr.mxu0 0.0
        %3977 = vmatpush1.msra.mxu0 0.0
        %3978 = vmatprep.subr.mxu0 0.0
        %3979 = vmatpush1.msra.mxu0 0.0
        %3980 = vmatprep.subr.mxu0 0.0
        %3981 = vmatpush1.msra.mxu0 0.0
        %3982 = vmatprep.subr.mxu0 0.0
        %3983 = vmatpush1.msra.mxu0 0.0
        %3984 = vmatprep.subr.mxu0 0.0
        %3985 = vmatpush1.msra.mxu0 0.0
        %3986 = vmatprep.subr.mxu0 0.0
        %3987 = vmatpush1.msra.mxu0 0.0
        %3988 = vmatprep.subr.mxu0 0.0
        %3989 = vmatpush1.msra.mxu0 0.0
        %3990 = vmatprep.subr.mxu0 0.0
        %3991 = vmatpush1.msra.mxu0 0.0
        %3992 = vmatprep.subr.mxu0 0.0
        %3993 = vmatpush1.msra.mxu0 0.0
        %3994 = vmatprep.subr.mxu0 0.0
        %3995 = vmatpush1.msra.mxu0 0.0
        %3996 = vmatprep.subr.mxu0 0.0
        %3997 = vmatpush1.msra.mxu0 0.0
        %3998 = vmatprep.subr.mxu0 0.0
        %3999 = vmatpush1.msra.mxu0 0.0
        %4000 = vmatprep.mubr.f32.mxu0 0.0
        %4001 = vmatmul.mubr.f32.gmra.mrb[0].mxu0 %v3903
        %v4002 = vpop.f32.mrb[0].mxu0
        %v4003 = vadd.f32 0.0, %v4002
        %v4004 = vpop.f32.mrb[0].mxu0
        %4005 = vmatprep.mubr.f32.mxu0 0.0
        %4006 = vmatmul.mubr.f32.gmra.mrb[0].mxu0 %v3904
        %v4007 = vpop.f32.mrb[0].mxu0
        %v4008 = vadd.f32 0.0, %v4007
        %v4009 = vpop.f32.mrb[0].mxu0
        %4010 = vmatprep.mubr.f32.mxu0 0.0
        %4011 = vmatmul.mubr.f32.gmra.mrb[0].mxu0 %v3905
        %v4012 = vpop.f32.mrb[0].mxu0
        %v4013 = vadd.f32 0.0, %v4012
        %v4014 = vpop.f32.mrb[0].mxu0
        %4015 = vmatprep.mubr.f32.mxu0 0.0
        %4016 = vmatmul.mubr.f32.gmra.mrb[0].mxu0 %v3906
        %v4017 = vpop.f32.mrb[0].mxu0
        %v4018 = vadd.f32 0.0, %v4017
        %v4019 = vpop.f32.mrb[0].mxu0
        %4020 = vmatprep.mubr.f32.mxu0 0.0
        %4021 = vmatmul.mubr.f32.gmra.mrb[0].mxu0 %v3907
        %v4022 = vpop.f32.mrb[0].mxu0
        %v4023 = vadd.f32 0.0, %v4022
        %v4024 = vpop.f32.mrb[0].mxu0
        %4025 = vmatprep.mubr.f32.mxu0 0.0
        %4026 = vmatmul.mubr.f32.gmra.mrb[0].mxu0 %v3908
        %v4027 = vpop.f32.mrb[0].mxu0
        %v4028 = vadd.f32 0.0, %v4027
        %v4029 = vpop.f32.mrb[0].mxu0
        %4030 = vmatprep.mubr.f32.mxu0 0.0
        %4031 = vmatmul.mubr.f32.gmra.mrb[0].mxu0 %v3909
        %v4032 = vpop.f32.mrb[0].mxu0
        %v4033 = vadd.f32 0.0, %v4032
        %v4034 = vpop.f32.mrb[0].mxu0
        %4035 = vmatprep.mubr.f32.mxu0 0.0
        %4036 = vmatmul.mubr.f32.gmra.mrb[0].mxu0 %v3910
        %v4037 = vpop.f32.mrb[0].mxu0
        %v4038 = vadd.f32 0.0, %v4037
        %v4039 = vpop.f32.mrb[0].mxu0
        %4040 = vmatprep.mubr.f32.mxu0 0.0
        %4041 = vmatmul.mubr.f32.gmra.mrb[0].mxu0 %v3911
        %v4042 = vpop.f32.mrb[0].mxu0
        %v4043 = vadd.f32 0.0, %v4042
        %v4044 = vpop.f32.mrb[0].mxu0
        %4045 = vmatprep.mubr.f32.mxu0 0.0
        %4046 = vmatmul.mubr.f32.gmra.mrb[0].mxu0 %v3912
        %v4047 = vpop.f32.mrb[0].mxu0
        %v4048 = vadd.f32 0.0, %v4047
        %v4049 = vpop.f32.mrb[0].mxu0
        %4050 = vmatprep.mubr.f32.mxu0 0.0
        %4051 = vmatmul.mubr.f32.gmra.mrb[0].mxu0 %v3913
        %v4052 = vpop.f32.mrb[0].mxu0
        %v4053 = vadd.f32 0.0, %v4052
        %v4054 = vpop.f32.mrb[0].mxu0
        %4055 = vmatprep.mubr.f32.mxu0 0.0
        %4056 = vmatmul.mubr.f32.gmra.mrb[0].mxu0 %v3914
        %v4057 = vpop.f32.mrb[0].mxu0
        %v4058 = vadd.f32 0.0, %v4057
        %v4059 = vpop.f32.mrb[0].mxu0
        %4060 = vmatprep.mubr.f32.mxu0 0.0
        %4061 = vmatmul.mubr.f32.gmra.mrb[0].mxu0 %v3915
        %v4062 = vpop.f32.mrb[0].mxu0
        %v4063 = vadd.f32 0.0, %v4062
        %v4064 = vpop.f32.mrb[0].mxu0
        %4065 = vmatprep.mubr.f32.mxu0 0.0
        %4066 = vmatmul.mubr.f32.gmra.mrb[0].mxu0 %v3916
        %v4067 = vpop.f32.mrb[0].mxu0
        %v4068 = vadd.f32 0.0, %v4067
        %v4069 = vpop.f32.mrb[0].mxu0
        %4070 = vmatprep.mubr.f32.mxu0 0.0
        %4071 = vmatmul.mubr.f32.gmra.mrb[0].mxu0 %v3917
        %v4072 = vpop.f32.mrb[0].mxu0
        %v4073 = vadd.f32 0.0, %v4072
        %v4074 = vpop.f32.mrb[0].mxu0
        %4075 = vmatprep.mubr.f32.mxu0 0.0
        %4076 = vmatmul.mubr.f32.gmra.mrb[0].mxu0 %v3918
        %v4077 = vpop.f32.mrb[0].mxu0
        %v4078 = vadd.f32 0.0, %v4077
        %v4079 = vpop.f32.mrb[0].mxu0
        %4080 = vdwg.mxu0
        %v4081 = vadd.f32 %v3887, %v4003
        %v4082 = vadd.f32 %v3888, %v4008
        %v4083 = vadd.f32 %v3889, %v4013
        %v4084 = vadd.f32 %v3890, %v4018
        %v4085 = vadd.f32 %v3891, %v4023
        %v4086 = vadd.f32 %v3892, %v4028
        %v4087 = vadd.f32 %v3893, %v4033
        %v4088 = vadd.f32 %v3894, %v4038
        %v4089 = vadd.f32 %v3895, %v4043
        %v4090 = vadd.f32 %v3896, %v4048
        %v4091 = vadd.f32 %v3897, %v4053
        %v4092 = vadd.f32 %v3898, %v4058
        %v4093 = vadd.f32 %v3899, %v4063
        %v4094 = vadd.f32 %v3900, %v4068
        %v4095 = vadd.f32 %v3901, %v4073
        %v4096 = vadd.f32 %v3902, %v4078
        %v4097 = vld [vmem:[%s3708 + $0x2] sm:$0xff]
        %v4098 = vld [vmem:[%s3708 + $0xa] sm:$0xff]
        %v4099 = vld [vmem:[%s3708 + $0x1a] sm:$0xff]
        %v4100 = vld [vmem:[%s3708 + $0x22] sm:$0xff]
        %v4101 = vld [vmem:[%s3708 + $0x32] sm:$0xff]
        %v4102 = vld [vmem:[%s3708 + $0x3a] sm:$0xff]
        %v4103 = vld [vmem:[%s3708 + $0x4a] sm:$0xff]
        %v4104 = vld [vmem:[%s3708 + $0x52] sm:$0xff]
        %v4105 = vld [vmem:[%s3708 + $0x62] sm:$0xff]
        %v4106 = vld [vmem:[%s3708 + $0x6a] sm:$0xff]
        %v4107 = vld [vmem:[%s3708 + $0x7a] sm:$0xff]
        %v4108 = vld [vmem:[%s3708 + $0x82] sm:$0xff]
        %v4109 = vld [vmem:[%s3708 + $0x92] sm:$0xff]
        %v4110 = vld [vmem:[%s3708 + $0x9a] sm:$0xff]
        %v4111 = vld [vmem:[%s3708 + $0xaa] sm:$0xff]
        %v4112 = vld [vmem:[%s3708 + $0xb2] sm:$0xff]
        %s4113 = scalar_lea.vmem %s4, 1024
        %v4114 = vld [vmem:[%s4113] sm:$0xff]
        %v4115 = vld [vmem:[%s4113 + $0x8] sm:$0xff]
        %v4116 = vld [vmem:[%s4113 + $0x10] sm:$0xff]
        %v4117 = vld [vmem:[%s4113 + $0x18] sm:$0xff]
        %v4118 = vld [vmem:[%s4113 + $0x20] sm:$0xff]
        %v4119 = vld [vmem:[%s4113 + $0x28] sm:$0xff]
        %v4120 = vld [vmem:[%s4113 + $0x30] sm:$0xff]
        %v4121 = vld [vmem:[%s4113 + $0x38] sm:$0xff]
        %v4122 = vld [vmem:[%s4113 + $0x40] sm:$0xff]
        %v4123 = vld [vmem:[%s4113 + $0x48] sm:$0xff]
        %v4124 = vld [vmem:[%s4113 + $0x50] sm:$0xff]
        %v4125 = vld [vmem:[%s4113 + $0x58] sm:$0xff]
        %v4126 = vld [vmem:[%s4113 + $0x60] sm:$0xff]
        %v4127 = vld [vmem:[%s4113 + $0x68] sm:$0xff]
        %v4128 = vld [vmem:[%s4113 + $0x70] sm:$0xff]
        %v4129 = vld [vmem:[%s4113 + $0x78] sm:$0xff]
        %4130 = vmatprep.subr.mxu0 0.0
        %4131 = vmatpush1.msra.mxu0 %v4114
        %4132 = vmatprep.subr.mxu0 0.0
        %4133 = vmatpush1.msra.mxu0 %v4115
        %4134 = vmatprep.subr.mxu0 0.0
        %4135 = vmatpush1.msra.mxu0 %v4116
        %4136 = vmatprep.subr.mxu0 0.0
        %4137 = vmatpush1.msra.mxu0 %v4117
        %4138 = vmatprep.subr.mxu0 0.0
        %4139 = vmatpush1.msra.mxu0 %v4118
        %4140 = vmatprep.subr.mxu0 0.0
        %4141 = vmatpush1.msra.mxu0 %v4119
        %4142 = vmatprep.subr.mxu0 0.0
        %4143 = vmatpush1.msra.mxu0 %v4120
        %4144 = vmatprep.subr.mxu0 0.0
        %4145 = vmatpush1.msra.mxu0 %v4121
        %4146 = vmatprep.subr.mxu0 0.0
        %4147 = vmatpush1.msra.mxu0 %v4122
        %4148 = vmatprep.subr.mxu0 0.0
        %4149 = vmatpush1.msra.mxu0 %v4123
        %4150 = vmatprep.subr.mxu0 0.0
        %4151 = vmatpush1.msra.mxu0 %v4124
        %4152 = vmatprep.subr.mxu0 0.0
        %4153 = vmatpush1.msra.mxu0 %v4125
        %4154 = vmatprep.subr.mxu0 0.0
        %4155 = vmatpush1.msra.mxu0 %v4126
        %4156 = vmatprep.subr.mxu0 0.0
        %4157 = vmatpush1.msra.mxu0 %v4127
        %4158 = vmatprep.subr.mxu0 0.0
        %4159 = vmatpush1.msra.mxu0 %v4128
        %4160 = vmatprep.subr.mxu0 0.0
        %4161 = vmatpush1.msra.mxu0 %v4129
        %4162 = vmatprep.subr.mxu0 0.0
        %4163 = vmatpush1.msra.mxu0 0.0
        %4164 = vmatprep.subr.mxu0 0.0
        %4165 = vmatpush1.msra.mxu0 0.0
        %4166 = vmatprep.subr.mxu0 0.0
        %4167 = vmatpush1.msra.mxu0 0.0
        %4168 = vmatprep.subr.mxu0 0.0
        %4169 = vmatpush1.msra.mxu0 0.0
        %4170 = vmatprep.subr.mxu0 0.0
        %4171 = vmatpush1.msra.mxu0 0.0
        %4172 = vmatprep.subr.mxu0 0.0
        %4173 = vmatpush1.msra.mxu0 0.0
        %4174 = vmatprep.subr.mxu0 0.0
        %4175 = vmatpush1.msra.mxu0 0.0
        %4176 = vmatprep.subr.mxu0 0.0
        %4177 = vmatpush1.msra.mxu0 0.0
        %4178 = vmatprep.subr.mxu0 0.0
        %4179 = vmatpush1.msra.mxu0 0.0
        %4180 = vmatprep.subr.mxu0 0.0
        %4181 = vmatpush1.msra.mxu0 0.0
        %4182 = vmatprep.subr.mxu0 0.0
        %4183 = vmatpush1.msra.mxu0 0.0
        %4184 = vmatprep.subr.mxu0 0.0
        %4185 = vmatpush1.msra.mxu0 0.0
        %4186 = vmatprep.subr.mxu0 0.0
        %4187 = vmatpush1.msra.mxu0 0.0
        %4188 = vmatprep.subr.mxu0 0.0
        %4189 = vmatpush1.msra.mxu0 0.0
        %4190 = vmatprep.subr.mxu0 0.0
        %4191 = vmatpush1.msra.mxu0 0.0
        %4192 = vmatprep.subr.mxu0 0.0
        %4193 = vmatpush1.msra.mxu0 0.0
        %4194 = vmatprep.mubr.f32.mxu0 0.0
        %4195 = vmatmul.mubr.f32.gmra.mrb[0].mxu0 %v4097
        %v4196 = vpop.f32.mrb[0].mxu0
        %v4197 = vadd.f32 0.0, %v4196
        %v4198 = vpop.f32.mrb[0].mxu0
        %4199 = vmatprep.mubr.f32.mxu0 0.0
        %4200 = vmatmul.mubr.f32.gmra.mrb[0].mxu0 %v4098
        %v4201 = vpop.f32.mrb[0].mxu0
        %v4202 = vadd.f32 0.0, %v4201
        %v4203 = vpop.f32.mrb[0].mxu0
        %4204 = vmatprep.mubr.f32.mxu0 0.0
        %4205 = vmatmul.mubr.f32.gmra.mrb[0].mxu0 %v4099
        %v4206 = vpop.f32.mrb[0].mxu0
        %v4207 = vadd.f32 0.0, %v4206
        %v4208 = vpop.f32.mrb[0].mxu0
        %4209 = vmatprep.mubr.f32.mxu0 0.0
        %4210 = vmatmul.mubr.f32.gmra.mrb[0].mxu0 %v4100
        %v4211 = vpop.f32.mrb[0].mxu0
        %v4212 = vadd.f32 0.0, %v4211
        %v4213 = vpop.f32.mrb[0].mxu0
        %4214 = vmatprep.mubr.f32.mxu0 0.0
        %4215 = vmatmul.mubr.f32.gmra.mrb[0].mxu0 %v4101
        %v4216 = vpop.f32.mrb[0].mxu0
        %v4217 = vadd.f32 0.0, %v4216
        %v4218 = vpop.f32.mrb[0].mxu0
        %4219 = vmatprep.mubr.f32.mxu0 0.0
        %4220 = vmatmul.mubr.f32.gmra.mrb[0].mxu0 %v4102
        %v4221 = vpop.f32.mrb[0].mxu0
        %v4222 = vadd.f32 0.0, %v4221
        %v4223 = vpop.f32.mrb[0].mxu0
        %4224 = vmatprep.mubr.f32.mxu0 0.0
        %4225 = vmatmul.mubr.f32.gmra.mrb[0].mxu0 %v4103
        %v4226 = vpop.f32.mrb[0].mxu0
        %v4227 = vadd.f32 0.0, %v4226
        %v4228 = vpop.f32.mrb[0].mxu0
        %4229 = vmatprep.mubr.f32.mxu0 0.0
        %4230 = vmatmul.mubr.f32.gmra.mrb[0].mxu0 %v4104
        %v4231 = vpop.f32.mrb[0].mxu0
        %v4232 = vadd.f32 0.0, %v4231
        %v4233 = vpop.f32.mrb[0].mxu0
        %4234 = vmatprep.mubr.f32.mxu0 0.0
        %4235 = vmatmul.mubr.f32.gmra.mrb[0].mxu0 %v4105
        %v4236 = vpop.f32.mrb[0].mxu0
        %v4237 = vadd.f32 0.0, %v4236
        %v4238 = vpop.f32.mrb[0].mxu0
        %4239 = vmatprep.mubr.f32.mxu0 0.0
        %4240 = vmatmul.mubr.f32.gmra.mrb[0].mxu0 %v4106
        %v4241 = vpop.f32.mrb[0].mxu0
        %v4242 = vadd.f32 0.0, %v4241
        %v4243 = vpop.f32.mrb[0].mxu0
        %4244 = vmatprep.mubr.f32.mxu0 0.0
        %4245 = vmatmul.mubr.f32.gmra.mrb[0].mxu0 %v4107
        %v4246 = vpop.f32.mrb[0].mxu0
        %v4247 = vadd.f32 0.0, %v4246
        %v4248 = vpop.f32.mrb[0].mxu0
        %4249 = vmatprep.mubr.f32.mxu0 0.0
        %4250 = vmatmul.mubr.f32.gmra.mrb[0].mxu0 %v4108
        %v4251 = vpop.f32.mrb[0].mxu0
        %v4252 = vadd.f32 0.0, %v4251
        %v4253 = vpop.f32.mrb[0].mxu0
        %4254 = vmatprep.mubr.f32.mxu0 0.0
        %4255 = vmatmul.mubr.f32.gmra.mrb[0].mxu0 %v4109
        %v4256 = vpop.f32.mrb[0].mxu0
        %v4257 = vadd.f32 0.0, %v4256
        %v4258 = vpop.f32.mrb[0].mxu0
        %4259 = vmatprep.mubr.f32.mxu0 0.0
        %4260 = vmatmul.mubr.f32.gmra.mrb[0].mxu0 %v4110
        %v4261 = vpop.f32.mrb[0].mxu0
        %v4262 = vadd.f32 0.0, %v4261
        %v4263 = vpop.f32.mrb[0].mxu0
        %4264 = vmatprep.mubr.f32.mxu0 0.0
        %4265 = vmatmul.mubr.f32.gmra.mrb[0].mxu0 %v4111
        %v4266 = vpop.f32.mrb[0].mxu0
        %v4267 = vadd.f32 0.0, %v4266
        %v4268 = vpop.f32.mrb[0].mxu0
        %4269 = vmatprep.mubr.f32.mxu0 0.0
        %4270 = vmatmul.mubr.f32.gmra.mrb[0].mxu0 %v4112
        %v4271 = vpop.f32.mrb[0].mxu0
        %v4272 = vadd.f32 0.0, %v4271
        %v4273 = vpop.f32.mrb[0].mxu0
        %4274 = vdwg.mxu0
        %v4275 = vadd.f32 %v4081, %v4197
        %v4276 = vadd.f32 %v4082, %v4202
        %v4277 = vadd.f32 %v4083, %v4207
        %v4278 = vadd.f32 %v4084, %v4212
        %v4279 = vadd.f32 %v4085, %v4217
        %v4280 = vadd.f32 %v4086, %v4222
        %v4281 = vadd.f32 %v4087, %v4227
        %v4282 = vadd.f32 %v4088, %v4232
        %v4283 = vadd.f32 %v4089, %v4237
        %v4284 = vadd.f32 %v4090, %v4242
        %v4285 = vadd.f32 %v4091, %v4247
        %v4286 = vadd.f32 %v4092, %v4252
        %v4287 = vadd.f32 %v4093, %v4257
        %v4288 = vadd.f32 %v4094, %v4262
        %v4289 = vadd.f32 %v4095, %v4267
        %v4290 = vadd.f32 %v4096, %v4272
        %v4291 = vld [vmem:[%s5] sm:$0x1]
        %v4293 = vlaneseq
        %v4294 = vshrl.u32 %v4293, 7
        %v4295 = vsub.s32 0, %v4294
        %v4296 = vrot.slane %v4291, %v4295
        %v4298 = vadd.f32 %v4275, %v4296
        %v4299 = vadd.f32 %v4276, %v4296
        %v4300 = vadd.f32 %v4277, %v4296
        %v4301 = vadd.f32 %v4278, %v4296
        %v4302 = vadd.f32 %v4279, %v4296
        %v4303 = vadd.f32 %v4280, %v4296
        %v4304 = vadd.f32 %v4281, %v4296
        %v4305 = vadd.f32 %v4282, %v4296
        %v4306 = vadd.f32 %v4283, %v4296
        %v4307 = vadd.f32 %v4284, %v4296
        %v4308 = vadd.f32 %v4285, %v4296
        %v4309 = vadd.f32 %v4286, %v4296
        %v4310 = vadd.f32 %v4287, %v4296
        %v4311 = vadd.f32 %v4288, %v4296
        %v4312 = vadd.f32 %v4289, %v4296
        %v4313 = vadd.f32 %v4290, %v4296
        %v4314 = vld [vmem:[%s255 + $0x1] sm:$0xff]
        %v4315 = vld [vmem:[%s255 + $0x9] sm:$0xff]
        %v4316 = vld [vmem:[%s255 + $0x19] sm:$0xff]
        %v4317 = vld [vmem:[%s255 + $0x21] sm:$0xff]
        %v4318 = vld [vmem:[%s255 + $0x31] sm:$0xff]
        %v4319 = vld [vmem:[%s255 + $0x39] sm:$0xff]
        %v4320 = vld [vmem:[%s255 + $0x49] sm:$0xff]
        %v4321 = vld [vmem:[%s255 + $0x51] sm:$0xff]
        %v4322 = vld [vmem:[%s255 + $0x61] sm:$0xff]
        %v4323 = vld [vmem:[%s255 + $0x69] sm:$0xff]
        %v4324 = vld [vmem:[%s255 + $0x79] sm:$0xff]
        %v4325 = vld [vmem:[%s255 + $0x81] sm:$0xff]
        %v4326 = vld [vmem:[%s255 + $0x91] sm:$0xff]
        %v4327 = vld [vmem:[%s255 + $0x99] sm:$0xff]
        %v4328 = vld [vmem:[%s255 + $0xa9] sm:$0xff]
        %v4329 = vld [vmem:[%s255 + $0xb1] sm:$0xff]
        %v4330 = vadd.f32 %v4298, %v4314
        %v4331 = vadd.f32 %v4299, %v4315
        %v4332 = vadd.f32 %v4300, %v4316
        %v4333 = vadd.f32 %v4301, %v4317
        %v4334 = vadd.f32 %v4302, %v4318
        %v4335 = vadd.f32 %v4303, %v4319
        %v4336 = vadd.f32 %v4304, %v4320
        %v4337 = vadd.f32 %v4305, %v4321
        %v4338 = vadd.f32 %v4306, %v4322
        %v4339 = vadd.f32 %v4307, %v4323
        %v4340 = vadd.f32 %v4308, %v4324
        %v4341 = vadd.f32 %v4309, %v4325
        %v4342 = vadd.f32 %v4310, %v4326
        %v4343 = vadd.f32 %v4311, %v4327
        %v4344 = vadd.f32 %v4312, %v4328
        %v4345 = vadd.f32 %v4313, %v4329
        %4346 = vst [vmem:[%s245] sm:$0xff] %v4330
        %4347 = vst [vmem:[%s245 + $0x8] sm:$0xff] %v4331
        %4348 = vst [vmem:[%s245 + $0x10] sm:$0xff] %v4332
        %4349 = vst [vmem:[%s245 + $0x18] sm:$0xff] %v4333
        %4350 = vst [vmem:[%s245 + $0x20] sm:$0xff] %v4334
        %4351 = vst [vmem:[%s245 + $0x28] sm:$0xff] %v4335
        %4352 = vst [vmem:[%s245 + $0x30] sm:$0xff] %v4336
        %4353 = vst [vmem:[%s245 + $0x38] sm:$0xff] %v4337
        %4354 = vst [vmem:[%s245 + $0x40] sm:$0xff] %v4338
        %4355 = vst [vmem:[%s245 + $0x48] sm:$0xff] %v4339
        %4356 = vst [vmem:[%s245 + $0x50] sm:$0xff] %v4340
        %4357 = vst [vmem:[%s245 + $0x58] sm:$0xff] %v4341
        %4358 = vst [vmem:[%s245 + $0x60] sm:$0xff] %v4342
        %4359 = vst [vmem:[%s245 + $0x68] sm:$0xff] %v4343
        %4360 = vst [vmem:[%s245 + $0x70] sm:$0xff] %v4344
        %4361 = vst [vmem:[%s245 + $0x78] sm:$0xff] %v4345
        %s4362 = sand.u32 %s154, 1
        %s4363 = scalar_lea.sflag [#allocation7], %s4362
        %s4364 = sand.u32 %s154, 1
        %s4365 = smul.addr %s4364, 128
        %s4366 = scalar_lea.vmem [#allocation6], %s4365
        // Predicated region
        $region147: #{tpu_custom_call.1} parent=39 // pred_check
          %p4367 = pneg %p164
        $region148: #{tpu_custom_call.1} parent=39 // pred_check_branch
          %4369 = sbr.rel (%p4367) target = $region150
        $region149: #{tpu_custom_call.1} parent=39 // pred_region
          %s4370 = smul.u32 8, %s25
          %s4372 = ssub.s32 2048, 2048
          %4373 = vsyncadd %s4363, %s4372
          %s4374 = smul.addr %s4370, 2
          %s4375 = smul.addr %s24, 32
          %s4376 = sadd.s32 %s4374, %s4375
          %s4377 = smul.addr %s4376, 128
          %s4378 = scalar_lea.hbm %s6, %s4377
          %s4379 = sshll.u32 %s4366, 4
          %s4380 = int_to_ptr.vmem [resolvable:$true] %s4379
          %4385 = dma.vmem_to_hbm [thread:$0]  %s4380, 2048, %s4378, %s4363, 128, 128, 8
        $region150: #{tpu_custom_call.1} parent=39 // pred_fallthru
          _
      $region40: #{tpu_custom_call.1} parent=5 // pred_fallthru
        _
      %p4386 = scmp.le.s32.totalorder 2, %s15
      // Predicated region
      $region151: #{tpu_custom_call.1} parent=5 // pred_check
        %p4387 = pneg %p4386
      $region152: #{tpu_custom_call.1} parent=5 // pred_check_branch
        %4389 = sbr.rel (%p4387) target = $region154
      $region153: #{tpu_custom_call.1} parent=5 // pred_region
        %s4390 = ssub.s32 %s15, 2
        // Predicated region
        $region155: #{tpu_custom_call.1} parent=153 // pred_check
          %p4391 = pneg %p170
        $region156: #{tpu_custom_call.1} parent=153 // pred_check_branch
          %4393 = sbr.rel (%p4391) target = $region158
        $region157: #{tpu_custom_call.1} parent=153 // pred_region
          %s4394 = sand.u32 %s155, 1
          %s4395 = scalar_lea.sflag [#allocation7], %s4394
          %s4396 = sand.u32 %s155, 1
          %s4397 = smul.addr %s4396, 128
          %s4398 = scalar_lea.vmem [#allocation6], %s4397
          %4399 = dma.done %s4395, 2048
        $region158: #{tpu_custom_call.1} parent=153 // pred_fallthru
          _
      $region154: #{tpu_custom_call.1} parent=5 // pred_fallthru
        _
    $region6: #{tpu_custom_call.1} parent=1 // loop_footer
      %s19 = sadd.s32 1, %s15
    $region7: #{tpu_custom_call.1} parent=1 // loop_footer_branch
      %14 = sbr.rel target = $region3
    $region8: #{tpu_custom_call.1} parent=1 // loop_exit
      _
    %4400 = vsyncpa [#allocation7], 1
    %s4401 = scalar_lea.sflag [#allocation7], 1
    %4402 = vsyncpa %s4401, 1
  %4403 = vsyncmov [#allocation5]
  %s4404 = vpop.sfrf %4403
  %p4405 = scmp.eq.s32.totalorder %s4404, 0
  %p4406 = pneg %p4405
  %4408 = shalt.err (%p4406)
  %s4409 = scalar_lea.sflag [#allocation5], 1
  %4410 = vsyncmov %s4409
  %s4411 = vpop.sfrf %4410
  %p4412 = scmp.eq.s32.totalorder %s4411, 0
  %p4413 = pneg %p4412
  %4415 = shalt.err (%p4413)

</llo_original>
